<compile_context>
chip_gen: v6e
topology: v6e:2x2x1
jax: 0.10.0
libtpu: 0.0.40
codegen_flags: <defaults>
</compile_context>

<pallas_src>
import jax
import jax.numpy as jnp
from jax import lax
from jax.experimental import pallas as pl
from jax.experimental.pallas import tpu as pltpu

FILTER_SIZES = (1, 2, 3, 4, 5, 6, 7, 8, 9, 10)
NUM_FILTERS = 32
IN_CH = 3
NUM_CLASSES = 2
K_MAX = max(FILTER_SIZES)
NUM_K = len(FILTER_SIZES)
F_TOT = NUM_K * NUM_FILTERS          # 320


def textcnn_kernel(x_ref, w_ref, b_ref, mask_ref, wfc_ref, bfc_ref,
                   hid_ref, out_ref):
    TB, SP, CHp = x_ref.shape                 # (batch tile, S + K_MAX - 1, padded 3H)
    S = SP - (K_MAX - 1)
    Fp = w_ref.shape[-1]                      # padded fused filter dim (384)

    # Fused conv over all filter sizes: K_MAX shifted full-width matmuls.
    # Weight rows dk >= k_i are zero-padded, so the static unroll is exact.
    acc = jnp.zeros((TB * S, Fp), jnp.float32)
    for dk in range(K_MAX):                   # static unroll (K_MAX = 10)
        xw = x_ref[:, dk:dk + S, :].reshape(TB * S, CHp)      # bf16, static slice
        acc = acc + jnp.dot(xw, w_ref[dk],
                            preferred_element_type=jnp.float32)

    acc = jnp.maximum(acc + b_ref[...], 0.0)  # bias + ReLU (f32)

    # Mask conv positions past each filter size's valid length. Post-ReLU
    # values are >= 0, so zeroing the invalid tail never changes the max.
    acc = acc.reshape(TB, S, Fp) * mask_ref[...][None]
    pooled = jnp.max(acc, axis=1)             # (TB, Fp) — max_pool1d over time

    hid_ref[...] = pooled                     # lane-dense hidden-state slab

    # FC head: one (TB, Fp) x (Fp, 2) matmul per batch block (f32).
    out_ref[...] = (jnp.dot(pooled, wfc_ref[...],
                            preferred_element_type=jnp.float32)
                    + bfc_ref[...])


def textcnn_forward(x, conv_ws, conv_bs, fc_w, fc_b, *, batch_tile=8):
    """x: (B, 3, S, H) NCHW, like the PyTorch module. Returns (logits, hidden)."""
    B, C, S, H = x.shape
    assert C == IN_CH and S >= K_MAX
    CH = C * H
    CHp = pl.cdiv(CH, 128) * 128              # pad contraction dim to lane multiple
    Fp = pl.cdiv(F_TOT, 128) * 128            # 320 -> 384, lane-dense fused filters
    SP = S + K_MAX - 1

    TB = B if B <= batch_tile else batch_tile
    Bp = pl.cdiv(B, TB) * TB                  # pad batch to a multiple of the tile

    # ---- layout: (B, 3, S, H) -> (Bp, SP, CHp) bf16, time zero-padded ----
    x_flat = jnp.transpose(x.astype(jnp.float32), (0, 2, 1, 3)).reshape(B, S, CH)
    x_pad = jnp.pad(x_flat, ((0, Bp - B), (0, K_MAX - 1), (0, CHp - CH)))
    x_pad = x_pad.astype(jnp.bfloat16)

    # ---- fused conv weights: w_all[dk, c*H+h, i*32+f] = W_i[f, c, dk, h] ----
    w_all = jnp.zeros((K_MAX, CHp, Fp), jnp.float32)
    b_all = jnp.zeros((1, Fp), jnp.float32)
    for i, (k, W, b) in enumerate(zip(FILTER_SIZES, conv_ws, conv_bs)):
        Wp = jnp.transpose(W.astype(jnp.float32), (2, 1, 3, 0)).reshape(k, CH,
                                                                        NUM_FILTERS)
        w_all = w_all.at[:k, :CH, i * NUM_FILTERS:(i + 1) * NUM_FILTERS].set(Wp)
        b_all = b_all.at[0, i * NUM_FILTERS:(i + 1) * NUM_FILTERS].set(
            b.astype(jnp.float32))
    w_all = w_all.astype(jnp.bfloat16)

    # ---- validity mask over conv-output positions, per fused filter column ----
    col_k = jnp.repeat(jnp.asarray(FILTER_SIZES, jnp.int32), NUM_FILTERS)
    col_k = jnp.pad(col_k, (0, Fp - F_TOT), constant_values=S + K_MAX)  # pad cols off
    mask = (jnp.arange(S, dtype=jnp.int32)[:, None]
            <= (S - col_k)[None, :]).astype(jnp.float32)                # (S, Fp)

    # ---- FC head (f32): logits = hidden @ fc_w.T + fc_b ----
    wfc = jnp.zeros((Fp, NUM_CLASSES), jnp.float32).at[:F_TOT].set(
        fc_w.T.astype(jnp.float32))
    bfc = fc_b.reshape(1, NUM_CLASSES).astype(jnp.float32)

    flops = 2 * Bp * S * CHp * Fp * K_MAX + 2 * Bp * Fp * NUM_CLASSES
    bytes_accessed = int(x_pad.size * 2 + w_all.size * 2 + b_all.size * 4
                         + mask.size * 4 + wfc.size * 4 + bfc.size * 4
                         + Bp * Fp * 4 + Bp * NUM_CLASSES * 4)

    hid_pad, logits_pad = pl.pallas_call(
        textcnn_kernel,
        out_shape=(jax.ShapeDtypeStruct((Bp, Fp), jnp.float32),
                   jax.ShapeDtypeStruct((Bp, NUM_CLASSES), jnp.float32)),
        grid_spec=pltpu.PrefetchScalarGridSpec(
            num_scalar_prefetch=0,
            grid=(Bp // TB,),                                   # batch blocks
            in_specs=[
                pl.BlockSpec((TB, SP, CHp), lambda b: (b, 0, 0)),
                pl.BlockSpec((K_MAX, CHp, Fp), lambda b: (0, 0, 0)),
                pl.BlockSpec((1, Fp), lambda b: (0, 0)),
                pl.BlockSpec((S, Fp), lambda b: (0, 0)),
                pl.BlockSpec((Fp, NUM_CLASSES), lambda b: (0, 0)),
                pl.BlockSpec((1, NUM_CLASSES), lambda b: (0, 0)),
            ],
            out_specs=(
                pl.BlockSpec((TB, Fp), lambda b: (b, 0)),
                pl.BlockSpec((TB, NUM_CLASSES), lambda b: (b, 0)),
            ),
        ),
        compiler_params=pltpu.CompilerParams(
            dimension_semantics=("parallel",)),                 # 2 TCs on v7x
        cost_estimate=pl.CostEstimate(flops=flops, transcendentals=0,
                                      bytes_accessed=bytes_accessed),
    )(x_pad, w_all, b_all, mask, wfc, bfc)

    # Matches torch.cat([...], dim=1) ordering: filter-size blocks side by side.
    hidden_state = hid_pad[:B, :F_TOT]
    logits = logits_pad[:B]
    return logits, hidden_state


def ref_forward(x, conv_ws, conv_bs, fc_w, fc_b):
    """Pure-JAX reference mirroring the PyTorch forward (eval mode).

    Inputs are bf16-rounded (then computed in f32) to match the kernel's
    bf16-MXU / f32-accumulate precision."""
    xf = x.astype(jnp.bfloat16).astype(jnp.float32)
    feats = []
    for W, b in zip(conv_ws, conv_bs):
        Wf = W.astype(jnp.bfloat16).astype(jnp.float32)
        y = lax.conv_general_dilated(xf, Wf, (1, 1), 'VALID',
                                     dimension_numbers=('NCHW', 'OIHW', 'NCHW'))
        y = jnp.maximum(y + b[None, :, None, None], 0.0)[..., 0]   # (B, 32, L)
        feats.append(jnp.max(y, axis=-1))
    hid = jnp.concatenate(feats, axis=1)
    return hid @ fc_w.T + fc_b, hid


if __name__ == "__main__":
    B, S, H = 2, 16, 32            # seq must be >= max filter size (10)
    key = jax.random.PRNGKey(0)
    keys = jax.random.split(key, 2 * NUM_K + 3)

    x = jax.random.normal(keys[0], (B, IN_CH, S, H), jnp.float32)
    conv_ws, conv_bs = [], []
    for i, k in enumerate(FILTER_SIZES):
        conv_ws.append(0.1 * jax.random.normal(
            keys[1 + 2 * i], (NUM_FILTERS, IN_CH, k, H), jnp.float32))
        conv_bs.append(0.1 * jax.random.normal(
            keys[2 + 2 * i], (NUM_FILTERS,), jnp.float32))
    fc_w = 0.1 * jax.random.normal(keys[-2], (NUM_CLASSES, NUM_K * NUM_FILTERS),
                                   jnp.float32)
    fc_b = 0.1 * jax.random.normal(keys[-1], (NUM_CLASSES,), jnp.float32)

    logits, hidden = textcnn_forward(x, conv_ws, conv_bs, fc_w, fc_b)
    jax.block_until_ready((logits, hidden))

    ref_logits, ref_hidden = ref_forward(x, conv_ws, conv_bs, fc_w, fc_b)
    assert jnp.allclose(hidden, ref_hidden, atol=1e-3, rtol=1e-3), "hidden mismatch"
    assert jnp.allclose(logits, ref_logits, atol=1e-3, rtol=1e-3), "logits mismatch"
    print("KERNEL_OK")
</pallas_src>

<mosaic_0001>
module attributes {stable_mosaic.version = 11 : i64} {
  func.func @textcnn_kernel(%arg0: i32, %arg1: memref<2x25x128xbf16, #tpu.memory_space<vmem>>, %arg2: memref<10x128x384xbf16, #tpu.memory_space<vmem>>, %arg3: memref<1x384xf32, #tpu.memory_space<vmem>>, %arg4: memref<16x384xf32, #tpu.memory_space<vmem>>, %arg5: memref<384x2xf32, #tpu.memory_space<vmem>>, %arg6: memref<1x2xf32, #tpu.memory_space<vmem>>, %arg7: memref<2x384xf32, #tpu.memory_space<vmem>>, %arg8: memref<2x2xf32, #tpu.memory_space<vmem>>) attributes {dimension_semantics = [#tpu.dimension_semantics<parallel>], iteration_bounds = array<i64: 1>, scalar_prefetch = 0 : i64, scratch_operands = 0 : i64, tpu.core_type = #tpu.core_type<tc>, window_params = [{transform_indices = @transform_0, window_bounds = array<i64: 2, 25, 128>}, {pipeline_mode = #tpu.pipeline_mode<synchronous>, transform_indices = @transform_1, window_bounds = array<i64: 10, 128, 384>}, {pipeline_mode = #tpu.pipeline_mode<synchronous>, transform_indices = @transform_2, window_bounds = array<i64: 1, 384>}, {pipeline_mode = #tpu.pipeline_mode<synchronous>, transform_indices = @transform_3, window_bounds = array<i64: 16, 384>}, {pipeline_mode = #tpu.pipeline_mode<synchronous>, transform_indices = @transform_4, window_bounds = array<i64: 384, 2>}, {pipeline_mode = #tpu.pipeline_mode<synchronous>, transform_indices = @transform_5, window_bounds = array<i64: 1, 2>}, {transform_indices = @transform_6, window_bounds = array<i64: 2, 384>}, {transform_indices = @transform_7, window_bounds = array<i64: 2, 2>}]} {
    %cst = arith.constant 0.000000e+00 : f32
    %0 = vector.broadcast %cst : f32 to vector<32x384xf32>
    %c0 = arith.constant 0 : index
    %c0_0 = arith.constant 0 : index
    %c0_1 = arith.constant 0 : index
    %1 = vector.load %arg1[%c0, %c0_0, %c0_1] : memref<2x25x128xbf16, #tpu.memory_space<vmem>>, vector<2x16x128xbf16>
    %2 = vector.shape_cast %1 : vector<2x16x128xbf16> to vector<32x128xbf16>
    %c0_2 = arith.constant 0 : index
    %c0_3 = arith.constant 0 : index
    %c0_4 = arith.constant 0 : index
    %3 = vector.load %arg2[%c0_2, %c0_3, %c0_4] : memref<10x128x384xbf16, #tpu.memory_space<vmem>>, vector<1x128x384xbf16>
    %4 = vector.shape_cast %3 : vector<1x128x384xbf16> to vector<128x384xbf16>
    %cst_5 = arith.constant dense<0.000000e+00> : vector<32x384xf32>
    %5 = tpu.matmul %2, %4, %cst_5 {dimension_numbers = #tpu.dot_dimension_numbers<[1], [0], [0], [1], [0, 0, 1, 1], [], []>} : vector<32x128xbf16>, vector<128x384xbf16>, vector<32x384xf32> -> vector<32x384xf32>
    %6 = arith.addf %0, %5 : vector<32x384xf32>
    %c0_6 = arith.constant 0 : index
    %c1 = arith.constant 1 : index
    %c0_7 = arith.constant 0 : index
    %7 = vector.load %arg1[%c0_6, %c1, %c0_7] : memref<2x25x128xbf16, #tpu.memory_space<vmem>>, vector<2x16x128xbf16>
    %8 = vector.shape_cast %7 : vector<2x16x128xbf16> to vector<32x128xbf16>
    %c1_8 = arith.constant 1 : index
    %c0_9 = arith.constant 0 : index
    %c0_10 = arith.constant 0 : index
    %9 = vector.load %arg2[%c1_8, %c0_9, %c0_10] : memref<10x128x384xbf16, #tpu.memory_space<vmem>>, vector<1x128x384xbf16>
    %10 = vector.shape_cast %9 : vector<1x128x384xbf16> to vector<128x384xbf16>
    %cst_11 = arith.constant dense<0.000000e+00> : vector<32x384xf32>
    %11 = tpu.matmul %8, %10, %cst_11 {dimension_numbers = #tpu.dot_dimension_numbers<[1], [0], [0], [1], [0, 0, 1, 1], [], []>} : vector<32x128xbf16>, vector<128x384xbf16>, vector<32x384xf32> -> vector<32x384xf32>
    %12 = arith.addf %6, %11 : vector<32x384xf32>
    %c0_12 = arith.constant 0 : index
    %c2 = arith.constant 2 : index
    %c0_13 = arith.constant 0 : index
    %13 = vector.load %arg1[%c0_12, %c2, %c0_13] : memref<2x25x128xbf16, #tpu.memory_space<vmem>>, vector<2x16x128xbf16>
    %14 = vector.shape_cast %13 : vector<2x16x128xbf16> to vector<32x128xbf16>
    %c2_14 = arith.constant 2 : index
    %c0_15 = arith.constant 0 : index
    %c0_16 = arith.constant 0 : index
    %15 = vector.load %arg2[%c2_14, %c0_15, %c0_16] : memref<10x128x384xbf16, #tpu.memory_space<vmem>>, vector<1x128x384xbf16>
    %16 = vector.shape_cast %15 : vector<1x128x384xbf16> to vector<128x384xbf16>
    %cst_17 = arith.constant dense<0.000000e+00> : vector<32x384xf32>
    %17 = tpu.matmul %14, %16, %cst_17 {dimension_numbers = #tpu.dot_dimension_numbers<[1], [0], [0], [1], [0, 0, 1, 1], [], []>} : vector<32x128xbf16>, vector<128x384xbf16>, vector<32x384xf32> -> vector<32x384xf32>
    %18 = arith.addf %12, %17 : vector<32x384xf32>
    %c0_18 = arith.constant 0 : index
    %c3 = arith.constant 3 : index
    %c0_19 = arith.constant 0 : index
    %19 = vector.load %arg1[%c0_18, %c3, %c0_19] : memref<2x25x128xbf16, #tpu.memory_space<vmem>>, vector<2x16x128xbf16>
    %20 = vector.shape_cast %19 : vector<2x16x128xbf16> to vector<32x128xbf16>
    %c3_20 = arith.constant 3 : index
    %c0_21 = arith.constant 0 : index
    %c0_22 = arith.constant 0 : index
    %21 = vector.load %arg2[%c3_20, %c0_21, %c0_22] : memref<10x128x384xbf16, #tpu.memory_space<vmem>>, vector<1x128x384xbf16>
    %22 = vector.shape_cast %21 : vector<1x128x384xbf16> to vector<128x384xbf16>
    %cst_23 = arith.constant dense<0.000000e+00> : vector<32x384xf32>
    %23 = tpu.matmul %20, %22, %cst_23 {dimension_numbers = #tpu.dot_dimension_numbers<[1], [0], [0], [1], [0, 0, 1, 1], [], []>} : vector<32x128xbf16>, vector<128x384xbf16>, vector<32x384xf32> -> vector<32x384xf32>
    %24 = arith.addf %18, %23 : vector<32x384xf32>
    %c0_24 = arith.constant 0 : index
    %c4 = arith.constant 4 : index
    %c0_25 = arith.constant 0 : index
    %25 = vector.load %arg1[%c0_24, %c4, %c0_25] : memref<2x25x128xbf16, #tpu.memory_space<vmem>>, vector<2x16x128xbf16>
    %26 = vector.shape_cast %25 : vector<2x16x128xbf16> to vector<32x128xbf16>
    %c4_26 = arith.constant 4 : index
    %c0_27 = arith.constant 0 : index
    %c0_28 = arith.constant 0 : index
    %27 = vector.load %arg2[%c4_26, %c0_27, %c0_28] : memref<10x128x384xbf16, #tpu.memory_space<vmem>>, vector<1x128x384xbf16>
    %28 = vector.shape_cast %27 : vector<1x128x384xbf16> to vector<128x384xbf16>
    %cst_29 = arith.constant dense<0.000000e+00> : vector<32x384xf32>
    %29 = tpu.matmul %26, %28, %cst_29 {dimension_numbers = #tpu.dot_dimension_numbers<[1], [0], [0], [1], [0, 0, 1, 1], [], []>} : vector<32x128xbf16>, vector<128x384xbf16>, vector<32x384xf32> -> vector<32x384xf32>
    %30 = arith.addf %24, %29 : vector<32x384xf32>
    %c0_30 = arith.constant 0 : index
    %c5 = arith.constant 5 : index
    %c0_31 = arith.constant 0 : index
    %31 = vector.load %arg1[%c0_30, %c5, %c0_31] : memref<2x25x128xbf16, #tpu.memory_space<vmem>>, vector<2x16x128xbf16>
    %32 = vector.shape_cast %31 : vector<2x16x128xbf16> to vector<32x128xbf16>
    %c5_32 = arith.constant 5 : index
    %c0_33 = arith.constant 0 : index
    %c0_34 = arith.constant 0 : index
    %33 = vector.load %arg2[%c5_32, %c0_33, %c0_34] : memref<10x128x384xbf16, #tpu.memory_space<vmem>>, vector<1x128x384xbf16>
    %34 = vector.shape_cast %33 : vector<1x128x384xbf16> to vector<128x384xbf16>
    %cst_35 = arith.constant dense<0.000000e+00> : vector<32x384xf32>
    %35 = tpu.matmul %32, %34, %cst_35 {dimension_numbers = #tpu.dot_dimension_numbers<[1], [0], [0], [1], [0, 0, 1, 1], [], []>} : vector<32x128xbf16>, vector<128x384xbf16>, vector<32x384xf32> -> vector<32x384xf32>
    %36 = arith.addf %30, %35 : vector<32x384xf32>
    %c0_36 = arith.constant 0 : index
    %c6 = arith.constant 6 : index
    %c0_37 = arith.constant 0 : index
    %37 = vector.load %arg1[%c0_36, %c6, %c0_37] : memref<2x25x128xbf16, #tpu.memory_space<vmem>>, vector<2x16x128xbf16>
    %38 = vector.shape_cast %37 : vector<2x16x128xbf16> to vector<32x128xbf16>
    %c6_38 = arith.constant 6 : index
    %c0_39 = arith.constant 0 : index
    %c0_40 = arith.constant 0 : index
    %39 = vector.load %arg2[%c6_38, %c0_39, %c0_40] : memref<10x128x384xbf16, #tpu.memory_space<vmem>>, vector<1x128x384xbf16>
    %40 = vector.shape_cast %39 : vector<1x128x384xbf16> to vector<128x384xbf16>
    %cst_41 = arith.constant dense<0.000000e+00> : vector<32x384xf32>
    %41 = tpu.matmul %38, %40, %cst_41 {dimension_numbers = #tpu.dot_dimension_numbers<[1], [0], [0], [1], [0, 0, 1, 1], [], []>} : vector<32x128xbf16>, vector<128x384xbf16>, vector<32x384xf32> -> vector<32x384xf32>
    %42 = arith.addf %36, %41 : vector<32x384xf32>
    %c0_42 = arith.constant 0 : index
    %c7 = arith.constant 7 : index
    %c0_43 = arith.constant 0 : index
    %43 = vector.load %arg1[%c0_42, %c7, %c0_43] : memref<2x25x128xbf16, #tpu.memory_space<vmem>>, vector<2x16x128xbf16>
    %44 = vector.shape_cast %43 : vector<2x16x128xbf16> to vector<32x128xbf16>
    %c7_44 = arith.constant 7 : index
    %c0_45 = arith.constant 0 : index
    %c0_46 = arith.constant 0 : index
    %45 = vector.load %arg2[%c7_44, %c0_45, %c0_46] : memref<10x128x384xbf16, #tpu.memory_space<vmem>>, vector<1x128x384xbf16>
    %46 = vector.shape_cast %45 : vector<1x128x384xbf16> to vector<128x384xbf16>
    %cst_47 = arith.constant dense<0.000000e+00> : vector<32x384xf32>
    %47 = tpu.matmul %44, %46, %cst_47 {dimension_numbers = #tpu.dot_dimension_numbers<[1], [0], [0], [1], [0, 0, 1, 1], [], []>} : vector<32x128xbf16>, vector<128x384xbf16>, vector<32x384xf32> -> vector<32x384xf32>
    %48 = arith.addf %42, %47 : vector<32x384xf32>
    %c0_48 = arith.constant 0 : index
    %c8 = arith.constant 8 : index
    %c0_49 = arith.constant 0 : index
    %49 = vector.load %arg1[%c0_48, %c8, %c0_49] : memref<2x25x128xbf16, #tpu.memory_space<vmem>>, vector<2x16x128xbf16>
    %50 = vector.shape_cast %49 : vector<2x16x128xbf16> to vector<32x128xbf16>
    %c8_50 = arith.constant 8 : index
    %c0_51 = arith.constant 0 : index
    %c0_52 = arith.constant 0 : index
    %51 = vector.load %arg2[%c8_50, %c0_51, %c0_52] : memref<10x128x384xbf16, #tpu.memory_space<vmem>>, vector<1x128x384xbf16>
    %52 = vector.shape_cast %51 : vector<1x128x384xbf16> to vector<128x384xbf16>
    %cst_53 = arith.constant dense<0.000000e+00> : vector<32x384xf32>
    %53 = tpu.matmul %50, %52, %cst_53 {dimension_numbers = #tpu.dot_dimension_numbers<[1], [0], [0], [1], [0, 0, 1, 1], [], []>} : vector<32x128xbf16>, vector<128x384xbf16>, vector<32x384xf32> -> vector<32x384xf32>
    %54 = arith.addf %48, %53 : vector<32x384xf32>
    %c0_54 = arith.constant 0 : index
    %c9 = arith.constant 9 : index
    %c0_55 = arith.constant 0 : index
    %55 = vector.load %arg1[%c0_54, %c9, %c0_55] : memref<2x25x128xbf16, #tpu.memory_space<vmem>>, vector<2x16x128xbf16>
    %56 = vector.shape_cast %55 : vector<2x16x128xbf16> to vector<32x128xbf16>
    %c9_56 = arith.constant 9 : index
    %c0_57 = arith.constant 0 : index
    %c0_58 = arith.constant 0 : index
    %57 = vector.load %arg2[%c9_56, %c0_57, %c0_58] : memref<10x128x384xbf16, #tpu.memory_space<vmem>>, vector<1x128x384xbf16>
    %58 = vector.shape_cast %57 : vector<1x128x384xbf16> to vector<128x384xbf16>
    %cst_59 = arith.constant dense<0.000000e+00> : vector<32x384xf32>
    %59 = tpu.matmul %56, %58, %cst_59 {dimension_numbers = #tpu.dot_dimension_numbers<[1], [0], [0], [1], [0, 0, 1, 1], [], []>} : vector<32x128xbf16>, vector<128x384xbf16>, vector<32x384xf32> -> vector<32x384xf32>
    %60 = arith.addf %54, %59 : vector<32x384xf32>
    %c0_60 = arith.constant 0 : index
    %c0_61 = arith.constant 0 : index
    %61 = vector.load %arg3[%c0_60, %c0_61] : memref<1x384xf32, #tpu.memory_space<vmem>>, vector<1x384xf32>
    %62 = vector.broadcast %61 : vector<1x384xf32> to vector<32x384xf32>
    %63 = arith.addf %60, %62 : vector<32x384xf32>
    %cst_62 = arith.constant 0.000000e+00 : f32
    %64 = vector.broadcast %cst_62 : f32 to vector<32x384xf32>
    %65 = arith.maximumf %63, %64 : vector<32x384xf32>
    %66 = vector.shape_cast %65 : vector<32x384xf32> to vector<2x16x384xf32>
    %c0_63 = arith.constant 0 : index
    %c0_64 = arith.constant 0 : index
    %67 = vector.load %arg4[%c0_63, %c0_64] : memref<16x384xf32, #tpu.memory_space<vmem>>, vector<16x384xf32>
    %68 = vector.shape_cast %67 : vector<16x384xf32> to vector<1x16x384xf32>
    %69 = vector.broadcast %68 : vector<1x16x384xf32> to vector<2x16x384xf32>
    %70 = arith.mulf %66, %69 : vector<2x16x384xf32>
    %cst_65 = arith.constant dense<0xFF800000> : vector<2x384xf32>
    %71 = vector.multi_reduction <maximumf>, %70, %cst_65 [1] : vector<2x16x384xf32> to vector<2x384xf32>
    %c0_66 = arith.constant 0 : index
    %c0_67 = arith.constant 0 : index
    %72 = vector.load %arg7[%c0_66, %c0_67] : memref<2x384xf32, #tpu.memory_space<vmem>>, vector<2x384xf32>
    tpu.vector_store %arg7[%c0_66, %c0_67], %71 {strides = array<i32>} : memref<2x384xf32, #tpu.memory_space<vmem>>, vector<2x384xf32>,
    %c0_68 = arith.constant 0 : index
    %c0_69 = arith.constant 0 : index
    %73 = vector.load %arg5[%c0_68, %c0_69] : memref<384x2xf32, #tpu.memory_space<vmem>>, vector<384x2xf32>
    %cst_70 = arith.constant dense<0.000000e+00> : vector<2x2xf32>
    %74 = tpu.matmul %71, %73, %cst_70 {dimension_numbers = #tpu.dot_dimension_numbers<[1], [0], [0], [1], [0, 0, 1, 1], [], []>} : vector<2x384xf32>, vector<384x2xf32>, vector<2x2xf32> -> vector<2x2xf32>
    %c0_71 = arith.constant 0 : index
    %c0_72 = arith.constant 0 : index
    %75 = vector.load %arg6[%c0_71, %c0_72] : memref<1x2xf32, #tpu.memory_space<vmem>>, vector<1x2xf32>
    %76 = vector.broadcast %75 : vector<1x2xf32> to vector<2x2xf32>
    %77 = arith.addf %74, %76 : vector<2x2xf32>
    %c0_73 = arith.constant 0 : index
    %c0_74 = arith.constant 0 : index
    %78 = vector.load %arg8[%c0_73, %c0_74] : memref<2x2xf32, #tpu.memory_space<vmem>>, vector<2x2xf32>
    tpu.vector_store %arg8[%c0_73, %c0_74], %77 {strides = array<i32>} : memref<2x2xf32, #tpu.memory_space<vmem>>, vector<2x2xf32>,
    return
  }
  func.func @transform_0(%arg0: i32) -> (i32, i32, i32) {
    %c0_i32 = arith.constant 0 : i32
    %c0_i32_0 = arith.constant 0 : i32
    %c0_i32_1 = arith.constant 0 : i32
    return %arg0, %c0_i32, %c0_i32_0 : i32, i32, i32
  }
  func.func @transform_1(%arg0: i32) -> (i32, i32, i32) {
    %c0_i32 = arith.constant 0 : i32
    %c0_i32_0 = arith.constant 0 : i32
    %c0_i32_1 = arith.constant 0 : i32
    %c0_i32_2 = arith.constant 0 : i32
    return %c0_i32, %c0_i32_0, %c0_i32_1 : i32, i32, i32
  }
  func.func @transform_2(%arg0: i32) -> (i32, i32) {
    %c0_i32 = arith.constant 0 : i32
    %c0_i32_0 = arith.constant 0 : i32
    %c0_i32_1 = arith.constant 0 : i32
    return %c0_i32, %c0_i32_0 : i32, i32
  }
  func.func @transform_3(%arg0: i32) -> (i32, i32) {
    %c0_i32 = arith.constant 0 : i32
    %c0_i32_0 = arith.constant 0 : i32
    %c0_i32_1 = arith.constant 0 : i32
    return %c0_i32, %c0_i32_0 : i32, i32
  }
  func.func @transform_4(%arg0: i32) -> (i32, i32) {
    %c0_i32 = arith.constant 0 : i32
    %c0_i32_0 = arith.constant 0 : i32
    %c0_i32_1 = arith.constant 0 : i32
    return %c0_i32, %c0_i32_0 : i32, i32
  }
  func.func @transform_5(%arg0: i32) -> (i32, i32) {
    %c0_i32 = arith.constant 0 : i32
    %c0_i32_0 = arith.constant 0 : i32
    %c0_i32_1 = arith.constant 0 : i32
    return %c0_i32, %c0_i32_0 : i32, i32
  }
  func.func @transform_6(%arg0: i32) -> (i32, i32) {
    %c0_i32 = arith.constant 0 : i32
    %c0_i32_0 = arith.constant 0 : i32
    return %arg0, %c0_i32 : i32, i32
  }
  func.func @transform_7(%arg0: i32) -> (i32, i32) {
    %c0_i32 = arith.constant 0 : i32
    %c0_i32_0 = arith.constant 0 : i32
    return %arg0, %c0_i32 : i32, i32
  }
}

</mosaic_0001>

<llo_original>
// kernel: tpu_custom_call.1
$region0: #{tpu_custom_call.1}
  #allocation0 [shape = 'u32[]', space=smem, size = 0x4, offset = 0x4, fixed_abs, tag = 'smem constant byte address 0x4 - core index']
  #allocation1 [shape = 'u32[144,128]{1,0:T(1,128)}', space=vmem, size = 0x12000, scoped, tag = 'internal scratch']
  %s0 = inlined_call_operand.vmem [shape: bf16[2,25,128], index: 0, kind: input, shape index: {}]
  %s1 = inlined_call_operand.hbm [shape: bf16[10,128,384], index: 1, kind: input, shape index: {}]
  %s2 = inlined_call_operand.vmem [shape: f32[1,384], index: 2, kind: input, shape index: {}]
  %s3 = inlined_call_operand.vmem [shape: f32[16,384], index: 3, kind: input, shape index: {}]
  %s4 = inlined_call_operand.vmem [shape: f32[384,2], index: 4, kind: input, shape index: {}]
  %s5 = inlined_call_operand.vmem [shape: f32[1,2], index: 5, kind: input, shape index: {}]
  %s6 = inlined_call_operand.hbm [shape: f32[2,384], index: 6, kind: output, shape index: {0}]
  %s7 = inlined_call_operand.hbm [shape: f32[2,2], index: 7, kind: output, shape index: {1}]
  %8 = xla_tuple %s6, %s7
  %s9 = sld [smem:[#allocation0]]
  $region46: #{tpu_custom_call.1} parent=0
    _
  %s11 = ssub.s32 1, %s9
  %s12 = scalar_select 0, %s11, %s9
  $region1: #{tpu_custom_call.1} parent=0
    #allocation2 [shape = 'u8[983040]{0}', space=vmem, size = 0xf0000, scoped, tag = 'input window, operand 1, single buffered']
    #allocation3 [shape = 's32[1]{0}', space=sflag, size = 0x4, scoped, tag = 'scoped memory for tpu_custom_call.1']
    #allocation4 [shape = 's32[1]{0}', space=sflag, size = 0x4, scoped, tag = 'scoped memory for tpu_custom_call.1']
    #allocation5 [shape = 'u8[3072]{0}', space=vmem, size = 0xc00, scoped, tag = 'output window, operand 0, single buffered']
    #allocation6 [shape = 'u8[1024]{0}', space=vmem, size = 0x400, scoped, tag = 'output window, operand 1, single buffered']
    #allocation7 [shape = 's32[1]{0}', space=sflag, size = 0x4, scoped, tag = 'scoped memory for tpu_custom_call.1']
    %13 = vsyncpa [#allocation3], 0
    %14 = vsyncpa [#allocation4], 0
    %15 = vsyncpa [#allocation7], 0
    // Predicated region
    $region2: #{tpu_custom_call.1} parent=1 // pred_check
      _
    $region3: #{tpu_custom_call.1} parent=1 // pred_check_branch
      %17 = sbr.rel (0) target = $region5
    $region4: #{tpu_custom_call.1} parent=1 // pred_region
      _
    $region5: #{tpu_custom_call.1} parent=1 // pred_fallthru
      _
    // Predicated region
    $region6: #{tpu_custom_call.1} parent=1 // pred_check
      _
    $region7: #{tpu_custom_call.1} parent=1 // pred_check_branch
      %19 = sbr.rel (0) target = $region9
    $region8: #{tpu_custom_call.1} parent=1 // pred_region
      %s21 = ssub.s32 30720, 30720
      %22 = vsyncadd [#allocation3], %s21
      %s23 = sshll.u32 [#allocation2], 4
      %s24 = int_to_ptr.vmem [resolvable:$true] %s23
      %29 = dma.hbm_to_vmem [thread:$0]  %s1, 30720, %s24, [#allocation3], 192, 192, 12
    $region9: #{tpu_custom_call.1} parent=1 // pred_fallthru
      _
    // Predicated region
    $region10: #{tpu_custom_call.1} parent=1 // pred_check
      _
    $region11: #{tpu_custom_call.1} parent=1 // pred_check_branch
      %31 = sbr.rel (0) target = $region13
    $region12: #{tpu_custom_call.1} parent=1 // pred_region
      _
    $region13: #{tpu_custom_call.1} parent=1 // pred_fallthru
      _
    // Predicated region
    $region14: #{tpu_custom_call.1} parent=1 // pred_check
      _
    $region15: #{tpu_custom_call.1} parent=1 // pred_check_branch
      %33 = sbr.rel (0) target = $region17
    $region16: #{tpu_custom_call.1} parent=1 // pred_region
      _
    $region17: #{tpu_custom_call.1} parent=1 // pred_fallthru
      _
    // Predicated region
    $region18: #{tpu_custom_call.1} parent=1 // pred_check
      _
    $region19: #{tpu_custom_call.1} parent=1 // pred_check_branch
      %35 = sbr.rel (0) target = $region21
    $region20: #{tpu_custom_call.1} parent=1 // pred_region
      _
    $region21: #{tpu_custom_call.1} parent=1 // pred_fallthru
      _
    // Predicated region
    $region22: #{tpu_custom_call.1} parent=1 // pred_check
      _
    $region23: #{tpu_custom_call.1} parent=1 // pred_check_branch
      %37 = sbr.rel (0) target = $region25
    $region24: #{tpu_custom_call.1} parent=1 // pred_region
      _
    $region25: #{tpu_custom_call.1} parent=1 // pred_fallthru
      _
    // Predicated region
    $region26: #{tpu_custom_call.1} parent=1 // pred_check
      _
    $region27: #{tpu_custom_call.1} parent=1 // pred_check_branch
      %39 = sbr.rel (0) target = $region29
    $region28: #{tpu_custom_call.1} parent=1 // pred_region
      %40 = dma.done [#allocation3], 30720
    $region29: #{tpu_custom_call.1} parent=1 // pred_fallthru
      _
    %v42 = vld [vmem:[%s0] sm:$0xf]
    %v43 = vld [vmem:[%s0 + $0x4] sm:$0xf]
    %v44 = vld [vmem:[%s0 + $0x10] sm:$0xf]
    %v45 = vld [vmem:[%s0 + $0x14] sm:$0xf]
    %v46 = vld [vmem:[#allocation2] sm:$0xff]
    %v47 = vld [vmem:[#allocation2 + $0x8] sm:$0xf]
    %v48 = vld [vmem:[#allocation2 + $0xc] sm:$0xff]
    %v49 = vld [vmem:[#allocation2 + $0x14] sm:$0xf]
    %v50 = vld [vmem:[#allocation2 + $0x18] sm:$0xff]
    %v51 = vld [vmem:[#allocation2 + $0x20] sm:$0xf]
    %v52 = vld [vmem:[#allocation2 + $0x24] sm:$0xff]
    %v53 = vld [vmem:[#allocation2 + $0x2c] sm:$0xf]
    %v54 = vld [vmem:[#allocation2 + $0x30] sm:$0xff]
    %v55 = vld [vmem:[#allocation2 + $0x38] sm:$0xf]
    %v56 = vld [vmem:[#allocation2 + $0x3c] sm:$0xff]
    %v57 = vld [vmem:[#allocation2 + $0x44] sm:$0xf]
    %v58 = vld [vmem:[#allocation2 + $0x48] sm:$0xff]
    %v59 = vld [vmem:[#allocation2 + $0x50] sm:$0xf]
    %v60 = vld [vmem:[#allocation2 + $0x54] sm:$0xff]
    %v61 = vld [vmem:[#allocation2 + $0x5c] sm:$0xf]
    %v62 = vld [vmem:[#allocation2 + $0x60] sm:$0xff]
    %v63 = vld [vmem:[#allocation2 + $0x68] sm:$0xf]
    %v64 = vld [vmem:[#allocation2 + $0x6c] sm:$0xff]
    %v65 = vld [vmem:[#allocation2 + $0x74] sm:$0xf]
    %v66 = vld [vmem:[#allocation2 + $0x78] sm:$0xff]
    %v67 = vld [vmem:[#allocation2 + $0x80] sm:$0xf]
    %v68 = vld [vmem:[#allocation2 + $0x84] sm:$0xff]
    %v69 = vld [vmem:[#allocation2 + $0x8c] sm:$0xf]
    %v70 = vld [vmem:[#allocation2 + $0x90] sm:$0xff]
    %v71 = vld [vmem:[#allocation2 + $0x98] sm:$0xf]
    %v72 = vld [vmem:[#allocation2 + $0x9c] sm:$0xff]
    %v73 = vld [vmem:[#allocation2 + $0xa4] sm:$0xf]
    %v74 = vld [vmem:[#allocation2 + $0xa8] sm:$0xff]
    %v75 = vld [vmem:[#allocation2 + $0xb0] sm:$0xf]
    %v76 = vld [vmem:[#allocation2 + $0xb4] sm:$0xff]
    %v77 = vld [vmem:[#allocation2 + $0xbc] sm:$0xf]
    %v78 = vld [vmem:[%s0 + $0x8] sm:$0x1]
    %v79 = vld [vmem:[%s0 + $0x18] sm:$0x1]
    %vm80 = vsmask.f32 3328
    %vm81 = vsmask.f32 7440
    %vm82 = vmor %vm80, %vm81
    %v84 = vshrl.u32 %v42, 16
    %v86 = vrot.slane %v84, 4
    %v87 = vshll.u32 %v42, 16
    %v89 = vrot.slane %v87, 5
    %v90 = vor.u32 %v86, %v89
    %v91 = vrot.slane %v90, 4
    %v93 = vshll.u32 %v43, 16
    %v95 = vrot.slane %v93, 5
    %v96 = vsel %vm82, %v91, %v95
    %v97 = vshrl.u32 %v43, 16
    %v99 = vrot.slane %v97, 4
    %v100 = vor.u32 %v99, %v95
    %v101 = vrot.slane %v100, 4
    %v103 = vshll.u32 %v78, 16
    %v105 = vrot.slane %v103, 5
    %v106 = vsel %vm82, %v101, %v105
    %v108 = vshrl.u32 %v44, 16
    %v110 = vrot.slane %v108, 4
    %v111 = vshll.u32 %v44, 16
    %v113 = vrot.slane %v111, 5
    %v114 = vor.u32 %v110, %v113
    %v115 = vrot.slane %v114, 4
    %v117 = vshll.u32 %v45, 16
    %v119 = vrot.slane %v117, 5
    %v120 = vsel %vm82, %v115, %v119
    %v121 = vshrl.u32 %v45, 16
    %v123 = vrot.slane %v121, 4
    %v124 = vor.u32 %v123, %v119
    %v125 = vrot.slane %v124, 4
    %v127 = vshll.u32 %v79, 16
    %v129 = vrot.slane %v127, 5
    %v130 = vsel %vm82, %v125, %v129
    %s131 = scalar_lea.vmem [#allocation2], 192
    %v132 = vld [vmem:[%s131] sm:$0xff]
    %v133 = vld [vmem:[%s131 + $0x8] sm:$0xf]
    %v134 = vld [vmem:[%s131 + $0xc] sm:$0xff]
    %v135 = vld [vmem:[%s131 + $0x14] sm:$0xf]
    %v136 = vld [vmem:[%s131 + $0x18] sm:$0xff]
    %v137 = vld [vmem:[%s131 + $0x20] sm:$0xf]
    %v138 = vld [vmem:[%s131 + $0x24] sm:$0xff]
    %v139 = vld [vmem:[%s131 + $0x2c] sm:$0xf]
    %v140 = vld [vmem:[%s131 + $0x30] sm:$0xff]
    %v141 = vld [vmem:[%s131 + $0x38] sm:$0xf]
    %v142 = vld [vmem:[%s131 + $0x3c] sm:$0xff]
    %v143 = vld [vmem:[%s131 + $0x44] sm:$0xf]
    %v144 = vld [vmem:[%s131 + $0x48] sm:$0xff]
    %v145 = vld [vmem:[%s131 + $0x50] sm:$0xf]
    %v146 = vld [vmem:[%s131 + $0x54] sm:$0xff]
    %v147 = vld [vmem:[%s131 + $0x5c] sm:$0xf]
    %v148 = vld [vmem:[%s131 + $0x60] sm:$0xff]
    %v149 = vld [vmem:[%s131 + $0x68] sm:$0xf]
    %v150 = vld [vmem:[%s131 + $0x6c] sm:$0xff]
    %v151 = vld [vmem:[%s131 + $0x74] sm:$0xf]
    %v152 = vld [vmem:[%s131 + $0x78] sm:$0xff]
    %v153 = vld [vmem:[%s131 + $0x80] sm:$0xf]
    %v154 = vld [vmem:[%s131 + $0x84] sm:$0xff]
    %v155 = vld [vmem:[%s131 + $0x8c] sm:$0xf]
    %v156 = vld [vmem:[%s131 + $0x90] sm:$0xff]
    %v157 = vld [vmem:[%s131 + $0x98] sm:$0xf]
    %v158 = vld [vmem:[%s131 + $0x9c] sm:$0xff]
    %v159 = vld [vmem:[%s131 + $0xa4] sm:$0xf]
    %v160 = vld [vmem:[%s131 + $0xa8] sm:$0xff]
    %v161 = vld [vmem:[%s131 + $0xb0] sm:$0xf]
    %v162 = vld [vmem:[%s131 + $0xb4] sm:$0xff]
    %v163 = vld [vmem:[%s131 + $0xbc] sm:$0xf]
    %v164 = vunpack.c.l.b16 %v96
    %v165 = vunpack.c.l.b16 %v106
    %v166 = vunpack.c.l.b16 %v120
    %v167 = vunpack.c.l.b16 %v130
    %v168 = vpack.c.b16 %v165, %v164
    %v169 = vpack.c.b16 %v167, %v166
    %v204 = vunpack.c.l.b16 %v132
    %v205 = vunpack.c.h.b16 %v132
    %v206 = vunpack.c.l.b16 %v133
    %v207 = vunpack.c.l.b16 %v134
    %v208 = vunpack.c.h.b16 %v134
    %v209 = vunpack.c.l.b16 %v135
    %v210 = vunpack.c.l.b16 %v136
    %v211 = vunpack.c.h.b16 %v136
    %v212 = vunpack.c.l.b16 %v137
    %v213 = vunpack.c.l.b16 %v138
    %v214 = vunpack.c.h.b16 %v138
    %v215 = vunpack.c.l.b16 %v139
    %v216 = vunpack.c.l.b16 %v140
    %v217 = vunpack.c.h.b16 %v140
    %v218 = vunpack.c.l.b16 %v141
    %v219 = vunpack.c.l.b16 %v142
    %v220 = vunpack.c.h.b16 %v142
    %v221 = vunpack.c.l.b16 %v143
    %v222 = vunpack.c.l.b16 %v144
    %v223 = vunpack.c.h.b16 %v144
    %v224 = vunpack.c.l.b16 %v145
    %v225 = vunpack.c.l.b16 %v146
    %v226 = vunpack.c.h.b16 %v146
    %v227 = vunpack.c.l.b16 %v147
    %v228 = vunpack.c.l.b16 %v148
    %v229 = vunpack.c.h.b16 %v148
    %v230 = vunpack.c.l.b16 %v149
    %v231 = vunpack.c.l.b16 %v150
    %v232 = vunpack.c.h.b16 %v150
    %v233 = vunpack.c.l.b16 %v151
    %v234 = vunpack.c.l.b16 %v152
    %v235 = vunpack.c.h.b16 %v152
    %v236 = vunpack.c.l.b16 %v153
    %v237 = vunpack.c.l.b16 %v154
    %v238 = vunpack.c.h.b16 %v154
    %v239 = vunpack.c.l.b16 %v155
    %v240 = vunpack.c.l.b16 %v156
    %v241 = vunpack.c.h.b16 %v156
    %v242 = vunpack.c.l.b16 %v157
    %v243 = vunpack.c.l.b16 %v158
    %v244 = vunpack.c.h.b16 %v158
    %v245 = vunpack.c.l.b16 %v159
    %v246 = vunpack.c.l.b16 %v160
    %v247 = vunpack.c.h.b16 %v160
    %v248 = vunpack.c.l.b16 %v161
    %v249 = vunpack.c.l.b16 %v162
    %v250 = vunpack.c.h.b16 %v162
    %v251 = vunpack.c.l.b16 %v163
    %v252 = vpack.c.b16 %v207, %v204
    %v253 = vpack.c.b16 %v208, %v205
    %v254 = vpack.c.b16 %v209, %v206
    %v255 = vpack.c.b16 %v213, %v210
    %v256 = vpack.c.b16 %v214, %v211
    %v257 = vpack.c.b16 %v215, %v212
    %v258 = vpack.c.b16 %v219, %v216
    %v259 = vpack.c.b16 %v220, %v217
    %v260 = vpack.c.b16 %v221, %v218
    %v261 = vpack.c.b16 %v225, %v222
    %v262 = vpack.c.b16 %v226, %v223
    %v263 = vpack.c.b16 %v227, %v224
    %v264 = vpack.c.b16 %v231, %v228
    %v265 = vpack.c.b16 %v232, %v229
    %v266 = vpack.c.b16 %v233, %v230
    %v267 = vpack.c.b16 %v237, %v234
    %v268 = vpack.c.b16 %v238, %v235
    %v269 = vpack.c.b16 %v239, %v236
    %v270 = vpack.c.b16 %v243, %v240
    %v271 = vpack.c.b16 %v244, %v241
    %v272 = vpack.c.b16 %v245, %v242
    %v273 = vpack.c.b16 %v249, %v246
    %v274 = vpack.c.b16 %v250, %v247
    %v275 = vpack.c.b16 %v251, %v248
    %300 = vmatprep.subr.bf16.mxu0 %v274
    %301 = vmatpush1.bf16.msra.mxu0 %v273
    %302 = vmatprep.subr.bf16.mxu0 %v271
    %303 = vmatpush1.bf16.msra.mxu0 %v270
    %304 = vmatprep.subr.bf16.mxu0 %v268
    %305 = vmatpush1.bf16.msra.mxu0 %v267
    %306 = vmatprep.subr.bf16.mxu0 %v265
    %307 = vmatpush1.bf16.msra.mxu0 %v264
    %308 = vmatprep.subr.bf16.mxu0 %v262
    %309 = vmatpush1.bf16.msra.mxu0 %v261
    %310 = vmatprep.subr.bf16.mxu0 %v259
    %311 = vmatpush1.bf16.msra.mxu0 %v258
    %312 = vmatprep.subr.bf16.mxu0 %v256
    %313 = vmatpush1.bf16.msra.mxu0 %v255
    %314 = vmatprep.subr.bf16.mxu0 %v253
    %315 = vmatpush1.bf16.msra.mxu0 %v252
    %316 = vmatprep.subr.bf16.mxu0 0
    %317 = vmatpush2.bf16.msra.mxu0 0
    %318 = vmatprep.subr.bf16.mxu0 0
    %319 = vmatpush2.bf16.msra.mxu0 0
    %320 = vmatprep.subr.bf16.mxu0 0
    %321 = vmatpush2.bf16.msra.mxu0 0
    %322 = vmatprep.subr.bf16.mxu0 0
    %323 = vmatpush2.bf16.msra.mxu0 0
    %324 = vmatprep.subr.bf16.mxu0 0
    %325 = vmatpush2.bf16.msra.mxu0 0
    %326 = vmatprep.subr.bf16.mxu0 0
    %327 = vmatpush2.bf16.msra.mxu0 0
    %328 = vmatprep.subr.bf16.mxu0 0
    %329 = vmatpush2.bf16.msra.mxu0 0
    %330 = vmatprep.subr.bf16.mxu0 0
    %331 = vmatpush2.bf16.msra.mxu0 0
    %332 = vmatprep.mubr.bf16.mxu0 0
    %333 = vmatmul.mubr.bf16.gmra.mxu0 %v168
    %v334 = vpop.f32.mrf.mxu0
    %v335 = vadd.f32 0.0, %v334
    %v336 = vpop.f32.mrf.mxu0
    %v337 = vadd.f32 0.0, %v336
    %v338 = vpop.f32.mrf.mxu0
    %v339 = vadd.f32 0.0, %v338
    %v340 = vpop.f32.mrf.mxu0
    %v341 = vadd.f32 0.0, %v340
    %342 = vmatprep.mubr.bf16.mxu0 0
    %343 = vmatmul.mubr.bf16.gmra.mxu0 %v169
    %v344 = vpop.f32.mrf.mxu0
    %v345 = vadd.f32 0.0, %v344
    %v346 = vpop.f32.mrf.mxu0
    %v347 = vadd.f32 0.0, %v346
    %v348 = vpop.f32.mrf.mxu0
    %v349 = vadd.f32 0.0, %v348
    %v350 = vpop.f32.mrf.mxu0
    %v351 = vadd.f32 0.0, %v350
    %352 = vdwg.mxu0
    %353 = vmatprep.subr.bf16.mxu0 0
    %354 = vmatpush1.bf16.msra.mxu0 %v275
    %355 = vmatprep.subr.bf16.mxu0 0
    %356 = vmatpush1.bf16.msra.mxu0 %v272
    %357 = vmatprep.subr.bf16.mxu0 0
    %358 = vmatpush1.bf16.msra.mxu0 %v269
    %359 = vmatprep.subr.bf16.mxu0 0
    %360 = vmatpush1.bf16.msra.mxu0 %v266
    %361 = vmatprep.subr.bf16.mxu0 0
    %362 = vmatpush1.bf16.msra.mxu0 %v263
    %363 = vmatprep.subr.bf16.mxu0 0
    %364 = vmatpush1.bf16.msra.mxu0 %v260
    %365 = vmatprep.subr.bf16.mxu0 0
    %366 = vmatpush1.bf16.msra.mxu0 %v257
    %367 = vmatprep.subr.bf16.mxu0 0
    %368 = vmatpush1.bf16.msra.mxu0 %v254
    %369 = vmatprep.subr.bf16.mxu0 0
    %370 = vmatpush2.bf16.msra.mxu0 0
    %371 = vmatprep.subr.bf16.mxu0 0
    %372 = vmatpush2.bf16.msra.mxu0 0
    %373 = vmatprep.subr.bf16.mxu0 0
    %374 = vmatpush2.bf16.msra.mxu0 0
    %375 = vmatprep.subr.bf16.mxu0 0
    %376 = vmatpush2.bf16.msra.mxu0 0
    %377 = vmatprep.subr.bf16.mxu0 0
    %378 = vmatpush2.bf16.msra.mxu0 0
    %379 = vmatprep.subr.bf16.mxu0 0
    %380 = vmatpush2.bf16.msra.mxu0 0
    %381 = vmatprep.subr.bf16.mxu0 0
    %382 = vmatpush2.bf16.msra.mxu0 0
    %383 = vmatprep.subr.bf16.mxu0 0
    %384 = vmatpush2.bf16.msra.mxu0 0
    %385 = vmatprep.mubr.bf16.mxu0 0
    %386 = vmatmul.mubr.bf16.gmra.mxu0 %v168
    %v387 = vpop.f32.mrf.mxu0
    %v388 = vadd.f32 0.0, %v387
    %v389 = vpop.f32.mrf.mxu0
    %v390 = vpop.f32.mrf.mxu0
    %v391 = vadd.f32 0.0, %v390
    %v392 = vpop.f32.mrf.mxu0
    %393 = vmatprep.mubr.bf16.mxu0 0
    %394 = vmatmul.mubr.bf16.gmra.mxu0 %v169
    %v395 = vpop.f32.mrf.mxu0
    %v396 = vadd.f32 0.0, %v395
    %v397 = vpop.f32.mrf.mxu0
    %v398 = vpop.f32.mrf.mxu0
    %v399 = vadd.f32 0.0, %v398
    %v400 = vpop.f32.mrf.mxu0
    %401 = vdwg.mxu0
    %v406 = vunpack.c.l.b16 %v42
    %v407 = vunpack.c.l.b16 %v43
    %v408 = vunpack.c.l.b16 %v44
    %v409 = vunpack.c.l.b16 %v45
    %v410 = vpack.c.b16 %v407, %v406
    %v411 = vpack.c.b16 %v409, %v408
    %v446 = vunpack.c.l.b16 %v46
    %v447 = vunpack.c.h.b16 %v46
    %v448 = vunpack.c.l.b16 %v47
    %v449 = vunpack.c.l.b16 %v48
    %v450 = vunpack.c.h.b16 %v48
    %v451 = vunpack.c.l.b16 %v49
    %v452 = vunpack.c.l.b16 %v50
    %v453 = vunpack.c.h.b16 %v50
    %v454 = vunpack.c.l.b16 %v51
    %v455 = vunpack.c.l.b16 %v52
    %v456 = vunpack.c.h.b16 %v52
    %v457 = vunpack.c.l.b16 %v53
    %v458 = vunpack.c.l.b16 %v54
    %v459 = vunpack.c.h.b16 %v54
    %v460 = vunpack.c.l.b16 %v55
    %v461 = vunpack.c.l.b16 %v56
    %v462 = vunpack.c.h.b16 %v56
    %v463 = vunpack.c.l.b16 %v57
    %v464 = vunpack.c.l.b16 %v58
    %v465 = vunpack.c.h.b16 %v58
    %v466 = vunpack.c.l.b16 %v59
    %v467 = vunpack.c.l.b16 %v60
    %v468 = vunpack.c.h.b16 %v60
    %v469 = vunpack.c.l.b16 %v61
    %v470 = vunpack.c.l.b16 %v62
    %v471 = vunpack.c.h.b16 %v62
    %v472 = vunpack.c.l.b16 %v63
    %v473 = vunpack.c.l.b16 %v64
    %v474 = vunpack.c.h.b16 %v64
    %v475 = vunpack.c.l.b16 %v65
    %v476 = vunpack.c.l.b16 %v66
    %v477 = vunpack.c.h.b16 %v66
    %v478 = vunpack.c.l.b16 %v67
    %v479 = vunpack.c.l.b16 %v68
    %v480 = vunpack.c.h.b16 %v68
    %v481 = vunpack.c.l.b16 %v69
    %v482 = vunpack.c.l.b16 %v70
    %v483 = vunpack.c.h.b16 %v70
    %v484 = vunpack.c.l.b16 %v71
    %v485 = vunpack.c.l.b16 %v72
    %v486 = vunpack.c.h.b16 %v72
    %v487 = vunpack.c.l.b16 %v73
    %v488 = vunpack.c.l.b16 %v74
    %v489 = vunpack.c.h.b16 %v74
    %v490 = vunpack.c.l.b16 %v75
    %v491 = vunpack.c.l.b16 %v76
    %v492 = vunpack.c.h.b16 %v76
    %v493 = vunpack.c.l.b16 %v77
    %v494 = vpack.c.b16 %v449, %v446
    %v495 = vpack.c.b16 %v450, %v447
    %v496 = vpack.c.b16 %v451, %v448
    %v497 = vpack.c.b16 %v455, %v452
    %v498 = vpack.c.b16 %v456, %v453
    %v499 = vpack.c.b16 %v457, %v454
    %v500 = vpack.c.b16 %v461, %v458
    %v501 = vpack.c.b16 %v462, %v459
    %v502 = vpack.c.b16 %v463, %v460
    %v503 = vpack.c.b16 %v467, %v464
    %v504 = vpack.c.b16 %v468, %v465
    %v505 = vpack.c.b16 %v469, %v466
    %v506 = vpack.c.b16 %v473, %v470
    %v507 = vpack.c.b16 %v474, %v471
    %v508 = vpack.c.b16 %v475, %v472
    %v509 = vpack.c.b16 %v479, %v476
    %v510 = vpack.c.b16 %v480, %v477
    %v511 = vpack.c.b16 %v481, %v478
    %v512 = vpack.c.b16 %v485, %v482
    %v513 = vpack.c.b16 %v486, %v483
    %v514 = vpack.c.b16 %v487, %v484
    %v515 = vpack.c.b16 %v491, %v488
    %v516 = vpack.c.b16 %v492, %v489
    %v517 = vpack.c.b16 %v493, %v490
    %542 = vmatprep.subr.bf16.mxu0 %v516
    %543 = vmatpush1.bf16.msra.mxu0 %v515
    %544 = vmatprep.subr.bf16.mxu0 %v513
    %545 = vmatpush1.bf16.msra.mxu0 %v512
    %546 = vmatprep.subr.bf16.mxu0 %v510
    %547 = vmatpush1.bf16.msra.mxu0 %v509
    %548 = vmatprep.subr.bf16.mxu0 %v507
    %549 = vmatpush1.bf16.msra.mxu0 %v506
    %550 = vmatprep.subr.bf16.mxu0 %v504
    %551 = vmatpush1.bf16.msra.mxu0 %v503
    %552 = vmatprep.subr.bf16.mxu0 %v501
    %553 = vmatpush1.bf16.msra.mxu0 %v500
    %554 = vmatprep.subr.bf16.mxu0 %v498
    %555 = vmatpush1.bf16.msra.mxu0 %v497
    %556 = vmatprep.subr.bf16.mxu0 %v495
    %557 = vmatpush1.bf16.msra.mxu0 %v494
    %558 = vmatprep.subr.bf16.mxu0 0
    %559 = vmatpush2.bf16.msra.mxu0 0
    %560 = vmatprep.subr.bf16.mxu0 0
    %561 = vmatpush2.bf16.msra.mxu0 0
    %562 = vmatprep.subr.bf16.mxu0 0
    %563 = vmatpush2.bf16.msra.mxu0 0
    %564 = vmatprep.subr.bf16.mxu0 0
    %565 = vmatpush2.bf16.msra.mxu0 0
    %566 = vmatprep.subr.bf16.mxu0 0
    %567 = vmatpush2.bf16.msra.mxu0 0
    %568 = vmatprep.subr.bf16.mxu0 0
    %569 = vmatpush2.bf16.msra.mxu0 0
    %570 = vmatprep.subr.bf16.mxu0 0
    %571 = vmatpush2.bf16.msra.mxu0 0
    %572 = vmatprep.subr.bf16.mxu0 0
    %573 = vmatpush2.bf16.msra.mxu0 0
    %574 = vmatprep.mubr.bf16.mxu0 0
    %575 = vmatmul.mubr.bf16.gmra.mxu0 %v410
    %v576 = vpop.f32.mrf.mxu0
    %v577 = vadd.f32 %v335, %v576
    %v578 = vpop.f32.mrf.mxu0
    %v579 = vadd.f32 %v337, %v578
    %v580 = vpop.f32.mrf.mxu0
    %v581 = vadd.f32 %v339, %v580
    %v582 = vpop.f32.mrf.mxu0
    %v583 = vadd.f32 %v341, %v582
    %584 = vmatprep.mubr.bf16.mxu0 0
    %585 = vmatmul.mubr.bf16.gmra.mxu0 %v411
    %v586 = vpop.f32.mrf.mxu0
    %v587 = vadd.f32 %v345, %v586
    %v588 = vpop.f32.mrf.mxu0
    %v589 = vadd.f32 %v347, %v588
    %v590 = vpop.f32.mrf.mxu0
    %v591 = vadd.f32 %v349, %v590
    %v592 = vpop.f32.mrf.mxu0
    %v593 = vadd.f32 %v351, %v592
    %594 = vdwg.mxu0
    %595 = vmatprep.subr.bf16.mxu0 0
    %596 = vmatpush1.bf16.msra.mxu0 %v517
    %597 = vmatprep.subr.bf16.mxu0 0
    %598 = vmatpush1.bf16.msra.mxu0 %v514
    %599 = vmatprep.subr.bf16.mxu0 0
    %600 = vmatpush1.bf16.msra.mxu0 %v511
    %601 = vmatprep.subr.bf16.mxu0 0
    %602 = vmatpush1.bf16.msra.mxu0 %v508
    %603 = vmatprep.subr.bf16.mxu0 0
    %604 = vmatpush1.bf16.msra.mxu0 %v505
    %605 = vmatprep.subr.bf16.mxu0 0
    %606 = vmatpush1.bf16.msra.mxu0 %v502
    %607 = vmatprep.subr.bf16.mxu0 0
    %608 = vmatpush1.bf16.msra.mxu0 %v499
    %609 = vmatprep.subr.bf16.mxu0 0
    %610 = vmatpush1.bf16.msra.mxu0 %v496
    %611 = vmatprep.subr.bf16.mxu0 0
    %612 = vmatpush2.bf16.msra.mxu0 0
    %613 = vmatprep.subr.bf16.mxu0 0
    %614 = vmatpush2.bf16.msra.mxu0 0
    %615 = vmatprep.subr.bf16.mxu0 0
    %616 = vmatpush2.bf16.msra.mxu0 0
    %617 = vmatprep.subr.bf16.mxu0 0
    %618 = vmatpush2.bf16.msra.mxu0 0
    %619 = vmatprep.subr.bf16.mxu0 0
    %620 = vmatpush2.bf16.msra.mxu0 0
    %621 = vmatprep.subr.bf16.mxu0 0
    %622 = vmatpush2.bf16.msra.mxu0 0
    %623 = vmatprep.subr.bf16.mxu0 0
    %624 = vmatpush2.bf16.msra.mxu0 0
    %625 = vmatprep.subr.bf16.mxu0 0
    %626 = vmatpush2.bf16.msra.mxu0 0
    %627 = vmatprep.mubr.bf16.mxu0 0
    %628 = vmatmul.mubr.bf16.gmra.mxu0 %v410
    %v629 = vpop.f32.mrf.mxu0
    %v630 = vadd.f32 %v388, %v629
    %v631 = vpop.f32.mrf.mxu0
    %v632 = vpop.f32.mrf.mxu0
    %v633 = vadd.f32 %v391, %v632
    %v634 = vpop.f32.mrf.mxu0
    %635 = vmatprep.mubr.bf16.mxu0 0
    %636 = vmatmul.mubr.bf16.gmra.mxu0 %v411
    %v637 = vpop.f32.mrf.mxu0
    %v638 = vadd.f32 %v396, %v637
    %v639 = vpop.f32.mrf.mxu0
    %v640 = vpop.f32.mrf.mxu0
    %v641 = vadd.f32 %v399, %v640
    %v642 = vpop.f32.mrf.mxu0
    %643 = vdwg.mxu0
    %v644 = vld [vmem:[%s0] sm:$0xe]
    %v645 = vld [vmem:[%s0 + $0x10] sm:$0xe]
    %vm650 = vcmask 1042432
    %vm651 = vcmask 1046532
    %vm652 = vmor %vm650, %vm651
    %v653 = vrot.slane %v644, 5
    %v654 = vrot.slane %v653, 4
    %v655 = vrot.slane %v43, 5
    %v656 = vsel %vm652, %v654, %v655
    %v657 = vrot.slane %v655, 4
    %v658 = vrot.slane %v78, 5
    %v659 = vsel %vm652, %v657, %v658
    %v660 = vrot.slane %v645, 5
    %v661 = vrot.slane %v660, 4
    %v662 = vrot.slane %v45, 5
    %v663 = vsel %vm652, %v661, %v662
    %v664 = vrot.slane %v662, 4
    %v665 = vrot.slane %v79, 5
    %v666 = vsel %vm652, %v664, %v665
    %s667 = scalar_lea.vmem [#allocation2], 384
    %v668 = vld [vmem:[%s667] sm:$0xff]
    %v669 = vld [vmem:[%s667 + $0x8] sm:$0xf]
    %v670 = vld [vmem:[%s667 + $0xc] sm:$0xff]
    %v671 = vld [vmem:[%s667 + $0x14] sm:$0xf]
    %v672 = vld [vmem:[%s667 + $0x18] sm:$0xff]
    %v673 = vld [vmem:[%s667 + $0x20] sm:$0xf]
    %v674 = vld [vmem:[%s667 + $0x24] sm:$0xff]
    %v675 = vld [vmem:[%s667 + $0x2c] sm:$0xf]
    %v676 = vld [vmem:[%s667 + $0x30] sm:$0xff]
    %v677 = vld [vmem:[%s667 + $0x38] sm:$0xf]
    %v678 = vld [vmem:[%s667 + $0x3c] sm:$0xff]
    %v679 = vld [vmem:[%s667 + $0x44] sm:$0xf]
    %v680 = vld [vmem:[%s667 + $0x48] sm:$0xff]
    %v681 = vld [vmem:[%s667 + $0x50] sm:$0xf]
    %v682 = vld [vmem:[%s667 + $0x54] sm:$0xff]
    %v683 = vld [vmem:[%s667 + $0x5c] sm:$0xf]
    %v684 = vld [vmem:[%s667 + $0x60] sm:$0xff]
    %v685 = vld [vmem:[%s667 + $0x68] sm:$0xf]
    %v686 = vld [vmem:[%s667 + $0x6c] sm:$0xff]
    %v687 = vld [vmem:[%s667 + $0x74] sm:$0xf]
    %v688 = vld [vmem:[%s667 + $0x78] sm:$0xff]
    %v689 = vld [vmem:[%s667 + $0x80] sm:$0xf]
    %v690 = vld [vmem:[%s667 + $0x84] sm:$0xff]
    %v691 = vld [vmem:[%s667 + $0x8c] sm:$0xf]
    %v692 = vld [vmem:[%s667 + $0x90] sm:$0xff]
    %v693 = vld [vmem:[%s667 + $0x98] sm:$0xf]
    %v694 = vld [vmem:[%s667 + $0x9c] sm:$0xff]
    %v695 = vld [vmem:[%s667 + $0xa4] sm:$0xf]
    %v696 = vld [vmem:[%s667 + $0xa8] sm:$0xff]
    %v697 = vld [vmem:[%s667 + $0xb0] sm:$0xf]
    %v698 = vld [vmem:[%s667 + $0xb4] sm:$0xff]
    %v699 = vld [vmem:[%s667 + $0xbc] sm:$0xf]
    %v700 = vunpack.c.l.b16 %v656
    %v701 = vunpack.c.l.b16 %v659
    %v702 = vunpack.c.l.b16 %v663
    %v703 = vunpack.c.l.b16 %v666
    %v704 = vpack.c.b16 %v701, %v700
    %v705 = vpack.c.b16 %v703, %v702
    %v740 = vunpack.c.l.b16 %v668
    %v741 = vunpack.c.h.b16 %v668
    %v742 = vunpack.c.l.b16 %v669
    %v743 = vunpack.c.l.b16 %v670
    %v744 = vunpack.c.h.b16 %v670
    %v745 = vunpack.c.l.b16 %v671
    %v746 = vunpack.c.l.b16 %v672
    %v747 = vunpack.c.h.b16 %v672
    %v748 = vunpack.c.l.b16 %v673
    %v749 = vunpack.c.l.b16 %v674
    %v750 = vunpack.c.h.b16 %v674
    %v751 = vunpack.c.l.b16 %v675
    %v752 = vunpack.c.l.b16 %v676
    %v753 = vunpack.c.h.b16 %v676
    %v754 = vunpack.c.l.b16 %v677
    %v755 = vunpack.c.l.b16 %v678
    %v756 = vunpack.c.h.b16 %v678
    %v757 = vunpack.c.l.b16 %v679
    %v758 = vunpack.c.l.b16 %v680
    %v759 = vunpack.c.h.b16 %v680
    %v760 = vunpack.c.l.b16 %v681
    %v761 = vunpack.c.l.b16 %v682
    %v762 = vunpack.c.h.b16 %v682
    %v763 = vunpack.c.l.b16 %v683
    %v764 = vunpack.c.l.b16 %v684
    %v765 = vunpack.c.h.b16 %v684
    %v766 = vunpack.c.l.b16 %v685
    %v767 = vunpack.c.l.b16 %v686
    %v768 = vunpack.c.h.b16 %v686
    %v769 = vunpack.c.l.b16 %v687
    %v770 = vunpack.c.l.b16 %v688
    %v771 = vunpack.c.h.b16 %v688
    %v772 = vunpack.c.l.b16 %v689
    %v773 = vunpack.c.l.b16 %v690
    %v774 = vunpack.c.h.b16 %v690
    %v775 = vunpack.c.l.b16 %v691
    %v776 = vunpack.c.l.b16 %v692
    %v777 = vunpack.c.h.b16 %v692
    %v778 = vunpack.c.l.b16 %v693
    %v779 = vunpack.c.l.b16 %v694
    %v780 = vunpack.c.h.b16 %v694
    %v781 = vunpack.c.l.b16 %v695
    %v782 = vunpack.c.l.b16 %v696
    %v783 = vunpack.c.h.b16 %v696
    %v784 = vunpack.c.l.b16 %v697
    %v785 = vunpack.c.l.b16 %v698
    %v786 = vunpack.c.h.b16 %v698
    %v787 = vunpack.c.l.b16 %v699
    %v788 = vpack.c.b16 %v743, %v740
    %v789 = vpack.c.b16 %v744, %v741
    %v790 = vpack.c.b16 %v745, %v742
    %v791 = vpack.c.b16 %v749, %v746
    %v792 = vpack.c.b16 %v750, %v747
    %v793 = vpack.c.b16 %v751, %v748
    %v794 = vpack.c.b16 %v755, %v752
    %v795 = vpack.c.b16 %v756, %v753
    %v796 = vpack.c.b16 %v757, %v754
    %v797 = vpack.c.b16 %v761, %v758
    %v798 = vpack.c.b16 %v762, %v759
    %v799 = vpack.c.b16 %v763, %v760
    %v800 = vpack.c.b16 %v767, %v764
    %v801 = vpack.c.b16 %v768, %v765
    %v802 = vpack.c.b16 %v769, %v766
    %v803 = vpack.c.b16 %v773, %v770
    %v804 = vpack.c.b16 %v774, %v771
    %v805 = vpack.c.b16 %v775, %v772
    %v806 = vpack.c.b16 %v779, %v776
    %v807 = vpack.c.b16 %v780, %v777
    %v808 = vpack.c.b16 %v781, %v778
    %v809 = vpack.c.b16 %v785, %v782
    %v810 = vpack.c.b16 %v786, %v783
    %v811 = vpack.c.b16 %v787, %v784
    %836 = vmatprep.subr.bf16.mxu0 %v810
    %837 = vmatpush1.bf16.msra.mxu0 %v809
    %838 = vmatprep.subr.bf16.mxu0 %v807
    %839 = vmatpush1.bf16.msra.mxu0 %v806
    %840 = vmatprep.subr.bf16.mxu0 %v804
    %841 = vmatpush1.bf16.msra.mxu0 %v803
    %842 = vmatprep.subr.bf16.mxu0 %v801
    %843 = vmatpush1.bf16.msra.mxu0 %v800
    %844 = vmatprep.subr.bf16.mxu0 %v798
    %845 = vmatpush1.bf16.msra.mxu0 %v797
    %846 = vmatprep.subr.bf16.mxu0 %v795
    %847 = vmatpush1.bf16.msra.mxu0 %v794
    %848 = vmatprep.subr.bf16.mxu0 %v792
    %849 = vmatpush1.bf16.msra.mxu0 %v791
    %850 = vmatprep.subr.bf16.mxu0 %v789
    %851 = vmatpush1.bf16.msra.mxu0 %v788
    %852 = vmatprep.subr.bf16.mxu0 0
    %853 = vmatpush2.bf16.msra.mxu0 0
    %854 = vmatprep.subr.bf16.mxu0 0
    %855 = vmatpush2.bf16.msra.mxu0 0
    %856 = vmatprep.subr.bf16.mxu0 0
    %857 = vmatpush2.bf16.msra.mxu0 0
    %858 = vmatprep.subr.bf16.mxu0 0
    %859 = vmatpush2.bf16.msra.mxu0 0
    %860 = vmatprep.subr.bf16.mxu0 0
    %861 = vmatpush2.bf16.msra.mxu0 0
    %862 = vmatprep.subr.bf16.mxu0 0
    %863 = vmatpush2.bf16.msra.mxu0 0
    %864 = vmatprep.subr.bf16.mxu0 0
    %865 = vmatpush2.bf16.msra.mxu0 0
    %866 = vmatprep.subr.bf16.mxu0 0
    %867 = vmatpush2.bf16.msra.mxu0 0
    %868 = vmatprep.mubr.bf16.mxu0 0
    %869 = vmatmul.mubr.bf16.gmra.mxu0 %v704
    %v870 = vpop.f32.mrf.mxu0
    %v871 = vadd.f32 0.0, %v870
    %v872 = vpop.f32.mrf.mxu0
    %v873 = vadd.f32 0.0, %v872
    %v874 = vpop.f32.mrf.mxu0
    %v875 = vadd.f32 0.0, %v874
    %v876 = vpop.f32.mrf.mxu0
    %v877 = vadd.f32 0.0, %v876
    %878 = vmatprep.mubr.bf16.mxu0 0
    %879 = vmatmul.mubr.bf16.gmra.mxu0 %v705
    %v880 = vpop.f32.mrf.mxu0
    %v881 = vadd.f32 0.0, %v880
    %v882 = vpop.f32.mrf.mxu0
    %v883 = vadd.f32 0.0, %v882
    %v884 = vpop.f32.mrf.mxu0
    %v885 = vadd.f32 0.0, %v884
    %v886 = vpop.f32.mrf.mxu0
    %v887 = vadd.f32 0.0, %v886
    %888 = vdwg.mxu0
    %889 = vmatprep.subr.bf16.mxu0 0
    %890 = vmatpush1.bf16.msra.mxu0 %v811
    %891 = vmatprep.subr.bf16.mxu0 0
    %892 = vmatpush1.bf16.msra.mxu0 %v808
    %893 = vmatprep.subr.bf16.mxu0 0
    %894 = vmatpush1.bf16.msra.mxu0 %v805
    %895 = vmatprep.subr.bf16.mxu0 0
    %896 = vmatpush1.bf16.msra.mxu0 %v802
    %897 = vmatprep.subr.bf16.mxu0 0
    %898 = vmatpush1.bf16.msra.mxu0 %v799
    %899 = vmatprep.subr.bf16.mxu0 0
    %900 = vmatpush1.bf16.msra.mxu0 %v796
    %901 = vmatprep.subr.bf16.mxu0 0
    %902 = vmatpush1.bf16.msra.mxu0 %v793
    %903 = vmatprep.subr.bf16.mxu0 0
    %904 = vmatpush1.bf16.msra.mxu0 %v790
    %905 = vmatprep.subr.bf16.mxu0 0
    %906 = vmatpush2.bf16.msra.mxu0 0
    %907 = vmatprep.subr.bf16.mxu0 0
    %908 = vmatpush2.bf16.msra.mxu0 0
    %909 = vmatprep.subr.bf16.mxu0 0
    %910 = vmatpush2.bf16.msra.mxu0 0
    %911 = vmatprep.subr.bf16.mxu0 0
    %912 = vmatpush2.bf16.msra.mxu0 0
    %913 = vmatprep.subr.bf16.mxu0 0
    %914 = vmatpush2.bf16.msra.mxu0 0
    %915 = vmatprep.subr.bf16.mxu0 0
    %916 = vmatpush2.bf16.msra.mxu0 0
    %917 = vmatprep.subr.bf16.mxu0 0
    %918 = vmatpush2.bf16.msra.mxu0 0
    %919 = vmatprep.subr.bf16.mxu0 0
    %920 = vmatpush2.bf16.msra.mxu0 0
    %921 = vmatprep.mubr.bf16.mxu0 0
    %922 = vmatmul.mubr.bf16.gmra.mxu0 %v704
    %v923 = vpop.f32.mrf.mxu0
    %v924 = vadd.f32 0.0, %v923
    %v925 = vpop.f32.mrf.mxu0
    %v926 = vpop.f32.mrf.mxu0
    %v927 = vadd.f32 0.0, %v926
    %v928 = vpop.f32.mrf.mxu0
    %929 = vmatprep.mubr.bf16.mxu0 0
    %930 = vmatmul.mubr.bf16.gmra.mxu0 %v705
    %v931 = vpop.f32.mrf.mxu0
    %v932 = vadd.f32 0.0, %v931
    %v933 = vpop.f32.mrf.mxu0
    %v934 = vpop.f32.mrf.mxu0
    %v935 = vadd.f32 0.0, %v934
    %v936 = vpop.f32.mrf.mxu0
    %937 = vdwg.mxu0
    %v938 = vadd.f32 %v577, %v871
    %v939 = vadd.f32 %v579, %v873
    %v940 = vadd.f32 %v630, %v924
    %v941 = vadd.f32 %v581, %v875
    %v942 = vadd.f32 %v583, %v877
    %v943 = vadd.f32 %v633, %v927
    %v944 = vadd.f32 %v587, %v881
    %v945 = vadd.f32 %v589, %v883
    %v946 = vadd.f32 %v638, %v932
    %v947 = vadd.f32 %v591, %v885
    %v948 = vadd.f32 %v593, %v887
    %v949 = vadd.f32 %v641, %v935
    %v950 = vld [vmem:[%s0 + $0x8] sm:$0x3]
    %v951 = vld [vmem:[%s0 + $0x18] sm:$0x3]
    %vm952 = vsmask.f32 2304
    %vm953 = vsmask.f32 6416
    %vm954 = vmor %vm952, %vm953
    %v956 = vshrl.u32 %v644, 16
    %v958 = vrot.slane %v956, 5
    %v959 = vshll.u32 %v644, 16
    %v961 = vrot.slane %v959, 6
    %v962 = vor.u32 %v958, %v961
    %v963 = vrot.slane %v962, 4
    %v964 = vrot.slane %v97, 5
    %v965 = vrot.slane %v93, 6
    %v966 = vor.u32 %v964, %v965
    %v967 = vsel %vm954, %v963, %v966
    %v968 = vrot.slane %v966, 4
    %v970 = vshrl.u32 %v950, 16
    %v972 = vrot.slane %v970, 5
    %v973 = vshll.u32 %v950, 16
    %v975 = vrot.slane %v973, 6
    %v976 = vor.u32 %v972, %v975
    %v977 = vsel %vm954, %v968, %v976
    %v979 = vshrl.u32 %v645, 16
    %v981 = vrot.slane %v979, 5
    %v982 = vshll.u32 %v645, 16
    %v984 = vrot.slane %v982, 6
    %v985 = vor.u32 %v981, %v984
    %v986 = vrot.slane %v985, 4
    %v987 = vrot.slane %v121, 5
    %v988 = vrot.slane %v117, 6
    %v989 = vor.u32 %v987, %v988
    %v990 = vsel %vm954, %v986, %v989
    %v991 = vrot.slane %v989, 4
    %v993 = vshrl.u32 %v951, 16
    %v995 = vrot.slane %v993, 5
    %v996 = vshll.u32 %v951, 16
    %v998 = vrot.slane %v996, 6
    %v999 = vor.u32 %v995, %v998
    %v1000 = vsel %vm954, %v991, %v999
    %s1001 = scalar_lea.vmem [#allocation2], 576
    %v1002 = vld [vmem:[%s1001] sm:$0xff]
    %v1003 = vld [vmem:[%s1001 + $0x8] sm:$0xf]
    %v1004 = vld [vmem:[%s1001 + $0xc] sm:$0xff]
    %v1005 = vld [vmem:[%s1001 + $0x14] sm:$0xf]
    %v1006 = vld [vmem:[%s1001 + $0x18] sm:$0xff]
    %v1007 = vld [vmem:[%s1001 + $0x20] sm:$0xf]
    %v1008 = vld [vmem:[%s1001 + $0x24] sm:$0xff]
    %v1009 = vld [vmem:[%s1001 + $0x2c] sm:$0xf]
    %v1010 = vld [vmem:[%s1001 + $0x30] sm:$0xff]
    %v1011 = vld [vmem:[%s1001 + $0x38] sm:$0xf]
    %v1012 = vld [vmem:[%s1001 + $0x3c] sm:$0xff]
    %v1013 = vld [vmem:[%s1001 + $0x44] sm:$0xf]
    %v1014 = vld [vmem:[%s1001 + $0x48] sm:$0xff]
    %v1015 = vld [vmem:[%s1001 + $0x50] sm:$0xf]
    %v1016 = vld [vmem:[%s1001 + $0x54] sm:$0xff]
    %v1017 = vld [vmem:[%s1001 + $0x5c] sm:$0xf]
    %v1018 = vld [vmem:[%s1001 + $0x60] sm:$0xff]
    %v1019 = vld [vmem:[%s1001 + $0x68] sm:$0xf]
    %v1020 = vld [vmem:[%s1001 + $0x6c] sm:$0xff]
    %v1021 = vld [vmem:[%s1001 + $0x74] sm:$0xf]
    %v1022 = vld [vmem:[%s1001 + $0x78] sm:$0xff]
    %v1023 = vld [vmem:[%s1001 + $0x80] sm:$0xf]
    %v1024 = vld [vmem:[%s1001 + $0x84] sm:$0xff]
    %v1025 = vld [vmem:[%s1001 + $0x8c] sm:$0xf]
    %v1026 = vld [vmem:[%s1001 + $0x90] sm:$0xff]
    %v1027 = vld [vmem:[%s1001 + $0x98] sm:$0xf]
    %v1028 = vld [vmem:[%s1001 + $0x9c] sm:$0xff]
    %v1029 = vld [vmem:[%s1001 + $0xa4] sm:$0xf]
    %v1030 = vld [vmem:[%s1001 + $0xa8] sm:$0xff]
    %v1031 = vld [vmem:[%s1001 + $0xb0] sm:$0xf]
    %v1032 = vld [vmem:[%s1001 + $0xb4] sm:$0xff]
    %v1033 = vld [vmem:[%s1001 + $0xbc] sm:$0xf]
    %v1034 = vunpack.c.l.b16 %v967
    %v1035 = vunpack.c.l.b16 %v977
    %v1036 = vunpack.c.l.b16 %v990
    %v1037 = vunpack.c.l.b16 %v1000
    %v1038 = vpack.c.b16 %v1035, %v1034
    %v1039 = vpack.c.b16 %v1037, %v1036
    %v1074 = vunpack.c.l.b16 %v1002
    %v1075 = vunpack.c.h.b16 %v1002
    %v1076 = vunpack.c.l.b16 %v1003
    %v1077 = vunpack.c.l.b16 %v1004
    %v1078 = vunpack.c.h.b16 %v1004
    %v1079 = vunpack.c.l.b16 %v1005
    %v1080 = vunpack.c.l.b16 %v1006
    %v1081 = vunpack.c.h.b16 %v1006
    %v1082 = vunpack.c.l.b16 %v1007
    %v1083 = vunpack.c.l.b16 %v1008
    %v1084 = vunpack.c.h.b16 %v1008
    %v1085 = vunpack.c.l.b16 %v1009
    %v1086 = vunpack.c.l.b16 %v1010
    %v1087 = vunpack.c.h.b16 %v1010
    %v1088 = vunpack.c.l.b16 %v1011
    %v1089 = vunpack.c.l.b16 %v1012
    %v1090 = vunpack.c.h.b16 %v1012
    %v1091 = vunpack.c.l.b16 %v1013
    %v1092 = vunpack.c.l.b16 %v1014
    %v1093 = vunpack.c.h.b16 %v1014
    %v1094 = vunpack.c.l.b16 %v1015
    %v1095 = vunpack.c.l.b16 %v1016
    %v1096 = vunpack.c.h.b16 %v1016
    %v1097 = vunpack.c.l.b16 %v1017
    %v1098 = vunpack.c.l.b16 %v1018
    %v1099 = vunpack.c.h.b16 %v1018
    %v1100 = vunpack.c.l.b16 %v1019
    %v1101 = vunpack.c.l.b16 %v1020
    %v1102 = vunpack.c.h.b16 %v1020
    %v1103 = vunpack.c.l.b16 %v1021
    %v1104 = vunpack.c.l.b16 %v1022
    %v1105 = vunpack.c.h.b16 %v1022
    %v1106 = vunpack.c.l.b16 %v1023
    %v1107 = vunpack.c.l.b16 %v1024
    %v1108 = vunpack.c.h.b16 %v1024
    %v1109 = vunpack.c.l.b16 %v1025
    %v1110 = vunpack.c.l.b16 %v1026
    %v1111 = vunpack.c.h.b16 %v1026
    %v1112 = vunpack.c.l.b16 %v1027
    %v1113 = vunpack.c.l.b16 %v1028
    %v1114 = vunpack.c.h.b16 %v1028
    %v1115 = vunpack.c.l.b16 %v1029
    %v1116 = vunpack.c.l.b16 %v1030
    %v1117 = vunpack.c.h.b16 %v1030
    %v1118 = vunpack.c.l.b16 %v1031
    %v1119 = vunpack.c.l.b16 %v1032
    %v1120 = vunpack.c.h.b16 %v1032
    %v1121 = vunpack.c.l.b16 %v1033
    %v1122 = vpack.c.b16 %v1077, %v1074
    %v1123 = vpack.c.b16 %v1078, %v1075
    %v1124 = vpack.c.b16 %v1079, %v1076
    %v1125 = vpack.c.b16 %v1083, %v1080
    %v1126 = vpack.c.b16 %v1084, %v1081
    %v1127 = vpack.c.b16 %v1085, %v1082
    %v1128 = vpack.c.b16 %v1089, %v1086
    %v1129 = vpack.c.b16 %v1090, %v1087
    %v1130 = vpack.c.b16 %v1091, %v1088
    %v1131 = vpack.c.b16 %v1095, %v1092
    %v1132 = vpack.c.b16 %v1096, %v1093
    %v1133 = vpack.c.b16 %v1097, %v1094
    %v1134 = vpack.c.b16 %v1101, %v1098
    %v1135 = vpack.c.b16 %v1102, %v1099
    %v1136 = vpack.c.b16 %v1103, %v1100
    %v1137 = vpack.c.b16 %v1107, %v1104
    %v1138 = vpack.c.b16 %v1108, %v1105
    %v1139 = vpack.c.b16 %v1109, %v1106
    %v1140 = vpack.c.b16 %v1113, %v1110
    %v1141 = vpack.c.b16 %v1114, %v1111
    %v1142 = vpack.c.b16 %v1115, %v1112
    %v1143 = vpack.c.b16 %v1119, %v1116
    %v1144 = vpack.c.b16 %v1120, %v1117
    %v1145 = vpack.c.b16 %v1121, %v1118
    %1170 = vmatprep.subr.bf16.mxu0 %v1144
    %1171 = vmatpush1.bf16.msra.mxu0 %v1143
    %1172 = vmatprep.subr.bf16.mxu0 %v1141
    %1173 = vmatpush1.bf16.msra.mxu0 %v1140
    %1174 = vmatprep.subr.bf16.mxu0 %v1138
    %1175 = vmatpush1.bf16.msra.mxu0 %v1137
    %1176 = vmatprep.subr.bf16.mxu0 %v1135
    %1177 = vmatpush1.bf16.msra.mxu0 %v1134
    %1178 = vmatprep.subr.bf16.mxu0 %v1132
    %1179 = vmatpush1.bf16.msra.mxu0 %v1131
    %1180 = vmatprep.subr.bf16.mxu0 %v1129
    %1181 = vmatpush1.bf16.msra.mxu0 %v1128
    %1182 = vmatprep.subr.bf16.mxu0 %v1126
    %1183 = vmatpush1.bf16.msra.mxu0 %v1125
    %1184 = vmatprep.subr.bf16.mxu0 %v1123
    %1185 = vmatpush1.bf16.msra.mxu0 %v1122
    %1186 = vmatprep.subr.bf16.mxu0 0
    %1187 = vmatpush2.bf16.msra.mxu0 0
    %1188 = vmatprep.subr.bf16.mxu0 0
    %1189 = vmatpush2.bf16.msra.mxu0 0
    %1190 = vmatprep.subr.bf16.mxu0 0
    %1191 = vmatpush2.bf16.msra.mxu0 0
    %1192 = vmatprep.subr.bf16.mxu0 0
    %1193 = vmatpush2.bf16.msra.mxu0 0
    %1194 = vmatprep.subr.bf16.mxu0 0
    %1195 = vmatpush2.bf16.msra.mxu0 0
    %1196 = vmatprep.subr.bf16.mxu0 0
    %1197 = vmatpush2.bf16.msra.mxu0 0
    %1198 = vmatprep.subr.bf16.mxu0 0
    %1199 = vmatpush2.bf16.msra.mxu0 0
    %1200 = vmatprep.subr.bf16.mxu0 0
    %1201 = vmatpush2.bf16.msra.mxu0 0
    %1202 = vmatprep.mubr.bf16.mxu0 0
    %1203 = vmatmul.mubr.bf16.gmra.mxu0 %v1038
    %v1204 = vpop.f32.mrf.mxu0
    %v1205 = vadd.f32 0.0, %v1204
    %v1206 = vpop.f32.mrf.mxu0
    %v1207 = vadd.f32 0.0, %v1206
    %v1208 = vpop.f32.mrf.mxu0
    %v1209 = vadd.f32 0.0, %v1208
    %v1210 = vpop.f32.mrf.mxu0
    %v1211 = vadd.f32 0.0, %v1210
    %1212 = vmatprep.mubr.bf16.mxu0 0
    %1213 = vmatmul.mubr.bf16.gmra.mxu0 %v1039
    %v1214 = vpop.f32.mrf.mxu0
    %v1215 = vadd.f32 0.0, %v1214
    %v1216 = vpop.f32.mrf.mxu0
    %v1217 = vadd.f32 0.0, %v1216
    %v1218 = vpop.f32.mrf.mxu0
    %v1219 = vadd.f32 0.0, %v1218
    %v1220 = vpop.f32.mrf.mxu0
    %v1221 = vadd.f32 0.0, %v1220
    %1222 = vdwg.mxu0
    %1223 = vmatprep.subr.bf16.mxu0 0
    %1224 = vmatpush1.bf16.msra.mxu0 %v1145
    %1225 = vmatprep.subr.bf16.mxu0 0
    %1226 = vmatpush1.bf16.msra.mxu0 %v1142
    %1227 = vmatprep.subr.bf16.mxu0 0
    %1228 = vmatpush1.bf16.msra.mxu0 %v1139
    %1229 = vmatprep.subr.bf16.mxu0 0
    %1230 = vmatpush1.bf16.msra.mxu0 %v1136
    %1231 = vmatprep.subr.bf16.mxu0 0
    %1232 = vmatpush1.bf16.msra.mxu0 %v1133
    %1233 = vmatprep.subr.bf16.mxu0 0
    %1234 = vmatpush1.bf16.msra.mxu0 %v1130
    %1235 = vmatprep.subr.bf16.mxu0 0
    %1236 = vmatpush1.bf16.msra.mxu0 %v1127
    %1237 = vmatprep.subr.bf16.mxu0 0
    %1238 = vmatpush1.bf16.msra.mxu0 %v1124
    %1239 = vmatprep.subr.bf16.mxu0 0
    %1240 = vmatpush2.bf16.msra.mxu0 0
    %1241 = vmatprep.subr.bf16.mxu0 0
    %1242 = vmatpush2.bf16.msra.mxu0 0
    %1243 = vmatprep.subr.bf16.mxu0 0
    %1244 = vmatpush2.bf16.msra.mxu0 0
    %1245 = vmatprep.subr.bf16.mxu0 0
    %1246 = vmatpush2.bf16.msra.mxu0 0
    %1247 = vmatprep.subr.bf16.mxu0 0
    %1248 = vmatpush2.bf16.msra.mxu0 0
    %1249 = vmatprep.subr.bf16.mxu0 0
    %1250 = vmatpush2.bf16.msra.mxu0 0
    %1251 = vmatprep.subr.bf16.mxu0 0
    %1252 = vmatpush2.bf16.msra.mxu0 0
    %1253 = vmatprep.subr.bf16.mxu0 0
    %1254 = vmatpush2.bf16.msra.mxu0 0
    %1255 = vmatprep.mubr.bf16.mxu0 0
    %1256 = vmatmul.mubr.bf16.gmra.mxu0 %v1038
    %v1257 = vpop.f32.mrf.mxu0
    %v1258 = vadd.f32 0.0, %v1257
    %v1259 = vpop.f32.mrf.mxu0
    %v1260 = vpop.f32.mrf.mxu0
    %v1261 = vadd.f32 0.0, %v1260
    %v1262 = vpop.f32.mrf.mxu0
    %1263 = vmatprep.mubr.bf16.mxu0 0
    %1264 = vmatmul.mubr.bf16.gmra.mxu0 %v1039
    %v1265 = vpop.f32.mrf.mxu0
    %v1266 = vadd.f32 0.0, %v1265
    %v1267 = vpop.f32.mrf.mxu0
    %v1268 = vpop.f32.mrf.mxu0
    %v1269 = vadd.f32 0.0, %v1268
    %v1270 = vpop.f32.mrf.mxu0
    %1271 = vdwg.mxu0
    %v1272 = vadd.f32 %v938, %v1205
    %v1273 = vadd.f32 %v939, %v1207
    %v1274 = vadd.f32 %v940, %v1258
    %v1275 = vadd.f32 %v941, %v1209
    %v1276 = vadd.f32 %v942, %v1211
    %v1277 = vadd.f32 %v943, %v1261
    %v1278 = vadd.f32 %v944, %v1215
    %v1279 = vadd.f32 %v945, %v1217
    %v1280 = vadd.f32 %v946, %v1266
    %v1281 = vadd.f32 %v947, %v1219
    %v1282 = vadd.f32 %v948, %v1221
    %v1283 = vadd.f32 %v949, %v1269
    %v1284 = vld [vmem:[%s0] sm:$0xc]
    %v1285 = vld [vmem:[%s0 + $0x10] sm:$0xc]
    %vm1290 = vcmask 1041408
    %vm1291 = vcmask 1045508
    %vm1292 = vmor %vm1290, %vm1291
    %v1293 = vrot.slane %v1284, 6
    %v1294 = vrot.slane %v1293, 4
    %v1295 = vrot.slane %v43, 6
    %v1296 = vsel %vm1292, %v1294, %v1295
    %v1297 = vrot.slane %v1295, 4
    %v1298 = vrot.slane %v950, 6
    %v1299 = vsel %vm1292, %v1297, %v1298
    %v1300 = vrot.slane %v1285, 6
    %v1301 = vrot.slane %v1300, 4
    %v1302 = vrot.slane %v45, 6
    %v1303 = vsel %vm1292, %v1301, %v1302
    %v1304 = vrot.slane %v1302, 4
    %v1305 = vrot.slane %v951, 6
    %v1306 = vsel %vm1292, %v1304, %v1305
    %s1307 = scalar_lea.vmem [#allocation2], 768
    %v1308 = vld [vmem:[%s1307] sm:$0xff]
    %v1309 = vld [vmem:[%s1307 + $0x8] sm:$0xf]
    %v1310 = vld [vmem:[%s1307 + $0xc] sm:$0xff]
    %v1311 = vld [vmem:[%s1307 + $0x14] sm:$0xf]
    %v1312 = vld [vmem:[%s1307 + $0x18] sm:$0xff]
    %v1313 = vld [vmem:[%s1307 + $0x20] sm:$0xf]
    %v1314 = vld [vmem:[%s1307 + $0x24] sm:$0xff]
    %v1315 = vld [vmem:[%s1307 + $0x2c] sm:$0xf]
    %v1316 = vld [vmem:[%s1307 + $0x30] sm:$0xff]
    %v1317 = vld [vmem:[%s1307 + $0x38] sm:$0xf]
    %v1318 = vld [vmem:[%s1307 + $0x3c] sm:$0xff]
    %v1319 = vld [vmem:[%s1307 + $0x44] sm:$0xf]
    %v1320 = vld [vmem:[%s1307 + $0x48] sm:$0xff]
    %v1321 = vld [vmem:[%s1307 + $0x50] sm:$0xf]
    %v1322 = vld [vmem:[%s1307 + $0x54] sm:$0xff]
    %v1323 = vld [vmem:[%s1307 + $0x5c] sm:$0xf]
    %v1324 = vld [vmem:[%s1307 + $0x60] sm:$0xff]
    %v1325 = vld [vmem:[%s1307 + $0x68] sm:$0xf]
    %v1326 = vld [vmem:[%s1307 + $0x6c] sm:$0xff]
    %v1327 = vld [vmem:[%s1307 + $0x74] sm:$0xf]
    %v1328 = vld [vmem:[%s1307 + $0x78] sm:$0xff]
    %v1329 = vld [vmem:[%s1307 + $0x80] sm:$0xf]
    %v1330 = vld [vmem:[%s1307 + $0x84] sm:$0xff]
    %v1331 = vld [vmem:[%s1307 + $0x8c] sm:$0xf]
    %v1332 = vld [vmem:[%s1307 + $0x90] sm:$0xff]
    %v1333 = vld [vmem:[%s1307 + $0x98] sm:$0xf]
    %v1334 = vld [vmem:[%s1307 + $0x9c] sm:$0xff]
    %v1335 = vld [vmem:[%s1307 + $0xa4] sm:$0xf]
    %v1336 = vld [vmem:[%s1307 + $0xa8] sm:$0xff]
    %v1337 = vld [vmem:[%s1307 + $0xb0] sm:$0xf]
    %v1338 = vld [vmem:[%s1307 + $0xb4] sm:$0xff]
    %v1339 = vld [vmem:[%s1307 + $0xbc] sm:$0xf]
    %v1340 = vunpack.c.l.b16 %v1296
    %v1341 = vunpack.c.l.b16 %v1299
    %v1342 = vunpack.c.l.b16 %v1303
    %v1343 = vunpack.c.l.b16 %v1306
    %v1344 = vpack.c.b16 %v1341, %v1340
    %v1345 = vpack.c.b16 %v1343, %v1342
    %v1380 = vunpack.c.l.b16 %v1308
    %v1381 = vunpack.c.h.b16 %v1308
    %v1382 = vunpack.c.l.b16 %v1309
    %v1383 = vunpack.c.l.b16 %v1310
    %v1384 = vunpack.c.h.b16 %v1310
    %v1385 = vunpack.c.l.b16 %v1311
    %v1386 = vunpack.c.l.b16 %v1312
    %v1387 = vunpack.c.h.b16 %v1312
    %v1388 = vunpack.c.l.b16 %v1313
    %v1389 = vunpack.c.l.b16 %v1314
    %v1390 = vunpack.c.h.b16 %v1314
    %v1391 = vunpack.c.l.b16 %v1315
    %v1392 = vunpack.c.l.b16 %v1316
    %v1393 = vunpack.c.h.b16 %v1316
    %v1394 = vunpack.c.l.b16 %v1317
    %v1395 = vunpack.c.l.b16 %v1318
    %v1396 = vunpack.c.h.b16 %v1318
    %v1397 = vunpack.c.l.b16 %v1319
    %v1398 = vunpack.c.l.b16 %v1320
    %v1399 = vunpack.c.h.b16 %v1320
    %v1400 = vunpack.c.l.b16 %v1321
    %v1401 = vunpack.c.l.b16 %v1322
    %v1402 = vunpack.c.h.b16 %v1322
    %v1403 = vunpack.c.l.b16 %v1323
    %v1404 = vunpack.c.l.b16 %v1324
    %v1405 = vunpack.c.h.b16 %v1324
    %v1406 = vunpack.c.l.b16 %v1325
    %v1407 = vunpack.c.l.b16 %v1326
    %v1408 = vunpack.c.h.b16 %v1326
    %v1409 = vunpack.c.l.b16 %v1327
    %v1410 = vunpack.c.l.b16 %v1328
    %v1411 = vunpack.c.h.b16 %v1328
    %v1412 = vunpack.c.l.b16 %v1329
    %v1413 = vunpack.c.l.b16 %v1330
    %v1414 = vunpack.c.h.b16 %v1330
    %v1415 = vunpack.c.l.b16 %v1331
    %v1416 = vunpack.c.l.b16 %v1332
    %v1417 = vunpack.c.h.b16 %v1332
    %v1418 = vunpack.c.l.b16 %v1333
    %v1419 = vunpack.c.l.b16 %v1334
    %v1420 = vunpack.c.h.b16 %v1334
    %v1421 = vunpack.c.l.b16 %v1335
    %v1422 = vunpack.c.l.b16 %v1336
    %v1423 = vunpack.c.h.b16 %v1336
    %v1424 = vunpack.c.l.b16 %v1337
    %v1425 = vunpack.c.l.b16 %v1338
    %v1426 = vunpack.c.h.b16 %v1338
    %v1427 = vunpack.c.l.b16 %v1339
    %v1428 = vpack.c.b16 %v1383, %v1380
    %v1429 = vpack.c.b16 %v1384, %v1381
    %v1430 = vpack.c.b16 %v1385, %v1382
    %v1431 = vpack.c.b16 %v1389, %v1386
    %v1432 = vpack.c.b16 %v1390, %v1387
    %v1433 = vpack.c.b16 %v1391, %v1388
    %v1434 = vpack.c.b16 %v1395, %v1392
    %v1435 = vpack.c.b16 %v1396, %v1393
    %v1436 = vpack.c.b16 %v1397, %v1394
    %v1437 = vpack.c.b16 %v1401, %v1398
    %v1438 = vpack.c.b16 %v1402, %v1399
    %v1439 = vpack.c.b16 %v1403, %v1400
    %v1440 = vpack.c.b16 %v1407, %v1404
    %v1441 = vpack.c.b16 %v1408, %v1405
    %v1442 = vpack.c.b16 %v1409, %v1406
    %v1443 = vpack.c.b16 %v1413, %v1410
    %v1444 = vpack.c.b16 %v1414, %v1411
    %v1445 = vpack.c.b16 %v1415, %v1412
    %v1446 = vpack.c.b16 %v1419, %v1416
    %v1447 = vpack.c.b16 %v1420, %v1417
    %v1448 = vpack.c.b16 %v1421, %v1418
    %v1449 = vpack.c.b16 %v1425, %v1422
    %v1450 = vpack.c.b16 %v1426, %v1423
    %v1451 = vpack.c.b16 %v1427, %v1424
    %1476 = vmatprep.subr.bf16.mxu0 %v1450
    %1477 = vmatpush1.bf16.msra.mxu0 %v1449
    %1478 = vmatprep.subr.bf16.mxu0 %v1447
    %1479 = vmatpush1.bf16.msra.mxu0 %v1446
    %1480 = vmatprep.subr.bf16.mxu0 %v1444
    %1481 = vmatpush1.bf16.msra.mxu0 %v1443
    %1482 = vmatprep.subr.bf16.mxu0 %v1441
    %1483 = vmatpush1.bf16.msra.mxu0 %v1440
    %1484 = vmatprep.subr.bf16.mxu0 %v1438
    %1485 = vmatpush1.bf16.msra.mxu0 %v1437
    %1486 = vmatprep.subr.bf16.mxu0 %v1435
    %1487 = vmatpush1.bf16.msra.mxu0 %v1434
    %1488 = vmatprep.subr.bf16.mxu0 %v1432
    %1489 = vmatpush1.bf16.msra.mxu0 %v1431
    %1490 = vmatprep.subr.bf16.mxu0 %v1429
    %1491 = vmatpush1.bf16.msra.mxu0 %v1428
    %1492 = vmatprep.subr.bf16.mxu0 0
    %1493 = vmatpush2.bf16.msra.mxu0 0
    %1494 = vmatprep.subr.bf16.mxu0 0
    %1495 = vmatpush2.bf16.msra.mxu0 0
    %1496 = vmatprep.subr.bf16.mxu0 0
    %1497 = vmatpush2.bf16.msra.mxu0 0
    %1498 = vmatprep.subr.bf16.mxu0 0
    %1499 = vmatpush2.bf16.msra.mxu0 0
    %1500 = vmatprep.subr.bf16.mxu0 0
    %1501 = vmatpush2.bf16.msra.mxu0 0
    %1502 = vmatprep.subr.bf16.mxu0 0
    %1503 = vmatpush2.bf16.msra.mxu0 0
    %1504 = vmatprep.subr.bf16.mxu0 0
    %1505 = vmatpush2.bf16.msra.mxu0 0
    %1506 = vmatprep.subr.bf16.mxu0 0
    %1507 = vmatpush2.bf16.msra.mxu0 0
    %1508 = vmatprep.mubr.bf16.mxu0 0
    %1509 = vmatmul.mubr.bf16.gmra.mxu0 %v1344
    %v1510 = vpop.f32.mrf.mxu0
    %v1511 = vadd.f32 0.0, %v1510
    %v1512 = vpop.f32.mrf.mxu0
    %v1513 = vadd.f32 0.0, %v1512
    %v1514 = vpop.f32.mrf.mxu0
    %v1515 = vadd.f32 0.0, %v1514
    %v1516 = vpop.f32.mrf.mxu0
    %v1517 = vadd.f32 0.0, %v1516
    %1518 = vmatprep.mubr.bf16.mxu0 0
    %1519 = vmatmul.mubr.bf16.gmra.mxu0 %v1345
    %v1520 = vpop.f32.mrf.mxu0
    %v1521 = vadd.f32 0.0, %v1520
    %v1522 = vpop.f32.mrf.mxu0
    %v1523 = vadd.f32 0.0, %v1522
    %v1524 = vpop.f32.mrf.mxu0
    %v1525 = vadd.f32 0.0, %v1524
    %v1526 = vpop.f32.mrf.mxu0
    %v1527 = vadd.f32 0.0, %v1526
    %1528 = vdwg.mxu0
    %1529 = vmatprep.subr.bf16.mxu0 0
    %1530 = vmatpush1.bf16.msra.mxu0 %v1451
    %1531 = vmatprep.subr.bf16.mxu0 0
    %1532 = vmatpush1.bf16.msra.mxu0 %v1448
    %1533 = vmatprep.subr.bf16.mxu0 0
    %1534 = vmatpush1.bf16.msra.mxu0 %v1445
    %1535 = vmatprep.subr.bf16.mxu0 0
    %1536 = vmatpush1.bf16.msra.mxu0 %v1442
    %1537 = vmatprep.subr.bf16.mxu0 0
    %1538 = vmatpush1.bf16.msra.mxu0 %v1439
    %1539 = vmatprep.subr.bf16.mxu0 0
    %1540 = vmatpush1.bf16.msra.mxu0 %v1436
    %1541 = vmatprep.subr.bf16.mxu0 0
    %1542 = vmatpush1.bf16.msra.mxu0 %v1433
    %1543 = vmatprep.subr.bf16.mxu0 0
    %1544 = vmatpush1.bf16.msra.mxu0 %v1430
    %1545 = vmatprep.subr.bf16.mxu0 0
    %1546 = vmatpush2.bf16.msra.mxu0 0
    %1547 = vmatprep.subr.bf16.mxu0 0
    %1548 = vmatpush2.bf16.msra.mxu0 0
    %1549 = vmatprep.subr.bf16.mxu0 0
    %1550 = vmatpush2.bf16.msra.mxu0 0
    %1551 = vmatprep.subr.bf16.mxu0 0
    %1552 = vmatpush2.bf16.msra.mxu0 0
    %1553 = vmatprep.subr.bf16.mxu0 0
    %1554 = vmatpush2.bf16.msra.mxu0 0
    %1555 = vmatprep.subr.bf16.mxu0 0
    %1556 = vmatpush2.bf16.msra.mxu0 0
    %1557 = vmatprep.subr.bf16.mxu0 0
    %1558 = vmatpush2.bf16.msra.mxu0 0
    %1559 = vmatprep.subr.bf16.mxu0 0
    %1560 = vmatpush2.bf16.msra.mxu0 0
    %1561 = vmatprep.mubr.bf16.mxu0 0
    %1562 = vmatmul.mubr.bf16.gmra.mxu0 %v1344
    %v1563 = vpop.f32.mrf.mxu0
    %v1564 = vadd.f32 0.0, %v1563
    %v1565 = vpop.f32.mrf.mxu0
    %v1566 = vpop.f32.mrf.mxu0
    %v1567 = vadd.f32 0.0, %v1566
    %v1568 = vpop.f32.mrf.mxu0
    %1569 = vmatprep.mubr.bf16.mxu0 0
    %1570 = vmatmul.mubr.bf16.gmra.mxu0 %v1345
    %v1571 = vpop.f32.mrf.mxu0
    %v1572 = vadd.f32 0.0, %v1571
    %v1573 = vpop.f32.mrf.mxu0
    %v1574 = vpop.f32.mrf.mxu0
    %v1575 = vadd.f32 0.0, %v1574
    %v1576 = vpop.f32.mrf.mxu0
    %1577 = vdwg.mxu0
    %v1578 = vadd.f32 %v1272, %v1511
    %v1579 = vadd.f32 %v1273, %v1513
    %v1580 = vadd.f32 %v1274, %v1564
    %v1581 = vadd.f32 %v1275, %v1515
    %v1582 = vadd.f32 %v1276, %v1517
    %v1583 = vadd.f32 %v1277, %v1567
    %v1584 = vadd.f32 %v1278, %v1521
    %v1585 = vadd.f32 %v1279, %v1523
    %v1586 = vadd.f32 %v1280, %v1572
    %v1587 = vadd.f32 %v1281, %v1525
    %v1588 = vadd.f32 %v1282, %v1527
    %v1589 = vadd.f32 %v1283, %v1575
    %v1590 = vld [vmem:[%s0 + $0x8] sm:$0x7]
    %v1591 = vld [vmem:[%s0 + $0x18] sm:$0x7]
    %vm1592 = vsmask.f32 1280
    %vm1593 = vsmask.f32 5392
    %vm1594 = vmor %vm1592, %vm1593
    %v1596 = vshrl.u32 %v1284, 16
    %v1598 = vrot.slane %v1596, 6
    %v1599 = vshll.u32 %v1284, 16
    %v1601 = vrot.slane %v1599, 7
    %v1602 = vor.u32 %v1598, %v1601
    %v1603 = vrot.slane %v1602, 4
    %v1604 = vrot.slane %v97, 6
    %v1605 = vrot.slane %v93, 7
    %v1606 = vor.u32 %v1604, %v1605
    %v1607 = vsel %vm1594, %v1603, %v1606
    %v1608 = vrot.slane %v1606, 4
    %v1610 = vshrl.u32 %v1590, 16
    %v1612 = vrot.slane %v1610, 6
    %v1613 = vshll.u32 %v1590, 16
    %v1615 = vrot.slane %v1613, 7
    %v1616 = vor.u32 %v1612, %v1615
    %v1617 = vsel %vm1594, %v1608, %v1616
    %v1619 = vshrl.u32 %v1285, 16
    %v1621 = vrot.slane %v1619, 6
    %v1622 = vshll.u32 %v1285, 16
    %v1624 = vrot.slane %v1622, 7
    %v1625 = vor.u32 %v1621, %v1624
    %v1626 = vrot.slane %v1625, 4
    %v1627 = vrot.slane %v121, 6
    %v1628 = vrot.slane %v117, 7
    %v1629 = vor.u32 %v1627, %v1628
    %v1630 = vsel %vm1594, %v1626, %v1629
    %v1631 = vrot.slane %v1629, 4
    %v1633 = vshrl.u32 %v1591, 16
    %v1635 = vrot.slane %v1633, 6
    %v1636 = vshll.u32 %v1591, 16
    %v1638 = vrot.slane %v1636, 7
    %v1639 = vor.u32 %v1635, %v1638
    %v1640 = vsel %vm1594, %v1631, %v1639
    %s1641 = scalar_lea.vmem [#allocation2], 960
    %v1642 = vld [vmem:[%s1641] sm:$0xff]
    %v1643 = vld [vmem:[%s1641 + $0x8] sm:$0xf]
    %v1644 = vld [vmem:[%s1641 + $0xc] sm:$0xff]
    %v1645 = vld [vmem:[%s1641 + $0x14] sm:$0xf]
    %v1646 = vld [vmem:[%s1641 + $0x18] sm:$0xff]
    %v1647 = vld [vmem:[%s1641 + $0x20] sm:$0xf]
    %v1648 = vld [vmem:[%s1641 + $0x24] sm:$0xff]
    %v1649 = vld [vmem:[%s1641 + $0x2c] sm:$0xf]
    %v1650 = vld [vmem:[%s1641 + $0x30] sm:$0xff]
    %v1651 = vld [vmem:[%s1641 + $0x38] sm:$0xf]
    %v1652 = vld [vmem:[%s1641 + $0x3c] sm:$0xff]
    %v1653 = vld [vmem:[%s1641 + $0x44] sm:$0xf]
    %v1654 = vld [vmem:[%s1641 + $0x48] sm:$0xff]
    %v1655 = vld [vmem:[%s1641 + $0x50] sm:$0xf]
    %v1656 = vld [vmem:[%s1641 + $0x54] sm:$0xff]
    %v1657 = vld [vmem:[%s1641 + $0x5c] sm:$0xf]
    %v1658 = vld [vmem:[%s1641 + $0x60] sm:$0xff]
    %v1659 = vld [vmem:[%s1641 + $0x68] sm:$0xf]
    %v1660 = vld [vmem:[%s1641 + $0x6c] sm:$0xff]
    %v1661 = vld [vmem:[%s1641 + $0x74] sm:$0xf]
    %v1662 = vld [vmem:[%s1641 + $0x78] sm:$0xff]
    %v1663 = vld [vmem:[%s1641 + $0x80] sm:$0xf]
    %v1664 = vld [vmem:[%s1641 + $0x84] sm:$0xff]
    %v1665 = vld [vmem:[%s1641 + $0x8c] sm:$0xf]
    %v1666 = vld [vmem:[%s1641 + $0x90] sm:$0xff]
    %v1667 = vld [vmem:[%s1641 + $0x98] sm:$0xf]
    %v1668 = vld [vmem:[%s1641 + $0x9c] sm:$0xff]
    %v1669 = vld [vmem:[%s1641 + $0xa4] sm:$0xf]
    %v1670 = vld [vmem:[%s1641 + $0xa8] sm:$0xff]
    %v1671 = vld [vmem:[%s1641 + $0xb0] sm:$0xf]
    %v1672 = vld [vmem:[%s1641 + $0xb4] sm:$0xff]
    %v1673 = vld [vmem:[%s1641 + $0xbc] sm:$0xf]
    %v1674 = vunpack.c.l.b16 %v1607
    %v1675 = vunpack.c.l.b16 %v1617
    %v1676 = vunpack.c.l.b16 %v1630
    %v1677 = vunpack.c.l.b16 %v1640
    %v1678 = vpack.c.b16 %v1675, %v1674
    %v1679 = vpack.c.b16 %v1677, %v1676
    %v1714 = vunpack.c.l.b16 %v1642
    %v1715 = vunpack.c.h.b16 %v1642
    %v1716 = vunpack.c.l.b16 %v1643
    %v1717 = vunpack.c.l.b16 %v1644
    %v1718 = vunpack.c.h.b16 %v1644
    %v1719 = vunpack.c.l.b16 %v1645
    %v1720 = vunpack.c.l.b16 %v1646
    %v1721 = vunpack.c.h.b16 %v1646
    %v1722 = vunpack.c.l.b16 %v1647
    %v1723 = vunpack.c.l.b16 %v1648
    %v1724 = vunpack.c.h.b16 %v1648
    %v1725 = vunpack.c.l.b16 %v1649
    %v1726 = vunpack.c.l.b16 %v1650
    %v1727 = vunpack.c.h.b16 %v1650
    %v1728 = vunpack.c.l.b16 %v1651
    %v1729 = vunpack.c.l.b16 %v1652
    %v1730 = vunpack.c.h.b16 %v1652
    %v1731 = vunpack.c.l.b16 %v1653
    %v1732 = vunpack.c.l.b16 %v1654
    %v1733 = vunpack.c.h.b16 %v1654
    %v1734 = vunpack.c.l.b16 %v1655
    %v1735 = vunpack.c.l.b16 %v1656
    %v1736 = vunpack.c.h.b16 %v1656
    %v1737 = vunpack.c.l.b16 %v1657
    %v1738 = vunpack.c.l.b16 %v1658
    %v1739 = vunpack.c.h.b16 %v1658
    %v1740 = vunpack.c.l.b16 %v1659
    %v1741 = vunpack.c.l.b16 %v1660
    %v1742 = vunpack.c.h.b16 %v1660
    %v1743 = vunpack.c.l.b16 %v1661
    %v1744 = vunpack.c.l.b16 %v1662
    %v1745 = vunpack.c.h.b16 %v1662
    %v1746 = vunpack.c.l.b16 %v1663
    %v1747 = vunpack.c.l.b16 %v1664
    %v1748 = vunpack.c.h.b16 %v1664
    %v1749 = vunpack.c.l.b16 %v1665
    %v1750 = vunpack.c.l.b16 %v1666
    %v1751 = vunpack.c.h.b16 %v1666
    %v1752 = vunpack.c.l.b16 %v1667
    %v1753 = vunpack.c.l.b16 %v1668
    %v1754 = vunpack.c.h.b16 %v1668
    %v1755 = vunpack.c.l.b16 %v1669
    %v1756 = vunpack.c.l.b16 %v1670
    %v1757 = vunpack.c.h.b16 %v1670
    %v1758 = vunpack.c.l.b16 %v1671
    %v1759 = vunpack.c.l.b16 %v1672
    %v1760 = vunpack.c.h.b16 %v1672
    %v1761 = vunpack.c.l.b16 %v1673
    %v1762 = vpack.c.b16 %v1717, %v1714
    %v1763 = vpack.c.b16 %v1718, %v1715
    %v1764 = vpack.c.b16 %v1719, %v1716
    %v1765 = vpack.c.b16 %v1723, %v1720
    %v1766 = vpack.c.b16 %v1724, %v1721
    %v1767 = vpack.c.b16 %v1725, %v1722
    %v1768 = vpack.c.b16 %v1729, %v1726
    %v1769 = vpack.c.b16 %v1730, %v1727
    %v1770 = vpack.c.b16 %v1731, %v1728
    %v1771 = vpack.c.b16 %v1735, %v1732
    %v1772 = vpack.c.b16 %v1736, %v1733
    %v1773 = vpack.c.b16 %v1737, %v1734
    %v1774 = vpack.c.b16 %v1741, %v1738
    %v1775 = vpack.c.b16 %v1742, %v1739
    %v1776 = vpack.c.b16 %v1743, %v1740
    %v1777 = vpack.c.b16 %v1747, %v1744
    %v1778 = vpack.c.b16 %v1748, %v1745
    %v1779 = vpack.c.b16 %v1749, %v1746
    %v1780 = vpack.c.b16 %v1753, %v1750
    %v1781 = vpack.c.b16 %v1754, %v1751
    %v1782 = vpack.c.b16 %v1755, %v1752
    %v1783 = vpack.c.b16 %v1759, %v1756
    %v1784 = vpack.c.b16 %v1760, %v1757
    %v1785 = vpack.c.b16 %v1761, %v1758
    %1810 = vmatprep.subr.bf16.mxu0 %v1784
    %1811 = vmatpush1.bf16.msra.mxu0 %v1783
    %1812 = vmatprep.subr.bf16.mxu0 %v1781
    %1813 = vmatpush1.bf16.msra.mxu0 %v1780
    %1814 = vmatprep.subr.bf16.mxu0 %v1778
    %1815 = vmatpush1.bf16.msra.mxu0 %v1777
    %1816 = vmatprep.subr.bf16.mxu0 %v1775
    %1817 = vmatpush1.bf16.msra.mxu0 %v1774
    %1818 = vmatprep.subr.bf16.mxu0 %v1772
    %1819 = vmatpush1.bf16.msra.mxu0 %v1771
    %1820 = vmatprep.subr.bf16.mxu0 %v1769
    %1821 = vmatpush1.bf16.msra.mxu0 %v1768
    %1822 = vmatprep.subr.bf16.mxu0 %v1766
    %1823 = vmatpush1.bf16.msra.mxu0 %v1765
    %1824 = vmatprep.subr.bf16.mxu0 %v1763
    %1825 = vmatpush1.bf16.msra.mxu0 %v1762
    %1826 = vmatprep.subr.bf16.mxu0 0
    %1827 = vmatpush2.bf16.msra.mxu0 0
    %1828 = vmatprep.subr.bf16.mxu0 0
    %1829 = vmatpush2.bf16.msra.mxu0 0
    %1830 = vmatprep.subr.bf16.mxu0 0
    %1831 = vmatpush2.bf16.msra.mxu0 0
    %1832 = vmatprep.subr.bf16.mxu0 0
    %1833 = vmatpush2.bf16.msra.mxu0 0
    %1834 = vmatprep.subr.bf16.mxu0 0
    %1835 = vmatpush2.bf16.msra.mxu0 0
    %1836 = vmatprep.subr.bf16.mxu0 0
    %1837 = vmatpush2.bf16.msra.mxu0 0
    %1838 = vmatprep.subr.bf16.mxu0 0
    %1839 = vmatpush2.bf16.msra.mxu0 0
    %1840 = vmatprep.subr.bf16.mxu0 0
    %1841 = vmatpush2.bf16.msra.mxu0 0
    %1842 = vmatprep.mubr.bf16.mxu0 0
    %1843 = vmatmul.mubr.bf16.gmra.mxu0 %v1678
    %v1844 = vpop.f32.mrf.mxu0
    %v1845 = vadd.f32 0.0, %v1844
    %v1846 = vpop.f32.mrf.mxu0
    %v1847 = vadd.f32 0.0, %v1846
    %v1848 = vpop.f32.mrf.mxu0
    %v1849 = vadd.f32 0.0, %v1848
    %v1850 = vpop.f32.mrf.mxu0
    %v1851 = vadd.f32 0.0, %v1850
    %1852 = vmatprep.mubr.bf16.mxu0 0
    %1853 = vmatmul.mubr.bf16.gmra.mxu0 %v1679
    %v1854 = vpop.f32.mrf.mxu0
    %v1855 = vadd.f32 0.0, %v1854
    %v1856 = vpop.f32.mrf.mxu0
    %v1857 = vadd.f32 0.0, %v1856
    %v1858 = vpop.f32.mrf.mxu0
    %v1859 = vadd.f32 0.0, %v1858
    %v1860 = vpop.f32.mrf.mxu0
    %v1861 = vadd.f32 0.0, %v1860
    %1862 = vdwg.mxu0
    %1863 = vmatprep.subr.bf16.mxu0 0
    %1864 = vmatpush1.bf16.msra.mxu0 %v1785
    %1865 = vmatprep.subr.bf16.mxu0 0
    %1866 = vmatpush1.bf16.msra.mxu0 %v1782
    %1867 = vmatprep.subr.bf16.mxu0 0
    %1868 = vmatpush1.bf16.msra.mxu0 %v1779
    %1869 = vmatprep.subr.bf16.mxu0 0
    %1870 = vmatpush1.bf16.msra.mxu0 %v1776
    %1871 = vmatprep.subr.bf16.mxu0 0
    %1872 = vmatpush1.bf16.msra.mxu0 %v1773
    %1873 = vmatprep.subr.bf16.mxu0 0
    %1874 = vmatpush1.bf16.msra.mxu0 %v1770
    %1875 = vmatprep.subr.bf16.mxu0 0
    %1876 = vmatpush1.bf16.msra.mxu0 %v1767
    %1877 = vmatprep.subr.bf16.mxu0 0
    %1878 = vmatpush1.bf16.msra.mxu0 %v1764
    %1879 = vmatprep.subr.bf16.mxu0 0
    %1880 = vmatpush2.bf16.msra.mxu0 0
    %1881 = vmatprep.subr.bf16.mxu0 0
    %1882 = vmatpush2.bf16.msra.mxu0 0
    %1883 = vmatprep.subr.bf16.mxu0 0
    %1884 = vmatpush2.bf16.msra.mxu0 0
    %1885 = vmatprep.subr.bf16.mxu0 0
    %1886 = vmatpush2.bf16.msra.mxu0 0
    %1887 = vmatprep.subr.bf16.mxu0 0
    %1888 = vmatpush2.bf16.msra.mxu0 0
    %1889 = vmatprep.subr.bf16.mxu0 0
    %1890 = vmatpush2.bf16.msra.mxu0 0
    %1891 = vmatprep.subr.bf16.mxu0 0
    %1892 = vmatpush2.bf16.msra.mxu0 0
    %1893 = vmatprep.subr.bf16.mxu0 0
    %1894 = vmatpush2.bf16.msra.mxu0 0
    %1895 = vmatprep.mubr.bf16.mxu0 0
    %1896 = vmatmul.mubr.bf16.gmra.mxu0 %v1678
    %v1897 = vpop.f32.mrf.mxu0
    %v1898 = vadd.f32 0.0, %v1897
    %v1899 = vpop.f32.mrf.mxu0
    %v1900 = vpop.f32.mrf.mxu0
    %v1901 = vadd.f32 0.0, %v1900
    %v1902 = vpop.f32.mrf.mxu0
    %1903 = vmatprep.mubr.bf16.mxu0 0
    %1904 = vmatmul.mubr.bf16.gmra.mxu0 %v1679
    %v1905 = vpop.f32.mrf.mxu0
    %v1906 = vadd.f32 0.0, %v1905
    %v1907 = vpop.f32.mrf.mxu0
    %v1908 = vpop.f32.mrf.mxu0
    %v1909 = vadd.f32 0.0, %v1908
    %v1910 = vpop.f32.mrf.mxu0
    %1911 = vdwg.mxu0
    %v1912 = vadd.f32 %v1578, %v1845
    %v1913 = vadd.f32 %v1579, %v1847
    %v1914 = vadd.f32 %v1580, %v1898
    %v1915 = vadd.f32 %v1581, %v1849
    %v1916 = vadd.f32 %v1582, %v1851
    %v1917 = vadd.f32 %v1583, %v1901
    %v1918 = vadd.f32 %v1584, %v1855
    %v1919 = vadd.f32 %v1585, %v1857
    %v1920 = vadd.f32 %v1586, %v1906
    %v1921 = vadd.f32 %v1587, %v1859
    %v1922 = vadd.f32 %v1588, %v1861
    %v1923 = vadd.f32 %v1589, %v1909
    %v1924 = vld [vmem:[%s0] sm:$0x8]
    %v1925 = vld [vmem:[%s0 + $0x10] sm:$0x8]
    %vm1930 = vcmask 1040384
    %vm1931 = vcmask 1044484
    %vm1932 = vmor %vm1930, %vm1931
    %v1933 = vrot.slane %v1924, 7
    %v1934 = vrot.slane %v1933, 4
    %v1935 = vrot.slane %v43, 7
    %v1936 = vsel %vm1932, %v1934, %v1935
    %v1937 = vrot.slane %v1935, 4
    %v1938 = vrot.slane %v1590, 7
    %v1939 = vsel %vm1932, %v1937, %v1938
    %v1940 = vrot.slane %v1925, 7
    %v1941 = vrot.slane %v1940, 4
    %v1942 = vrot.slane %v45, 7
    %v1943 = vsel %vm1932, %v1941, %v1942
    %v1944 = vrot.slane %v1942, 4
    %v1945 = vrot.slane %v1591, 7
    %v1946 = vsel %vm1932, %v1944, %v1945
    %s1947 = scalar_lea.vmem [#allocation2], 1152
    %v1948 = vld [vmem:[%s1947] sm:$0xff]
    %v1949 = vld [vmem:[%s1947 + $0x8] sm:$0xf]
    %v1950 = vld [vmem:[%s1947 + $0xc] sm:$0xff]
    %v1951 = vld [vmem:[%s1947 + $0x14] sm:$0xf]
    %v1952 = vld [vmem:[%s1947 + $0x18] sm:$0xff]
    %v1953 = vld [vmem:[%s1947 + $0x20] sm:$0xf]
    %v1954 = vld [vmem:[%s1947 + $0x24] sm:$0xff]
    %v1955 = vld [vmem:[%s1947 + $0x2c] sm:$0xf]
    %v1956 = vld [vmem:[%s1947 + $0x30] sm:$0xff]
    %v1957 = vld [vmem:[%s1947 + $0x38] sm:$0xf]
    %v1958 = vld [vmem:[%s1947 + $0x3c] sm:$0xff]
    %v1959 = vld [vmem:[%s1947 + $0x44] sm:$0xf]
    %v1960 = vld [vmem:[%s1947 + $0x48] sm:$0xff]
    %v1961 = vld [vmem:[%s1947 + $0x50] sm:$0xf]
    %v1962 = vld [vmem:[%s1947 + $0x54] sm:$0xff]
    %v1963 = vld [vmem:[%s1947 + $0x5c] sm:$0xf]
    %v1964 = vld [vmem:[%s1947 + $0x60] sm:$0xff]
    %v1965 = vld [vmem:[%s1947 + $0x68] sm:$0xf]
    %v1966 = vld [vmem:[%s1947 + $0x6c] sm:$0xff]
    %v1967 = vld [vmem:[%s1947 + $0x74] sm:$0xf]
    %v1968 = vld [vmem:[%s1947 + $0x78] sm:$0xff]
    %v1969 = vld [vmem:[%s1947 + $0x80] sm:$0xf]
    %v1970 = vld [vmem:[%s1947 + $0x84] sm:$0xff]
    %v1971 = vld [vmem:[%s1947 + $0x8c] sm:$0xf]
    %v1972 = vld [vmem:[%s1947 + $0x90] sm:$0xff]
    %v1973 = vld [vmem:[%s1947 + $0x98] sm:$0xf]
    %v1974 = vld [vmem:[%s1947 + $0x9c] sm:$0xff]
    %v1975 = vld [vmem:[%s1947 + $0xa4] sm:$0xf]
    %v1976 = vld [vmem:[%s1947 + $0xa8] sm:$0xff]
    %v1977 = vld [vmem:[%s1947 + $0xb0] sm:$0xf]
    %v1978 = vld [vmem:[%s1947 + $0xb4] sm:$0xff]
    %v1979 = vld [vmem:[%s1947 + $0xbc] sm:$0xf]
    %v1980 = vunpack.c.l.b16 %v1936
    %v1981 = vunpack.c.l.b16 %v1939
    %v1982 = vunpack.c.l.b16 %v1943
    %v1983 = vunpack.c.l.b16 %v1946
    %v1984 = vpack.c.b16 %v1981, %v1980
    %v1985 = vpack.c.b16 %v1983, %v1982
    %v2020 = vunpack.c.l.b16 %v1948
    %v2021 = vunpack.c.h.b16 %v1948
    %v2022 = vunpack.c.l.b16 %v1949
    %v2023 = vunpack.c.l.b16 %v1950
    %v2024 = vunpack.c.h.b16 %v1950
    %v2025 = vunpack.c.l.b16 %v1951
    %v2026 = vunpack.c.l.b16 %v1952
    %v2027 = vunpack.c.h.b16 %v1952
    %v2028 = vunpack.c.l.b16 %v1953
    %v2029 = vunpack.c.l.b16 %v1954
    %v2030 = vunpack.c.h.b16 %v1954
    %v2031 = vunpack.c.l.b16 %v1955
    %v2032 = vunpack.c.l.b16 %v1956
    %v2033 = vunpack.c.h.b16 %v1956
    %v2034 = vunpack.c.l.b16 %v1957
    %v2035 = vunpack.c.l.b16 %v1958
    %v2036 = vunpack.c.h.b16 %v1958
    %v2037 = vunpack.c.l.b16 %v1959
    %v2038 = vunpack.c.l.b16 %v1960
    %v2039 = vunpack.c.h.b16 %v1960
    %v2040 = vunpack.c.l.b16 %v1961
    %v2041 = vunpack.c.l.b16 %v1962
    %v2042 = vunpack.c.h.b16 %v1962
    %v2043 = vunpack.c.l.b16 %v1963
    %v2044 = vunpack.c.l.b16 %v1964
    %v2045 = vunpack.c.h.b16 %v1964
    %v2046 = vunpack.c.l.b16 %v1965
    %v2047 = vunpack.c.l.b16 %v1966
    %v2048 = vunpack.c.h.b16 %v1966
    %v2049 = vunpack.c.l.b16 %v1967
    %v2050 = vunpack.c.l.b16 %v1968
    %v2051 = vunpack.c.h.b16 %v1968
    %v2052 = vunpack.c.l.b16 %v1969
    %v2053 = vunpack.c.l.b16 %v1970
    %v2054 = vunpack.c.h.b16 %v1970
    %v2055 = vunpack.c.l.b16 %v1971
    %v2056 = vunpack.c.l.b16 %v1972
    %v2057 = vunpack.c.h.b16 %v1972
    %v2058 = vunpack.c.l.b16 %v1973
    %v2059 = vunpack.c.l.b16 %v1974
    %v2060 = vunpack.c.h.b16 %v1974
    %v2061 = vunpack.c.l.b16 %v1975
    %v2062 = vunpack.c.l.b16 %v1976
    %v2063 = vunpack.c.h.b16 %v1976
    %v2064 = vunpack.c.l.b16 %v1977
    %v2065 = vunpack.c.l.b16 %v1978
    %v2066 = vunpack.c.h.b16 %v1978
    %v2067 = vunpack.c.l.b16 %v1979
    %v2068 = vpack.c.b16 %v2023, %v2020
    %v2069 = vpack.c.b16 %v2024, %v2021
    %v2070 = vpack.c.b16 %v2025, %v2022
    %v2071 = vpack.c.b16 %v2029, %v2026
    %v2072 = vpack.c.b16 %v2030, %v2027
    %v2073 = vpack.c.b16 %v2031, %v2028
    %v2074 = vpack.c.b16 %v2035, %v2032
    %v2075 = vpack.c.b16 %v2036, %v2033
    %v2076 = vpack.c.b16 %v2037, %v2034
    %v2077 = vpack.c.b16 %v2041, %v2038
    %v2078 = vpack.c.b16 %v2042, %v2039
    %v2079 = vpack.c.b16 %v2043, %v2040
    %v2080 = vpack.c.b16 %v2047, %v2044
    %v2081 = vpack.c.b16 %v2048, %v2045
    %v2082 = vpack.c.b16 %v2049, %v2046
    %v2083 = vpack.c.b16 %v2053, %v2050
    %v2084 = vpack.c.b16 %v2054, %v2051
    %v2085 = vpack.c.b16 %v2055, %v2052
    %v2086 = vpack.c.b16 %v2059, %v2056
    %v2087 = vpack.c.b16 %v2060, %v2057
    %v2088 = vpack.c.b16 %v2061, %v2058
    %v2089 = vpack.c.b16 %v2065, %v2062
    %v2090 = vpack.c.b16 %v2066, %v2063
    %v2091 = vpack.c.b16 %v2067, %v2064
    %2116 = vmatprep.subr.bf16.mxu0 %v2090
    %2117 = vmatpush1.bf16.msra.mxu0 %v2089
    %2118 = vmatprep.subr.bf16.mxu0 %v2087
    %2119 = vmatpush1.bf16.msra.mxu0 %v2086
    %2120 = vmatprep.subr.bf16.mxu0 %v2084
    %2121 = vmatpush1.bf16.msra.mxu0 %v2083
    %2122 = vmatprep.subr.bf16.mxu0 %v2081
    %2123 = vmatpush1.bf16.msra.mxu0 %v2080
    %2124 = vmatprep.subr.bf16.mxu0 %v2078
    %2125 = vmatpush1.bf16.msra.mxu0 %v2077
    %2126 = vmatprep.subr.bf16.mxu0 %v2075
    %2127 = vmatpush1.bf16.msra.mxu0 %v2074
    %2128 = vmatprep.subr.bf16.mxu0 %v2072
    %2129 = vmatpush1.bf16.msra.mxu0 %v2071
    %2130 = vmatprep.subr.bf16.mxu0 %v2069
    %2131 = vmatpush1.bf16.msra.mxu0 %v2068
    %2132 = vmatprep.subr.bf16.mxu0 0
    %2133 = vmatpush2.bf16.msra.mxu0 0
    %2134 = vmatprep.subr.bf16.mxu0 0
    %2135 = vmatpush2.bf16.msra.mxu0 0
    %2136 = vmatprep.subr.bf16.mxu0 0
    %2137 = vmatpush2.bf16.msra.mxu0 0
    %2138 = vmatprep.subr.bf16.mxu0 0
    %2139 = vmatpush2.bf16.msra.mxu0 0
    %2140 = vmatprep.subr.bf16.mxu0 0
    %2141 = vmatpush2.bf16.msra.mxu0 0
    %2142 = vmatprep.subr.bf16.mxu0 0
    %2143 = vmatpush2.bf16.msra.mxu0 0
    %2144 = vmatprep.subr.bf16.mxu0 0
    %2145 = vmatpush2.bf16.msra.mxu0 0
    %2146 = vmatprep.subr.bf16.mxu0 0
    %2147 = vmatpush2.bf16.msra.mxu0 0
    %2148 = vmatprep.mubr.bf16.mxu0 0
    %2149 = vmatmul.mubr.bf16.gmra.mxu0 %v1984
    %v2150 = vpop.f32.mrf.mxu0
    %v2151 = vadd.f32 0.0, %v2150
    %v2152 = vpop.f32.mrf.mxu0
    %v2153 = vadd.f32 0.0, %v2152
    %v2154 = vpop.f32.mrf.mxu0
    %v2155 = vadd.f32 0.0, %v2154
    %v2156 = vpop.f32.mrf.mxu0
    %v2157 = vadd.f32 0.0, %v2156
    %2158 = vmatprep.mubr.bf16.mxu0 0
    %2159 = vmatmul.mubr.bf16.gmra.mxu0 %v1985
    %v2160 = vpop.f32.mrf.mxu0
    %v2161 = vadd.f32 0.0, %v2160
    %v2162 = vpop.f32.mrf.mxu0
    %v2163 = vadd.f32 0.0, %v2162
    %v2164 = vpop.f32.mrf.mxu0
    %v2165 = vadd.f32 0.0, %v2164
    %v2166 = vpop.f32.mrf.mxu0
    %v2167 = vadd.f32 0.0, %v2166
    %2168 = vdwg.mxu0
    %2169 = vmatprep.subr.bf16.mxu0 0
    %2170 = vmatpush1.bf16.msra.mxu0 %v2091
    %2171 = vmatprep.subr.bf16.mxu0 0
    %2172 = vmatpush1.bf16.msra.mxu0 %v2088
    %2173 = vmatprep.subr.bf16.mxu0 0
    %2174 = vmatpush1.bf16.msra.mxu0 %v2085
    %2175 = vmatprep.subr.bf16.mxu0 0
    %2176 = vmatpush1.bf16.msra.mxu0 %v2082
    %2177 = vmatprep.subr.bf16.mxu0 0
    %2178 = vmatpush1.bf16.msra.mxu0 %v2079
    %2179 = vmatprep.subr.bf16.mxu0 0
    %2180 = vmatpush1.bf16.msra.mxu0 %v2076
    %2181 = vmatprep.subr.bf16.mxu0 0
    %2182 = vmatpush1.bf16.msra.mxu0 %v2073
    %2183 = vmatprep.subr.bf16.mxu0 0
    %2184 = vmatpush1.bf16.msra.mxu0 %v2070
    %2185 = vmatprep.subr.bf16.mxu0 0
    %2186 = vmatpush2.bf16.msra.mxu0 0
    %2187 = vmatprep.subr.bf16.mxu0 0
    %2188 = vmatpush2.bf16.msra.mxu0 0
    %2189 = vmatprep.subr.bf16.mxu0 0
    %2190 = vmatpush2.bf16.msra.mxu0 0
    %2191 = vmatprep.subr.bf16.mxu0 0
    %2192 = vmatpush2.bf16.msra.mxu0 0
    %2193 = vmatprep.subr.bf16.mxu0 0
    %2194 = vmatpush2.bf16.msra.mxu0 0
    %2195 = vmatprep.subr.bf16.mxu0 0
    %2196 = vmatpush2.bf16.msra.mxu0 0
    %2197 = vmatprep.subr.bf16.mxu0 0
    %2198 = vmatpush2.bf16.msra.mxu0 0
    %2199 = vmatprep.subr.bf16.mxu0 0
    %2200 = vmatpush2.bf16.msra.mxu0 0
    %2201 = vmatprep.mubr.bf16.mxu0 0
    %2202 = vmatmul.mubr.bf16.gmra.mxu0 %v1984
    %v2203 = vpop.f32.mrf.mxu0
    %v2204 = vadd.f32 0.0, %v2203
    %v2205 = vpop.f32.mrf.mxu0
    %v2206 = vpop.f32.mrf.mxu0
    %v2207 = vadd.f32 0.0, %v2206
    %v2208 = vpop.f32.mrf.mxu0
    %2209 = vmatprep.mubr.bf16.mxu0 0
    %2210 = vmatmul.mubr.bf16.gmra.mxu0 %v1985
    %v2211 = vpop.f32.mrf.mxu0
    %v2212 = vadd.f32 0.0, %v2211
    %v2213 = vpop.f32.mrf.mxu0
    %v2214 = vpop.f32.mrf.mxu0
    %v2215 = vadd.f32 0.0, %v2214
    %v2216 = vpop.f32.mrf.mxu0
    %2217 = vdwg.mxu0
    %v2218 = vadd.f32 %v1912, %v2151
    %v2219 = vadd.f32 %v1913, %v2153
    %v2220 = vadd.f32 %v1914, %v2204
    %v2221 = vadd.f32 %v1915, %v2155
    %v2222 = vadd.f32 %v1916, %v2157
    %v2223 = vadd.f32 %v1917, %v2207
    %v2224 = vadd.f32 %v1918, %v2161
    %v2225 = vadd.f32 %v1919, %v2163
    %v2226 = vadd.f32 %v1920, %v2212
    %v2227 = vadd.f32 %v1921, %v2165
    %v2228 = vadd.f32 %v1922, %v2167
    %v2229 = vadd.f32 %v1923, %v2215
    %v2230 = vld [vmem:[%s0 + $0x8] sm:$0xf]
    %v2231 = vld [vmem:[%s0 + $0x18] sm:$0xf]
    %vm2232 = vsmask.f32 256
    %vm2233 = vsmask.f32 4368
    %vm2234 = vmor %vm2232, %vm2233
    %v2236 = vshrl.u32 %v1924, 16
    %v2238 = vrot.slane %v2236, 7
    %v2239 = vrot.slane %v2238, 4
    %v2240 = vrot.slane %v97, 7
    %v2241 = vor.u32 %v2240, %v93
    %v2242 = vsel %vm2234, %v2239, %v2241
    %v2243 = vrot.slane %v2240, 4
    %v2245 = vshrl.u32 %v2230, 16
    %v2247 = vrot.slane %v2245, 7
    %v2248 = vshll.u32 %v2230, 16
    %v2250 = vor.u32 %v2247, %v2248
    %v2251 = vsel %vm2234, %v2243, %v2250
    %v2253 = vshrl.u32 %v1925, 16
    %v2255 = vrot.slane %v2253, 7
    %v2256 = vrot.slane %v2255, 4
    %v2257 = vrot.slane %v121, 7
    %v2258 = vor.u32 %v2257, %v117
    %v2259 = vsel %vm2234, %v2256, %v2258
    %v2260 = vrot.slane %v2257, 4
    %v2262 = vshrl.u32 %v2231, 16
    %v2264 = vrot.slane %v2262, 7
    %v2265 = vshll.u32 %v2231, 16
    %v2267 = vor.u32 %v2264, %v2265
    %v2268 = vsel %vm2234, %v2260, %v2267
    %s2269 = scalar_lea.vmem [#allocation2], 1344
    %v2270 = vld [vmem:[%s2269] sm:$0xff]
    %v2271 = vld [vmem:[%s2269 + $0x8] sm:$0xf]
    %v2272 = vld [vmem:[%s2269 + $0xc] sm:$0xff]
    %v2273 = vld [vmem:[%s2269 + $0x14] sm:$0xf]
    %v2274 = vld [vmem:[%s2269 + $0x18] sm:$0xff]
    %v2275 = vld [vmem:[%s2269 + $0x20] sm:$0xf]
    %v2276 = vld [vmem:[%s2269 + $0x24] sm:$0xff]
    %v2277 = vld [vmem:[%s2269 + $0x2c] sm:$0xf]
    %v2278 = vld [vmem:[%s2269 + $0x30] sm:$0xff]
    %v2279 = vld [vmem:[%s2269 + $0x38] sm:$0xf]
    %v2280 = vld [vmem:[%s2269 + $0x3c] sm:$0xff]
    %v2281 = vld [vmem:[%s2269 + $0x44] sm:$0xf]
    %v2282 = vld [vmem:[%s2269 + $0x48] sm:$0xff]
    %v2283 = vld [vmem:[%s2269 + $0x50] sm:$0xf]
    %v2284 = vld [vmem:[%s2269 + $0x54] sm:$0xff]
    %v2285 = vld [vmem:[%s2269 + $0x5c] sm:$0xf]
    %v2286 = vld [vmem:[%s2269 + $0x60] sm:$0xff]
    %v2287 = vld [vmem:[%s2269 + $0x68] sm:$0xf]
    %v2288 = vld [vmem:[%s2269 + $0x6c] sm:$0xff]
    %v2289 = vld [vmem:[%s2269 + $0x74] sm:$0xf]
    %v2290 = vld [vmem:[%s2269 + $0x78] sm:$0xff]
    %v2291 = vld [vmem:[%s2269 + $0x80] sm:$0xf]
    %v2292 = vld [vmem:[%s2269 + $0x84] sm:$0xff]
    %v2293 = vld [vmem:[%s2269 + $0x8c] sm:$0xf]
    %v2294 = vld [vmem:[%s2269 + $0x90] sm:$0xff]
    %v2295 = vld [vmem:[%s2269 + $0x98] sm:$0xf]
    %v2296 = vld [vmem:[%s2269 + $0x9c] sm:$0xff]
    %v2297 = vld [vmem:[%s2269 + $0xa4] sm:$0xf]
    %v2298 = vld [vmem:[%s2269 + $0xa8] sm:$0xff]
    %v2299 = vld [vmem:[%s2269 + $0xb0] sm:$0xf]
    %v2300 = vld [vmem:[%s2269 + $0xb4] sm:$0xff]
    %v2301 = vld [vmem:[%s2269 + $0xbc] sm:$0xf]
    %v2302 = vunpack.c.l.b16 %v2242
    %v2303 = vunpack.c.l.b16 %v2251
    %v2304 = vunpack.c.l.b16 %v2259
    %v2305 = vunpack.c.l.b16 %v2268
    %v2306 = vpack.c.b16 %v2303, %v2302
    %v2307 = vpack.c.b16 %v2305, %v2304
    %v2342 = vunpack.c.l.b16 %v2270
    %v2343 = vunpack.c.h.b16 %v2270
    %v2344 = vunpack.c.l.b16 %v2271
    %v2345 = vunpack.c.l.b16 %v2272
    %v2346 = vunpack.c.h.b16 %v2272
    %v2347 = vunpack.c.l.b16 %v2273
    %v2348 = vunpack.c.l.b16 %v2274
    %v2349 = vunpack.c.h.b16 %v2274
    %v2350 = vunpack.c.l.b16 %v2275
    %v2351 = vunpack.c.l.b16 %v2276
    %v2352 = vunpack.c.h.b16 %v2276
    %v2353 = vunpack.c.l.b16 %v2277
    %v2354 = vunpack.c.l.b16 %v2278
    %v2355 = vunpack.c.h.b16 %v2278
    %v2356 = vunpack.c.l.b16 %v2279
    %v2357 = vunpack.c.l.b16 %v2280
    %v2358 = vunpack.c.h.b16 %v2280
    %v2359 = vunpack.c.l.b16 %v2281
    %v2360 = vunpack.c.l.b16 %v2282
    %v2361 = vunpack.c.h.b16 %v2282
    %v2362 = vunpack.c.l.b16 %v2283
    %v2363 = vunpack.c.l.b16 %v2284
    %v2364 = vunpack.c.h.b16 %v2284
    %v2365 = vunpack.c.l.b16 %v2285
    %v2366 = vunpack.c.l.b16 %v2286
    %v2367 = vunpack.c.h.b16 %v2286
    %v2368 = vunpack.c.l.b16 %v2287
    %v2369 = vunpack.c.l.b16 %v2288
    %v2370 = vunpack.c.h.b16 %v2288
    %v2371 = vunpack.c.l.b16 %v2289
    %v2372 = vunpack.c.l.b16 %v2290
    %v2373 = vunpack.c.h.b16 %v2290
    %v2374 = vunpack.c.l.b16 %v2291
    %v2375 = vunpack.c.l.b16 %v2292
    %v2376 = vunpack.c.h.b16 %v2292
    %v2377 = vunpack.c.l.b16 %v2293
    %v2378 = vunpack.c.l.b16 %v2294
    %v2379 = vunpack.c.h.b16 %v2294
    %v2380 = vunpack.c.l.b16 %v2295
    %v2381 = vunpack.c.l.b16 %v2296
    %v2382 = vunpack.c.h.b16 %v2296
    %v2383 = vunpack.c.l.b16 %v2297
    %v2384 = vunpack.c.l.b16 %v2298
    %v2385 = vunpack.c.h.b16 %v2298
    %v2386 = vunpack.c.l.b16 %v2299
    %v2387 = vunpack.c.l.b16 %v2300
    %v2388 = vunpack.c.h.b16 %v2300
    %v2389 = vunpack.c.l.b16 %v2301
    %v2390 = vpack.c.b16 %v2345, %v2342
    %v2391 = vpack.c.b16 %v2346, %v2343
    %v2392 = vpack.c.b16 %v2347, %v2344
    %v2393 = vpack.c.b16 %v2351, %v2348
    %v2394 = vpack.c.b16 %v2352, %v2349
    %v2395 = vpack.c.b16 %v2353, %v2350
    %v2396 = vpack.c.b16 %v2357, %v2354
    %v2397 = vpack.c.b16 %v2358, %v2355
    %v2398 = vpack.c.b16 %v2359, %v2356
    %v2399 = vpack.c.b16 %v2363, %v2360
    %v2400 = vpack.c.b16 %v2364, %v2361
    %v2401 = vpack.c.b16 %v2365, %v2362
    %v2402 = vpack.c.b16 %v2369, %v2366
    %v2403 = vpack.c.b16 %v2370, %v2367
    %v2404 = vpack.c.b16 %v2371, %v2368
    %v2405 = vpack.c.b16 %v2375, %v2372
    %v2406 = vpack.c.b16 %v2376, %v2373
    %v2407 = vpack.c.b16 %v2377, %v2374
    %v2408 = vpack.c.b16 %v2381, %v2378
    %v2409 = vpack.c.b16 %v2382, %v2379
    %v2410 = vpack.c.b16 %v2383, %v2380
    %v2411 = vpack.c.b16 %v2387, %v2384
    %v2412 = vpack.c.b16 %v2388, %v2385
    %v2413 = vpack.c.b16 %v2389, %v2386
    %2438 = vmatprep.subr.bf16.mxu0 %v2412
    %2439 = vmatpush1.bf16.msra.mxu0 %v2411
    %2440 = vmatprep.subr.bf16.mxu0 %v2409
    %2441 = vmatpush1.bf16.msra.mxu0 %v2408
    %2442 = vmatprep.subr.bf16.mxu0 %v2406
    %2443 = vmatpush1.bf16.msra.mxu0 %v2405
    %2444 = vmatprep.subr.bf16.mxu0 %v2403
    %2445 = vmatpush1.bf16.msra.mxu0 %v2402
    %2446 = vmatprep.subr.bf16.mxu0 %v2400
    %2447 = vmatpush1.bf16.msra.mxu0 %v2399
    %2448 = vmatprep.subr.bf16.mxu0 %v2397
    %2449 = vmatpush1.bf16.msra.mxu0 %v2396
    %2450 = vmatprep.subr.bf16.mxu0 %v2394
    %2451 = vmatpush1.bf16.msra.mxu0 %v2393
    %2452 = vmatprep.subr.bf16.mxu0 %v2391
    %2453 = vmatpush1.bf16.msra.mxu0 %v2390
    %2454 = vmatprep.subr.bf16.mxu0 0
    %2455 = vmatpush2.bf16.msra.mxu0 0
    %2456 = vmatprep.subr.bf16.mxu0 0
    %2457 = vmatpush2.bf16.msra.mxu0 0
    %2458 = vmatprep.subr.bf16.mxu0 0
    %2459 = vmatpush2.bf16.msra.mxu0 0
    %2460 = vmatprep.subr.bf16.mxu0 0
    %2461 = vmatpush2.bf16.msra.mxu0 0
    %2462 = vmatprep.subr.bf16.mxu0 0
    %2463 = vmatpush2.bf16.msra.mxu0 0
    %2464 = vmatprep.subr.bf16.mxu0 0
    %2465 = vmatpush2.bf16.msra.mxu0 0
    %2466 = vmatprep.subr.bf16.mxu0 0
    %2467 = vmatpush2.bf16.msra.mxu0 0
    %2468 = vmatprep.subr.bf16.mxu0 0
    %2469 = vmatpush2.bf16.msra.mxu0 0
    %2470 = vmatprep.mubr.bf16.mxu0 0
    %2471 = vmatmul.mubr.bf16.gmra.mxu0 %v2306
    %v2472 = vpop.f32.mrf.mxu0
    %v2473 = vadd.f32 0.0, %v2472
    %v2474 = vpop.f32.mrf.mxu0
    %v2475 = vadd.f32 0.0, %v2474
    %v2476 = vpop.f32.mrf.mxu0
    %v2477 = vadd.f32 0.0, %v2476
    %v2478 = vpop.f32.mrf.mxu0
    %v2479 = vadd.f32 0.0, %v2478
    %2480 = vmatprep.mubr.bf16.mxu0 0
    %2481 = vmatmul.mubr.bf16.gmra.mxu0 %v2307
    %v2482 = vpop.f32.mrf.mxu0
    %v2483 = vadd.f32 0.0, %v2482
    %v2484 = vpop.f32.mrf.mxu0
    %v2485 = vadd.f32 0.0, %v2484
    %v2486 = vpop.f32.mrf.mxu0
    %v2487 = vadd.f32 0.0, %v2486
    %v2488 = vpop.f32.mrf.mxu0
    %v2489 = vadd.f32 0.0, %v2488
    %2490 = vdwg.mxu0
    %2491 = vmatprep.subr.bf16.mxu0 0
    %2492 = vmatpush1.bf16.msra.mxu0 %v2413
    %2493 = vmatprep.subr.bf16.mxu0 0
    %2494 = vmatpush1.bf16.msra.mxu0 %v2410
    %2495 = vmatprep.subr.bf16.mxu0 0
    %2496 = vmatpush1.bf16.msra.mxu0 %v2407
    %2497 = vmatprep.subr.bf16.mxu0 0
    %2498 = vmatpush1.bf16.msra.mxu0 %v2404
    %2499 = vmatprep.subr.bf16.mxu0 0
    %2500 = vmatpush1.bf16.msra.mxu0 %v2401
    %2501 = vmatprep.subr.bf16.mxu0 0
    %2502 = vmatpush1.bf16.msra.mxu0 %v2398
    %2503 = vmatprep.subr.bf16.mxu0 0
    %2504 = vmatpush1.bf16.msra.mxu0 %v2395
    %2505 = vmatprep.subr.bf16.mxu0 0
    %2506 = vmatpush1.bf16.msra.mxu0 %v2392
    %2507 = vmatprep.subr.bf16.mxu0 0
    %2508 = vmatpush2.bf16.msra.mxu0 0
    %2509 = vmatprep.subr.bf16.mxu0 0
    %2510 = vmatpush2.bf16.msra.mxu0 0
    %2511 = vmatprep.subr.bf16.mxu0 0
    %2512 = vmatpush2.bf16.msra.mxu0 0
    %2513 = vmatprep.subr.bf16.mxu0 0
    %2514 = vmatpush2.bf16.msra.mxu0 0
    %2515 = vmatprep.subr.bf16.mxu0 0
    %2516 = vmatpush2.bf16.msra.mxu0 0
    %2517 = vmatprep.subr.bf16.mxu0 0
    %2518 = vmatpush2.bf16.msra.mxu0 0
    %2519 = vmatprep.subr.bf16.mxu0 0
    %2520 = vmatpush2.bf16.msra.mxu0 0
    %2521 = vmatprep.subr.bf16.mxu0 0
    %2522 = vmatpush2.bf16.msra.mxu0 0
    %2523 = vmatprep.mubr.bf16.mxu0 0
    %2524 = vmatmul.mubr.bf16.gmra.mxu0 %v2306
    %v2525 = vpop.f32.mrf.mxu0
    %v2526 = vadd.f32 0.0, %v2525
    %v2527 = vpop.f32.mrf.mxu0
    %v2528 = vpop.f32.mrf.mxu0
    %v2529 = vadd.f32 0.0, %v2528
    %v2530 = vpop.f32.mrf.mxu0
    %2531 = vmatprep.mubr.bf16.mxu0 0
    %2532 = vmatmul.mubr.bf16.gmra.mxu0 %v2307
    %v2533 = vpop.f32.mrf.mxu0
    %v2534 = vadd.f32 0.0, %v2533
    %v2535 = vpop.f32.mrf.mxu0
    %v2536 = vpop.f32.mrf.mxu0
    %v2537 = vadd.f32 0.0, %v2536
    %v2538 = vpop.f32.mrf.mxu0
    %2539 = vdwg.mxu0
    %v2540 = vadd.f32 %v2218, %v2473
    %v2541 = vadd.f32 %v2219, %v2475
    %v2542 = vadd.f32 %v2220, %v2526
    %v2543 = vadd.f32 %v2221, %v2477
    %v2544 = vadd.f32 %v2222, %v2479
    %v2545 = vadd.f32 %v2223, %v2529
    %v2546 = vadd.f32 %v2224, %v2483
    %v2547 = vadd.f32 %v2225, %v2485
    %v2548 = vadd.f32 %v2226, %v2534
    %v2549 = vadd.f32 %v2227, %v2487
    %v2550 = vadd.f32 %v2228, %v2489
    %v2551 = vadd.f32 %v2229, %v2537
    %s2552 = scalar_lea.vmem [#allocation2], 1536
    %v2553 = vld [vmem:[%s2552] sm:$0xff]
    %v2554 = vld [vmem:[%s2552 + $0x8] sm:$0xf]
    %v2555 = vld [vmem:[%s2552 + $0xc] sm:$0xff]
    %v2556 = vld [vmem:[%s2552 + $0x14] sm:$0xf]
    %v2557 = vld [vmem:[%s2552 + $0x18] sm:$0xff]
    %v2558 = vld [vmem:[%s2552 + $0x20] sm:$0xf]
    %v2559 = vld [vmem:[%s2552 + $0x24] sm:$0xff]
    %v2560 = vld [vmem:[%s2552 + $0x2c] sm:$0xf]
    %v2561 = vld [vmem:[%s2552 + $0x30] sm:$0xff]
    %v2562 = vld [vmem:[%s2552 + $0x38] sm:$0xf]
    %v2563 = vld [vmem:[%s2552 + $0x3c] sm:$0xff]
    %v2564 = vld [vmem:[%s2552 + $0x44] sm:$0xf]
    %v2565 = vld [vmem:[%s2552 + $0x48] sm:$0xff]
    %v2566 = vld [vmem:[%s2552 + $0x50] sm:$0xf]
    %v2567 = vld [vmem:[%s2552 + $0x54] sm:$0xff]
    %v2568 = vld [vmem:[%s2552 + $0x5c] sm:$0xf]
    %v2569 = vld [vmem:[%s2552 + $0x60] sm:$0xff]
    %v2570 = vld [vmem:[%s2552 + $0x68] sm:$0xf]
    %v2571 = vld [vmem:[%s2552 + $0x6c] sm:$0xff]
    %v2572 = vld [vmem:[%s2552 + $0x74] sm:$0xf]
    %v2573 = vld [vmem:[%s2552 + $0x78] sm:$0xff]
    %v2574 = vld [vmem:[%s2552 + $0x80] sm:$0xf]
    %v2575 = vld [vmem:[%s2552 + $0x84] sm:$0xff]
    %v2576 = vld [vmem:[%s2552 + $0x8c] sm:$0xf]
    %v2577 = vld [vmem:[%s2552 + $0x90] sm:$0xff]
    %v2578 = vld [vmem:[%s2552 + $0x98] sm:$0xf]
    %v2579 = vld [vmem:[%s2552 + $0x9c] sm:$0xff]
    %v2580 = vld [vmem:[%s2552 + $0xa4] sm:$0xf]
    %v2581 = vld [vmem:[%s2552 + $0xa8] sm:$0xff]
    %v2582 = vld [vmem:[%s2552 + $0xb0] sm:$0xf]
    %v2583 = vld [vmem:[%s2552 + $0xb4] sm:$0xff]
    %v2584 = vld [vmem:[%s2552 + $0xbc] sm:$0xf]
    %v2587 = vunpack.c.l.b16 %v2230
    %v2588 = vunpack.c.l.b16 %v2231
    %v2589 = vpack.c.b16 %v2587, %v407
    %v2590 = vpack.c.b16 %v2588, %v409
    %v2625 = vunpack.c.l.b16 %v2553
    %v2626 = vunpack.c.h.b16 %v2553
    %v2627 = vunpack.c.l.b16 %v2554
    %v2628 = vunpack.c.l.b16 %v2555
    %v2629 = vunpack.c.h.b16 %v2555
    %v2630 = vunpack.c.l.b16 %v2556
    %v2631 = vunpack.c.l.b16 %v2557
    %v2632 = vunpack.c.h.b16 %v2557
    %v2633 = vunpack.c.l.b16 %v2558
    %v2634 = vunpack.c.l.b16 %v2559
    %v2635 = vunpack.c.h.b16 %v2559
    %v2636 = vunpack.c.l.b16 %v2560
    %v2637 = vunpack.c.l.b16 %v2561
    %v2638 = vunpack.c.h.b16 %v2561
    %v2639 = vunpack.c.l.b16 %v2562
    %v2640 = vunpack.c.l.b16 %v2563
    %v2641 = vunpack.c.h.b16 %v2563
    %v2642 = vunpack.c.l.b16 %v2564
    %v2643 = vunpack.c.l.b16 %v2565
    %v2644 = vunpack.c.h.b16 %v2565
    %v2645 = vunpack.c.l.b16 %v2566
    %v2646 = vunpack.c.l.b16 %v2567
    %v2647 = vunpack.c.h.b16 %v2567
    %v2648 = vunpack.c.l.b16 %v2568
    %v2649 = vunpack.c.l.b16 %v2569
    %v2650 = vunpack.c.h.b16 %v2569
    %v2651 = vunpack.c.l.b16 %v2570
    %v2652 = vunpack.c.l.b16 %v2571
    %v2653 = vunpack.c.h.b16 %v2571
    %v2654 = vunpack.c.l.b16 %v2572
    %v2655 = vunpack.c.l.b16 %v2573
    %v2656 = vunpack.c.h.b16 %v2573
    %v2657 = vunpack.c.l.b16 %v2574
    %v2658 = vunpack.c.l.b16 %v2575
    %v2659 = vunpack.c.h.b16 %v2575
    %v2660 = vunpack.c.l.b16 %v2576
    %v2661 = vunpack.c.l.b16 %v2577
    %v2662 = vunpack.c.h.b16 %v2577
    %v2663 = vunpack.c.l.b16 %v2578
    %v2664 = vunpack.c.l.b16 %v2579
    %v2665 = vunpack.c.h.b16 %v2579
    %v2666 = vunpack.c.l.b16 %v2580
    %v2667 = vunpack.c.l.b16 %v2581
    %v2668 = vunpack.c.h.b16 %v2581
    %v2669 = vunpack.c.l.b16 %v2582
    %v2670 = vunpack.c.l.b16 %v2583
    %v2671 = vunpack.c.h.b16 %v2583
    %v2672 = vunpack.c.l.b16 %v2584
    %v2673 = vpack.c.b16 %v2628, %v2625
    %v2674 = vpack.c.b16 %v2629, %v2626
    %v2675 = vpack.c.b16 %v2630, %v2627
    %v2676 = vpack.c.b16 %v2634, %v2631
    %v2677 = vpack.c.b16 %v2635, %v2632
    %v2678 = vpack.c.b16 %v2636, %v2633
    %v2679 = vpack.c.b16 %v2640, %v2637
    %v2680 = vpack.c.b16 %v2641, %v2638
    %v2681 = vpack.c.b16 %v2642, %v2639
    %v2682 = vpack.c.b16 %v2646, %v2643
    %v2683 = vpack.c.b16 %v2647, %v2644
    %v2684 = vpack.c.b16 %v2648, %v2645
    %v2685 = vpack.c.b16 %v2652, %v2649
    %v2686 = vpack.c.b16 %v2653, %v2650
    %v2687 = vpack.c.b16 %v2654, %v2651
    %v2688 = vpack.c.b16 %v2658, %v2655
    %v2689 = vpack.c.b16 %v2659, %v2656
    %v2690 = vpack.c.b16 %v2660, %v2657
    %v2691 = vpack.c.b16 %v2664, %v2661
    %v2692 = vpack.c.b16 %v2665, %v2662
    %v2693 = vpack.c.b16 %v2666, %v2663
    %v2694 = vpack.c.b16 %v2670, %v2667
    %v2695 = vpack.c.b16 %v2671, %v2668
    %v2696 = vpack.c.b16 %v2672, %v2669
    %2721 = vmatprep.subr.bf16.mxu0 %v2695
    %2722 = vmatpush1.bf16.msra.mxu0 %v2694
    %2723 = vmatprep.subr.bf16.mxu0 %v2692
    %2724 = vmatpush1.bf16.msra.mxu0 %v2691
    %2725 = vmatprep.subr.bf16.mxu0 %v2689
    %2726 = vmatpush1.bf16.msra.mxu0 %v2688
    %2727 = vmatprep.subr.bf16.mxu0 %v2686
    %2728 = vmatpush1.bf16.msra.mxu0 %v2685
    %2729 = vmatprep.subr.bf16.mxu0 %v2683
    %2730 = vmatpush1.bf16.msra.mxu0 %v2682
    %2731 = vmatprep.subr.bf16.mxu0 %v2680
    %2732 = vmatpush1.bf16.msra.mxu0 %v2679
    %2733 = vmatprep.subr.bf16.mxu0 %v2677
    %2734 = vmatpush1.bf16.msra.mxu0 %v2676
    %2735 = vmatprep.subr.bf16.mxu0 %v2674
    %2736 = vmatpush1.bf16.msra.mxu0 %v2673
    %2737 = vmatprep.subr.bf16.mxu0 0
    %2738 = vmatpush2.bf16.msra.mxu0 0
    %2739 = vmatprep.subr.bf16.mxu0 0
    %2740 = vmatpush2.bf16.msra.mxu0 0
    %2741 = vmatprep.subr.bf16.mxu0 0
    %2742 = vmatpush2.bf16.msra.mxu0 0
    %2743 = vmatprep.subr.bf16.mxu0 0
    %2744 = vmatpush2.bf16.msra.mxu0 0
    %2745 = vmatprep.subr.bf16.mxu0 0
    %2746 = vmatpush2.bf16.msra.mxu0 0
    %2747 = vmatprep.subr.bf16.mxu0 0
    %2748 = vmatpush2.bf16.msra.mxu0 0
    %2749 = vmatprep.subr.bf16.mxu0 0
    %2750 = vmatpush2.bf16.msra.mxu0 0
    %2751 = vmatprep.subr.bf16.mxu0 0
    %2752 = vmatpush2.bf16.msra.mxu0 0
    %2753 = vmatprep.mubr.bf16.mxu0 0
    %2754 = vmatmul.mubr.bf16.gmra.mxu0 %v2589
    %v2755 = vpop.f32.mrf.mxu0
    %v2756 = vadd.f32 0.0, %v2755
    %v2757 = vpop.f32.mrf.mxu0
    %v2758 = vadd.f32 0.0, %v2757
    %v2759 = vpop.f32.mrf.mxu0
    %v2760 = vadd.f32 0.0, %v2759
    %v2761 = vpop.f32.mrf.mxu0
    %v2762 = vadd.f32 0.0, %v2761
    %2763 = vmatprep.mubr.bf16.mxu0 0
    %2764 = vmatmul.mubr.bf16.gmra.mxu0 %v2590
    %v2765 = vpop.f32.mrf.mxu0
    %v2766 = vadd.f32 0.0, %v2765
    %v2767 = vpop.f32.mrf.mxu0
    %v2768 = vadd.f32 0.0, %v2767
    %v2769 = vpop.f32.mrf.mxu0
    %v2770 = vadd.f32 0.0, %v2769
    %v2771 = vpop.f32.mrf.mxu0
    %v2772 = vadd.f32 0.0, %v2771
    %2773 = vdwg.mxu0
    %2774 = vmatprep.subr.bf16.mxu0 0
    %2775 = vmatpush1.bf16.msra.mxu0 %v2696
    %2776 = vmatprep.subr.bf16.mxu0 0
    %2777 = vmatpush1.bf16.msra.mxu0 %v2693
    %2778 = vmatprep.subr.bf16.mxu0 0
    %2779 = vmatpush1.bf16.msra.mxu0 %v2690
    %2780 = vmatprep.subr.bf16.mxu0 0
    %2781 = vmatpush1.bf16.msra.mxu0 %v2687
    %2782 = vmatprep.subr.bf16.mxu0 0
    %2783 = vmatpush1.bf16.msra.mxu0 %v2684
    %2784 = vmatprep.subr.bf16.mxu0 0
    %2785 = vmatpush1.bf16.msra.mxu0 %v2681
    %2786 = vmatprep.subr.bf16.mxu0 0
    %2787 = vmatpush1.bf16.msra.mxu0 %v2678
    %2788 = vmatprep.subr.bf16.mxu0 0
    %2789 = vmatpush1.bf16.msra.mxu0 %v2675
    %2790 = vmatprep.subr.bf16.mxu0 0
    %2791 = vmatpush2.bf16.msra.mxu0 0
    %2792 = vmatprep.subr.bf16.mxu0 0
    %2793 = vmatpush2.bf16.msra.mxu0 0
    %2794 = vmatprep.subr.bf16.mxu0 0
    %2795 = vmatpush2.bf16.msra.mxu0 0
    %2796 = vmatprep.subr.bf16.mxu0 0
    %2797 = vmatpush2.bf16.msra.mxu0 0
    %2798 = vmatprep.subr.bf16.mxu0 0
    %2799 = vmatpush2.bf16.msra.mxu0 0
    %2800 = vmatprep.subr.bf16.mxu0 0
    %2801 = vmatpush2.bf16.msra.mxu0 0
    %2802 = vmatprep.subr.bf16.mxu0 0
    %2803 = vmatpush2.bf16.msra.mxu0 0
    %2804 = vmatprep.subr.bf16.mxu0 0
    %2805 = vmatpush2.bf16.msra.mxu0 0
    %2806 = vmatprep.mubr.bf16.mxu0 0
    %2807 = vmatmul.mubr.bf16.gmra.mxu0 %v2589
    %v2808 = vpop.f32.mrf.mxu0
    %v2809 = vadd.f32 0.0, %v2808
    %v2810 = vpop.f32.mrf.mxu0
    %v2811 = vpop.f32.mrf.mxu0
    %v2812 = vadd.f32 0.0, %v2811
    %v2813 = vpop.f32.mrf.mxu0
    %2814 = vmatprep.mubr.bf16.mxu0 0
    %2815 = vmatmul.mubr.bf16.gmra.mxu0 %v2590
    %v2816 = vpop.f32.mrf.mxu0
    %v2817 = vadd.f32 0.0, %v2816
    %v2818 = vpop.f32.mrf.mxu0
    %v2819 = vpop.f32.mrf.mxu0
    %v2820 = vadd.f32 0.0, %v2819
    %v2821 = vpop.f32.mrf.mxu0
    %2822 = vdwg.mxu0
    %v2823 = vadd.f32 %v2540, %v2756
    %v2824 = vadd.f32 %v2541, %v2758
    %v2825 = vadd.f32 %v2542, %v2809
    %v2826 = vadd.f32 %v2543, %v2760
    %v2827 = vadd.f32 %v2544, %v2762
    %v2828 = vadd.f32 %v2545, %v2812
    %v2829 = vadd.f32 %v2546, %v2766
    %v2830 = vadd.f32 %v2547, %v2768
    %v2831 = vadd.f32 %v2548, %v2817
    %v2832 = vadd.f32 %v2549, %v2770
    %v2833 = vadd.f32 %v2550, %v2772
    %v2834 = vadd.f32 %v2551, %v2820
    %v2835 = vld [vmem:[%s0 + $0x4] sm:$0xf]
    %v2836 = vld [vmem:[%s0 + $0x8] sm:$0xf]
    %v2837 = vld [vmem:[%s0 + $0xc] sm:$0x1]
    %v2838 = vld [vmem:[%s0 + $0x14] sm:$0xf]
    %v2839 = vld [vmem:[%s0 + $0x18] sm:$0xf]
    %v2840 = vld [vmem:[%s0 + $0x1c] sm:$0x1]
    %v2842 = vshrl.u32 %v2835, 16
    %v2844 = vrot.slane %v2842, 4
    %v2845 = vshll.u32 %v2835, 16
    %v2847 = vrot.slane %v2845, 5
    %v2848 = vor.u32 %v2844, %v2847
    %v2849 = vrot.slane %v2848, 4
    %v2851 = vshll.u32 %v2836, 16
    %v2853 = vrot.slane %v2851, 5
    %v2854 = vsel %vm82, %v2849, %v2853
    %v2855 = vshrl.u32 %v2836, 16
    %v2857 = vrot.slane %v2855, 4
    %v2858 = vor.u32 %v2857, %v2853
    %v2859 = vrot.slane %v2858, 4
    %v2861 = vshll.u32 %v2837, 16
    %v2863 = vrot.slane %v2861, 5
    %v2864 = vsel %vm82, %v2859, %v2863
    %v2866 = vshrl.u32 %v2838, 16
    %v2868 = vrot.slane %v2866, 4
    %v2869 = vshll.u32 %v2838, 16
    %v2871 = vrot.slane %v2869, 5
    %v2872 = vor.u32 %v2868, %v2871
    %v2873 = vrot.slane %v2872, 4
    %v2875 = vshll.u32 %v2839, 16
    %v2877 = vrot.slane %v2875, 5
    %v2878 = vsel %vm82, %v2873, %v2877
    %v2879 = vshrl.u32 %v2839, 16
    %v2881 = vrot.slane %v2879, 4
    %v2882 = vor.u32 %v2881, %v2877
    %v2883 = vrot.slane %v2882, 4
    %v2885 = vshll.u32 %v2840, 16
    %v2887 = vrot.slane %v2885, 5
    %v2888 = vsel %vm82, %v2883, %v2887
    %s2889 = scalar_lea.vmem [#allocation2], 1728
    %v2890 = vld [vmem:[%s2889] sm:$0xff]
    %v2891 = vld [vmem:[%s2889 + $0x8] sm:$0xf]
    %v2892 = vld [vmem:[%s2889 + $0xc] sm:$0xff]
    %v2893 = vld [vmem:[%s2889 + $0x14] sm:$0xf]
    %v2894 = vld [vmem:[%s2889 + $0x18] sm:$0xff]
    %v2895 = vld [vmem:[%s2889 + $0x20] sm:$0xf]
    %v2896 = vld [vmem:[%s2889 + $0x24] sm:$0xff]
    %v2897 = vld [vmem:[%s2889 + $0x2c] sm:$0xf]
    %v2898 = vld [vmem:[%s2889 + $0x30] sm:$0xff]
    %v2899 = vld [vmem:[%s2889 + $0x38] sm:$0xf]
    %v2900 = vld [vmem:[%s2889 + $0x3c] sm:$0xff]
    %v2901 = vld [vmem:[%s2889 + $0x44] sm:$0xf]
    %v2902 = vld [vmem:[%s2889 + $0x48] sm:$0xff]
    %v2903 = vld [vmem:[%s2889 + $0x50] sm:$0xf]
    %v2904 = vld [vmem:[%s2889 + $0x54] sm:$0xff]
    %v2905 = vld [vmem:[%s2889 + $0x5c] sm:$0xf]
    %v2906 = vld [vmem:[%s2889 + $0x60] sm:$0xff]
    %v2907 = vld [vmem:[%s2889 + $0x68] sm:$0xf]
    %v2908 = vld [vmem:[%s2889 + $0x6c] sm:$0xff]
    %v2909 = vld [vmem:[%s2889 + $0x74] sm:$0xf]
    %v2910 = vld [vmem:[%s2889 + $0x78] sm:$0xff]
    %v2911 = vld [vmem:[%s2889 + $0x80] sm:$0xf]
    %v2912 = vld [vmem:[%s2889 + $0x84] sm:$0xff]
    %v2913 = vld [vmem:[%s2889 + $0x8c] sm:$0xf]
    %v2914 = vld [vmem:[%s2889 + $0x90] sm:$0xff]
    %v2915 = vld [vmem:[%s2889 + $0x98] sm:$0xf]
    %v2916 = vld [vmem:[%s2889 + $0x9c] sm:$0xff]
    %v2917 = vld [vmem:[%s2889 + $0xa4] sm:$0xf]
    %v2918 = vld [vmem:[%s2889 + $0xa8] sm:$0xff]
    %v2919 = vld [vmem:[%s2889 + $0xb0] sm:$0xf]
    %v2920 = vld [vmem:[%s2889 + $0xb4] sm:$0xff]
    %v2921 = vld [vmem:[%s2889 + $0xbc] sm:$0xf]
    %v2922 = vunpack.c.l.b16 %v2854
    %v2923 = vunpack.c.l.b16 %v2864
    %v2924 = vunpack.c.l.b16 %v2878
    %v2925 = vunpack.c.l.b16 %v2888
    %v2926 = vpack.c.b16 %v2923, %v2922
    %v2927 = vpack.c.b16 %v2925, %v2924
    %v2962 = vunpack.c.l.b16 %v2890
    %v2963 = vunpack.c.h.b16 %v2890
    %v2964 = vunpack.c.l.b16 %v2891
    %v2965 = vunpack.c.l.b16 %v2892
    %v2966 = vunpack.c.h.b16 %v2892
    %v2967 = vunpack.c.l.b16 %v2893
    %v2968 = vunpack.c.l.b16 %v2894
    %v2969 = vunpack.c.h.b16 %v2894
    %v2970 = vunpack.c.l.b16 %v2895
    %v2971 = vunpack.c.l.b16 %v2896
    %v2972 = vunpack.c.h.b16 %v2896
    %v2973 = vunpack.c.l.b16 %v2897
    %v2974 = vunpack.c.l.b16 %v2898
    %v2975 = vunpack.c.h.b16 %v2898
    %v2976 = vunpack.c.l.b16 %v2899
    %v2977 = vunpack.c.l.b16 %v2900
    %v2978 = vunpack.c.h.b16 %v2900
    %v2979 = vunpack.c.l.b16 %v2901
    %v2980 = vunpack.c.l.b16 %v2902
    %v2981 = vunpack.c.h.b16 %v2902
    %v2982 = vunpack.c.l.b16 %v2903
    %v2983 = vunpack.c.l.b16 %v2904
    %v2984 = vunpack.c.h.b16 %v2904
    %v2985 = vunpack.c.l.b16 %v2905
    %v2986 = vunpack.c.l.b16 %v2906
    %v2987 = vunpack.c.h.b16 %v2906
    %v2988 = vunpack.c.l.b16 %v2907
    %v2989 = vunpack.c.l.b16 %v2908
    %v2990 = vunpack.c.h.b16 %v2908
    %v2991 = vunpack.c.l.b16 %v2909
    %v2992 = vunpack.c.l.b16 %v2910
    %v2993 = vunpack.c.h.b16 %v2910
    %v2994 = vunpack.c.l.b16 %v2911
    %v2995 = vunpack.c.l.b16 %v2912
    %v2996 = vunpack.c.h.b16 %v2912
    %v2997 = vunpack.c.l.b16 %v2913
    %v2998 = vunpack.c.l.b16 %v2914
    %v2999 = vunpack.c.h.b16 %v2914
    %v3000 = vunpack.c.l.b16 %v2915
    %v3001 = vunpack.c.l.b16 %v2916
    %v3002 = vunpack.c.h.b16 %v2916
    %v3003 = vunpack.c.l.b16 %v2917
    %v3004 = vunpack.c.l.b16 %v2918
    %v3005 = vunpack.c.h.b16 %v2918
    %v3006 = vunpack.c.l.b16 %v2919
    %v3007 = vunpack.c.l.b16 %v2920
    %v3008 = vunpack.c.h.b16 %v2920
    %v3009 = vunpack.c.l.b16 %v2921
    %v3010 = vpack.c.b16 %v2965, %v2962
    %v3011 = vpack.c.b16 %v2966, %v2963
    %v3012 = vpack.c.b16 %v2967, %v2964
    %v3013 = vpack.c.b16 %v2971, %v2968
    %v3014 = vpack.c.b16 %v2972, %v2969
    %v3015 = vpack.c.b16 %v2973, %v2970
    %v3016 = vpack.c.b16 %v2977, %v2974
    %v3017 = vpack.c.b16 %v2978, %v2975
    %v3018 = vpack.c.b16 %v2979, %v2976
    %v3019 = vpack.c.b16 %v2983, %v2980
    %v3020 = vpack.c.b16 %v2984, %v2981
    %v3021 = vpack.c.b16 %v2985, %v2982
    %v3022 = vpack.c.b16 %v2989, %v2986
    %v3023 = vpack.c.b16 %v2990, %v2987
    %v3024 = vpack.c.b16 %v2991, %v2988
    %v3025 = vpack.c.b16 %v2995, %v2992
    %v3026 = vpack.c.b16 %v2996, %v2993
    %v3027 = vpack.c.b16 %v2997, %v2994
    %v3028 = vpack.c.b16 %v3001, %v2998
    %v3029 = vpack.c.b16 %v3002, %v2999
    %v3030 = vpack.c.b16 %v3003, %v3000
    %v3031 = vpack.c.b16 %v3007, %v3004
    %v3032 = vpack.c.b16 %v3008, %v3005
    %v3033 = vpack.c.b16 %v3009, %v3006
    %3058 = vmatprep.subr.bf16.mxu0 %v3032
    %3059 = vmatpush1.bf16.msra.mxu0 %v3031
    %3060 = vmatprep.subr.bf16.mxu0 %v3029
    %3061 = vmatpush1.bf16.msra.mxu0 %v3028
    %3062 = vmatprep.subr.bf16.mxu0 %v3026
    %3063 = vmatpush1.bf16.msra.mxu0 %v3025
    %3064 = vmatprep.subr.bf16.mxu0 %v3023
    %3065 = vmatpush1.bf16.msra.mxu0 %v3022
    %3066 = vmatprep.subr.bf16.mxu0 %v3020
    %3067 = vmatpush1.bf16.msra.mxu0 %v3019
    %3068 = vmatprep.subr.bf16.mxu0 %v3017
    %3069 = vmatpush1.bf16.msra.mxu0 %v3016
    %3070 = vmatprep.subr.bf16.mxu0 %v3014
    %3071 = vmatpush1.bf16.msra.mxu0 %v3013
    %3072 = vmatprep.subr.bf16.mxu0 %v3011
    %3073 = vmatpush1.bf16.msra.mxu0 %v3010
    %3074 = vmatprep.subr.bf16.mxu0 0
    %3075 = vmatpush2.bf16.msra.mxu0 0
    %3076 = vmatprep.subr.bf16.mxu0 0
    %3077 = vmatpush2.bf16.msra.mxu0 0
    %3078 = vmatprep.subr.bf16.mxu0 0
    %3079 = vmatpush2.bf16.msra.mxu0 0
    %3080 = vmatprep.subr.bf16.mxu0 0
    %3081 = vmatpush2.bf16.msra.mxu0 0
    %3082 = vmatprep.subr.bf16.mxu0 0
    %3083 = vmatpush2.bf16.msra.mxu0 0
    %3084 = vmatprep.subr.bf16.mxu0 0
    %3085 = vmatpush2.bf16.msra.mxu0 0
    %3086 = vmatprep.subr.bf16.mxu0 0
    %3087 = vmatpush2.bf16.msra.mxu0 0
    %3088 = vmatprep.subr.bf16.mxu0 0
    %3089 = vmatpush2.bf16.msra.mxu0 0
    %3090 = vmatprep.mubr.bf16.mxu0 0
    %3091 = vmatmul.mubr.bf16.gmra.mxu0 %v2926
    %v3092 = vpop.f32.mrf.mxu0
    %v3093 = vadd.f32 0.0, %v3092
    %v3094 = vpop.f32.mrf.mxu0
    %v3095 = vadd.f32 0.0, %v3094
    %v3096 = vpop.f32.mrf.mxu0
    %v3097 = vadd.f32 0.0, %v3096
    %v3098 = vpop.f32.mrf.mxu0
    %v3099 = vadd.f32 0.0, %v3098
    %3100 = vmatprep.mubr.bf16.mxu0 0
    %3101 = vmatmul.mubr.bf16.gmra.mxu0 %v2927
    %v3102 = vpop.f32.mrf.mxu0
    %v3103 = vadd.f32 0.0, %v3102
    %v3104 = vpop.f32.mrf.mxu0
    %v3105 = vadd.f32 0.0, %v3104
    %v3106 = vpop.f32.mrf.mxu0
    %v3107 = vadd.f32 0.0, %v3106
    %v3108 = vpop.f32.mrf.mxu0
    %v3109 = vadd.f32 0.0, %v3108
    %3110 = vdwg.mxu0
    %3111 = vmatprep.subr.bf16.mxu0 0
    %3112 = vmatpush1.bf16.msra.mxu0 %v3033
    %3113 = vmatprep.subr.bf16.mxu0 0
    %3114 = vmatpush1.bf16.msra.mxu0 %v3030
    %3115 = vmatprep.subr.bf16.mxu0 0
    %3116 = vmatpush1.bf16.msra.mxu0 %v3027
    %3117 = vmatprep.subr.bf16.mxu0 0
    %3118 = vmatpush1.bf16.msra.mxu0 %v3024
    %3119 = vmatprep.subr.bf16.mxu0 0
    %3120 = vmatpush1.bf16.msra.mxu0 %v3021
    %3121 = vmatprep.subr.bf16.mxu0 0
    %3122 = vmatpush1.bf16.msra.mxu0 %v3018
    %3123 = vmatprep.subr.bf16.mxu0 0
    %3124 = vmatpush1.bf16.msra.mxu0 %v3015
    %3125 = vmatprep.subr.bf16.mxu0 0
    %3126 = vmatpush1.bf16.msra.mxu0 %v3012
    %3127 = vmatprep.subr.bf16.mxu0 0
    %3128 = vmatpush2.bf16.msra.mxu0 0
    %3129 = vmatprep.subr.bf16.mxu0 0
    %3130 = vmatpush2.bf16.msra.mxu0 0
    %3131 = vmatprep.subr.bf16.mxu0 0
    %3132 = vmatpush2.bf16.msra.mxu0 0
    %3133 = vmatprep.subr.bf16.mxu0 0
    %3134 = vmatpush2.bf16.msra.mxu0 0
    %3135 = vmatprep.subr.bf16.mxu0 0
    %3136 = vmatpush2.bf16.msra.mxu0 0
    %3137 = vmatprep.subr.bf16.mxu0 0
    %3138 = vmatpush2.bf16.msra.mxu0 0
    %3139 = vmatprep.subr.bf16.mxu0 0
    %3140 = vmatpush2.bf16.msra.mxu0 0
    %3141 = vmatprep.subr.bf16.mxu0 0
    %3142 = vmatpush2.bf16.msra.mxu0 0
    %3143 = vmatprep.mubr.bf16.mxu0 0
    %3144 = vmatmul.mubr.bf16.gmra.mxu0 %v2926
    %v3145 = vpop.f32.mrf.mxu0
    %v3146 = vadd.f32 0.0, %v3145
    %v3147 = vpop.f32.mrf.mxu0
    %v3148 = vpop.f32.mrf.mxu0
    %v3149 = vadd.f32 0.0, %v3148
    %v3150 = vpop.f32.mrf.mxu0
    %3151 = vmatprep.mubr.bf16.mxu0 0
    %3152 = vmatmul.mubr.bf16.gmra.mxu0 %v2927
    %v3153 = vpop.f32.mrf.mxu0
    %v3154 = vadd.f32 0.0, %v3153
    %v3155 = vpop.f32.mrf.mxu0
    %v3156 = vpop.f32.mrf.mxu0
    %v3157 = vadd.f32 0.0, %v3156
    %v3158 = vpop.f32.mrf.mxu0
    %3159 = vdwg.mxu0
    %v3160 = vadd.f32 %v2823, %v3093
    %v3161 = vadd.f32 %v2824, %v3095
    %v3162 = vadd.f32 %v2825, %v3146
    %v3163 = vadd.f32 %v2826, %v3097
    %v3164 = vadd.f32 %v2827, %v3099
    %v3165 = vadd.f32 %v2828, %v3149
    %v3166 = vadd.f32 %v2829, %v3103
    %v3167 = vadd.f32 %v2830, %v3105
    %v3168 = vadd.f32 %v2831, %v3154
    %v3169 = vadd.f32 %v2832, %v3107
    %v3170 = vadd.f32 %v2833, %v3109
    %v3171 = vadd.f32 %v2834, %v3157
    %v3172 = vld [vmem:[%s2] sm:$0x7]
    %v3174 = vlaneseq
    %v3175 = vshrl.u32 %v3174, 7
    %v3176 = vsub.s32 0, %v3175
    %v3177 = vrot.slane %v3172, %v3176
    %v3178 = vlaneseq
    %v3179 = vshrl.u32 %v3178, 7
    %v3180 = vsub.s32 1, %v3179
    %v3181 = vrot.slane %v3172, %v3180
    %v3182 = vlaneseq
    %v3183 = vshrl.u32 %v3182, 7
    %v3184 = vsub.s32 2, %v3183
    %v3185 = vrot.slane %v3172, %v3184
    %v3189 = vadd.f32 %v3160, %v3177
    %v3190 = vadd.f32 %v3161, %v3181
    %v3191 = vadd.f32 %v3162, %v3185
    %v3192 = vadd.f32 %v3163, %v3177
    %v3193 = vadd.f32 %v3164, %v3181
    %v3194 = vadd.f32 %v3165, %v3185
    %v3195 = vadd.f32 %v3166, %v3177
    %v3196 = vadd.f32 %v3167, %v3181
    %v3197 = vadd.f32 %v3168, %v3185
    %v3198 = vadd.f32 %v3169, %v3177
    %v3199 = vadd.f32 %v3170, %v3181
    %v3200 = vadd.f32 %v3171, %v3185
    %v3201 = vmax.f32 %v3189, 0.0
    %v3202 = vmax.f32 %v3190, 0.0
    %v3203 = vmax.f32 %v3191, 0.0
    %v3204 = vmax.f32 %v3192, 0.0
    %v3205 = vmax.f32 %v3193, 0.0
    %v3206 = vmax.f32 %v3194, 0.0
    %v3207 = vmax.f32 %v3195, 0.0
    %v3208 = vmax.f32 %v3196, 0.0
    %v3209 = vmax.f32 %v3197, 0.0
    %v3210 = vmax.f32 %v3198, 0.0
    %v3211 = vmax.f32 %v3199, 0.0
    %v3212 = vmax.f32 %v3200, 0.0
    %v3213 = vld [vmem:[%s3] sm:$0xff]
    %v3214 = vld [vmem:[%s3 + $0x8] sm:$0xff]
    %v3215 = vld [vmem:[%s3 + $0x10] sm:$0xff]
    %v3216 = vld [vmem:[%s3 + $0x18] sm:$0xff]
    %v3217 = vld [vmem:[%s3 + $0x20] sm:$0xff]
    %v3218 = vld [vmem:[%s3 + $0x28] sm:$0xff]
    %v3219 = vmul.f32 %v3201, %v3213
    %v3220 = vmul.f32 %v3202, %v3214
    %v3221 = vmul.f32 %v3203, %v3215
    %v3222 = vmul.f32 %v3204, %v3216
    %v3223 = vmul.f32 %v3205, %v3217
    %v3224 = vmul.f32 %v3206, %v3218
    %v3225 = vmul.f32 %v3207, %v3213
    %v3226 = vmul.f32 %v3208, %v3214
    %v3227 = vmul.f32 %v3209, %v3215
    %v3228 = vmul.f32 %v3210, %v3216
    %v3229 = vmul.f32 %v3211, %v3217
    %v3230 = vmul.f32 %v3212, %v3218
    %v3231 = vmax.f32 %v3219, %v3222
    %v3232 = vrot.slane %v3231, 4
    %v3233 = vmax.f32 %v3231, %v3232
    %v3234 = vrot.slane %v3233, 2
    %v3235 = vmax.f32 %v3233, %v3234
    %v3236 = vrot.slane %v3235, 1
    %v3237 = vmax.f32 %v3235, %v3236
    %v3238 = vmax.f32 %v3220, %v3223
    %v3239 = vrot.slane %v3238, 4
    %v3240 = vmax.f32 %v3238, %v3239
    %v3241 = vrot.slane %v3240, 2
    %v3242 = vmax.f32 %v3240, %v3241
    %v3243 = vrot.slane %v3242, 1
    %v3244 = vmax.f32 %v3242, %v3243
    %v3245 = vmax.f32 %v3221, %v3224
    %v3246 = vrot.slane %v3245, 4
    %v3247 = vmax.f32 %v3245, %v3246
    %v3248 = vrot.slane %v3247, 2
    %v3249 = vmax.f32 %v3247, %v3248
    %v3250 = vrot.slane %v3249, 1
    %v3251 = vmax.f32 %v3249, %v3250
    %v3252 = vmax.f32 %v3225, %v3228
    %v3253 = vrot.slane %v3252, 4
    %v3254 = vmax.f32 %v3252, %v3253
    %v3255 = vrot.slane %v3254, 2
    %v3256 = vmax.f32 %v3254, %v3255
    %v3257 = vrot.slane %v3256, 1
    %v3258 = vmax.f32 %v3256, %v3257
    %v3259 = vmax.f32 %v3226, %v3229
    %v3260 = vrot.slane %v3259, 4
    %v3261 = vmax.f32 %v3259, %v3260
    %v3262 = vrot.slane %v3261, 2
    %v3263 = vmax.f32 %v3261, %v3262
    %v3264 = vrot.slane %v3263, 1
    %v3265 = vmax.f32 %v3263, %v3264
    %v3266 = vmax.f32 %v3227, %v3230
    %v3267 = vrot.slane %v3266, 4
    %v3268 = vmax.f32 %v3266, %v3267
    %v3269 = vrot.slane %v3268, 2
    %v3270 = vmax.f32 %v3268, %v3269
    %v3271 = vrot.slane %v3270, 1
    %v3272 = vmax.f32 %v3270, %v3271
    %v3279 = vcombine.low %v3237, %v3244
    %v3281 = vunpack.c.l.s4 1983009808
    %v3282 = vunpack.c.0.s8 %v3281
    %v3283 = vlaneseq
    %v3284 = vshrl.u32 %v3283, 7
    %v3285 = vsub.s32 %v3282, %v3284
    %v3286 = vrot.slane %v3279, %v3285
    %v3288 = vunpack.c.l.s4 1983009808
    %v3289 = vunpack.c.0.s8 %v3288
    %v3290 = vlaneseq
    %v3291 = vshrl.u32 %v3290, 7
    %v3292 = vsub.s32 %v3289, %v3291
    %v3293 = vrot.slane %v3251, %v3292
    %v3294 = vcombine.low %v3286, %v3293
    %v3295 = vcombine.low %v3258, %v3265
    %v3297 = vunpack.c.l.s4 1983009808
    %v3298 = vunpack.c.0.s8 %v3297
    %v3299 = vlaneseq
    %v3300 = vshrl.u32 %v3299, 7
    %v3301 = vsub.s32 %v3298, %v3300
    %v3302 = vrot.slane %v3295, %v3301
    %v3304 = vunpack.c.l.s4 1983009808
    %v3305 = vunpack.c.0.s8 %v3304
    %v3306 = vlaneseq
    %v3307 = vshrl.u32 %v3306, 7
    %v3308 = vsub.s32 %v3305, %v3307
    %v3309 = vrot.slane %v3272, %v3308
    %v3310 = vcombine.low %v3302, %v3309
    %vm3311 = vcmask 1044484
    %v3312 = vsel %vm3311, %v3294, %v3294
    %vm3313 = vcmask 1046534
    %v3314 = vsel %vm3313, %v3294, %v3312
    %v3315 = vrot.slane %v3310, 7
    %vm3316 = vcmask 1041409
    %v3317 = vsel %vm3316, %v3315, %v3314
    %vm3318 = vcmask 1043459
    %v3319 = vsel %vm3318, %v3315, %v3317
    %vm3320 = vcmask 1045509
    %v3321 = vsel %vm3320, %v3315, %v3319
    %vm3322 = vcmask 1047559
    %v3323 = vsel %vm3322, %v3315, %v3321
    %3325 = vst [vmem:[#allocation5] sm:$0x3f] %v3323
    %v3326 = vld [vmem:[%s4] sm:$0xff]
    %v3327 = vld [vmem:[%s4 + $0x8] sm:$0xff]
    %v3328 = vld [vmem:[%s4 + $0x10] sm:$0xff]
    %v3329 = vld [vmem:[%s4 + $0x18] sm:$0xff]
    %v3330 = vld [vmem:[%s4 + $0x20] sm:$0xff]
    %v3331 = vld [vmem:[%s4 + $0x28] sm:$0xff]
    %v3332 = vld [vmem:[%s4 + $0x30] sm:$0xff]
    %v3333 = vld [vmem:[%s4 + $0x38] sm:$0xff]
    %v3334 = vld [vmem:[%s4 + $0x40] sm:$0xff]
    %v3335 = vld [vmem:[%s4 + $0x48] sm:$0xff]
    %v3336 = vld [vmem:[%s4 + $0x50] sm:$0xff]
    %v3337 = vld [vmem:[%s4 + $0x58] sm:$0xff]
    %v3338 = vld [vmem:[%s4 + $0x60] sm:$0xff]
    %v3339 = vld [vmem:[%s4 + $0x68] sm:$0xff]
    %v3340 = vld [vmem:[%s4 + $0x70] sm:$0xff]
    %v3341 = vld [vmem:[%s4 + $0x78] sm:$0xff]
    %v3342 = vld [vmem:[%s4 + $0x80] sm:$0xff]
    %v3343 = vld [vmem:[%s4 + $0x88] sm:$0xff]
    %v3344 = vld [vmem:[%s4 + $0x90] sm:$0xff]
    %v3345 = vld [vmem:[%s4 + $0x98] sm:$0xff]
    %v3346 = vld [vmem:[%s4 + $0xa0] sm:$0xff]
    %v3347 = vld [vmem:[%s4 + $0xa8] sm:$0xff]
    %v3348 = vld [vmem:[%s4 + $0xb0] sm:$0xff]
    %v3349 = vld [vmem:[%s4 + $0xb8] sm:$0xff]
    %v3350 = vld [vmem:[%s4 + $0xc0] sm:$0xff]
    %v3351 = vld [vmem:[%s4 + $0xc8] sm:$0xff]
    %v3352 = vld [vmem:[%s4 + $0xd0] sm:$0xff]
    %v3353 = vld [vmem:[%s4 + $0xd8] sm:$0xff]
    %v3354 = vld [vmem:[%s4 + $0xe0] sm:$0xff]
    %v3355 = vld [vmem:[%s4 + $0xe8] sm:$0xff]
    %v3356 = vld [vmem:[%s4 + $0xf0] sm:$0xff]
    %v3357 = vld [vmem:[%s4 + $0xf8] sm:$0xff]
    %v3358 = vld [vmem:[%s4 + $0x100] sm:$0xff]
    %v3359 = vld [vmem:[%s4 + $0x108] sm:$0xff]
    %v3360 = vld [vmem:[%s4 + $0x110] sm:$0xff]
    %v3361 = vld [vmem:[%s4 + $0x118] sm:$0xff]
    %v3362 = vld [vmem:[%s4 + $0x120] sm:$0xff]
    %v3363 = vld [vmem:[%s4 + $0x128] sm:$0xff]
    %v3364 = vld [vmem:[%s4 + $0x130] sm:$0xff]
    %v3365 = vld [vmem:[%s4 + $0x138] sm:$0xff]
    %v3366 = vld [vmem:[%s4 + $0x140] sm:$0xff]
    %v3367 = vld [vmem:[%s4 + $0x148] sm:$0xff]
    %v3368 = vld [vmem:[%s4 + $0x150] sm:$0xff]
    %v3369 = vld [vmem:[%s4 + $0x158] sm:$0xff]
    %v3370 = vld [vmem:[%s4 + $0x160] sm:$0xff]
    %v3371 = vld [vmem:[%s4 + $0x168] sm:$0xff]
    %v3372 = vld [vmem:[%s4 + $0x170] sm:$0xff]
    %v3373 = vld [vmem:[%s4 + $0x178] sm:$0xff]
    %v3374 = vld [vmem:[%s5] sm:$0x1]
    %v3376 = vlaneseq
    %v3377 = vshrl.u32 %v3376, 7
    %v3378 = vsub.s32 0, %v3377
    %v3379 = vrot.slane %v3374, %v3378
    %v3381 = vsel %vm3316, %v3258, %v3237
    %v3382 = vsel %vm3316, %v3265, %v3244
    %v3383 = vsel %vm3316, %v3272, %v3251
    %3387 = vmatprep.subr.mxu0 0.0
    %3388 = vmatpush1.msra.mxu0 %v3341
    %3389 = vmatprep.subr.mxu0 0.0
    %3390 = vmatpush1.msra.mxu0 %v3340
    %3391 = vmatprep.subr.mxu0 0.0
    %3392 = vmatpush1.msra.mxu0 %v3339
    %3393 = vmatprep.subr.mxu0 0.0
    %3394 = vmatpush1.msra.mxu0 %v3338
    %3395 = vmatprep.subr.mxu0 0.0
    %3396 = vmatpush1.msra.mxu0 %v3337
    %3397 = vmatprep.subr.mxu0 0.0
    %3398 = vmatpush1.msra.mxu0 %v3336
    %3399 = vmatprep.subr.mxu0 0.0
    %3400 = vmatpush1.msra.mxu0 %v3335
    %3401 = vmatprep.subr.mxu0 0.0
    %3402 = vmatpush1.msra.mxu0 %v3334
    %3403 = vmatprep.subr.mxu0 0.0
    %3404 = vmatpush1.msra.mxu0 %v3333
    %3405 = vmatprep.subr.mxu0 0.0
    %3406 = vmatpush1.msra.mxu0 %v3332
    %3407 = vmatprep.subr.mxu0 0.0
    %3408 = vmatpush1.msra.mxu0 %v3331
    %3409 = vmatprep.subr.mxu0 0.0
    %3410 = vmatpush1.msra.mxu0 %v3330
    %3411 = vmatprep.subr.mxu0 0.0
    %3412 = vmatpush1.msra.mxu0 %v3329
    %3413 = vmatprep.subr.mxu0 0.0
    %3414 = vmatpush1.msra.mxu0 %v3328
    %3415 = vmatprep.subr.mxu0 0.0
    %3416 = vmatpush1.msra.mxu0 %v3327
    %3417 = vmatprep.subr.mxu0 0.0
    %3418 = vmatpush1.msra.mxu0 %v3326
    %3419 = vmatprep.subr.mxu0 0.0
    %3420 = vmatpush2.msra.mxu0 %v3357
    %3421 = vmatprep.subr.mxu0 0.0
    %3422 = vmatpush2.msra.mxu0 %v3356
    %3423 = vmatprep.subr.mxu0 0.0
    %3424 = vmatpush2.msra.mxu0 %v3355
    %3425 = vmatprep.subr.mxu0 0.0
    %3426 = vmatpush2.msra.mxu0 %v3354
    %3427 = vmatprep.subr.mxu0 0.0
    %3428 = vmatpush2.msra.mxu0 %v3353
    %3429 = vmatprep.subr.mxu0 0.0
    %3430 = vmatpush2.msra.mxu0 %v3352
    %3431 = vmatprep.subr.mxu0 0.0
    %3432 = vmatpush2.msra.mxu0 %v3351
    %3433 = vmatprep.subr.mxu0 0.0
    %3434 = vmatpush2.msra.mxu0 %v3350
    %3435 = vmatprep.subr.mxu0 0.0
    %3436 = vmatpush2.msra.mxu0 %v3349
    %3437 = vmatprep.subr.mxu0 0.0
    %3438 = vmatpush2.msra.mxu0 %v3348
    %3439 = vmatprep.subr.mxu0 0.0
    %3440 = vmatpush2.msra.mxu0 %v3347
    %3441 = vmatprep.subr.mxu0 0.0
    %3442 = vmatpush2.msra.mxu0 %v3346
    %3443 = vmatprep.subr.mxu0 0.0
    %3444 = vmatpush2.msra.mxu0 %v3345
    %3445 = vmatprep.subr.mxu0 0.0
    %3446 = vmatpush2.msra.mxu0 %v3344
    %3447 = vmatprep.subr.mxu0 0.0
    %3448 = vmatpush2.msra.mxu0 %v3343
    %3449 = vmatprep.subr.mxu0 0.0
    %3450 = vmatpush2.msra.mxu0 %v3342
    %3451 = vmatprep.mubr.f32.mxu0 %v3382
    %3452 = vmatmul.mubr.f32.gmra.mxu0 %v3381
    %v3453 = vpop.f32.mrf.mxu0
    %v3454 = vadd.f32 %v3379, %v3453
    %v3455 = vpop.f32.mrf.mxu0
    %3456 = vdwg.mxu0
    %3457 = vmatprep.subr.mxu0 0.0
    %3458 = vmatpush1.msra.mxu0 %v3373
    %3459 = vmatprep.subr.mxu0 0.0
    %3460 = vmatpush1.msra.mxu0 %v3372
    %3461 = vmatprep.subr.mxu0 0.0
    %3462 = vmatpush1.msra.mxu0 %v3371
    %3463 = vmatprep.subr.mxu0 0.0
    %3464 = vmatpush1.msra.mxu0 %v3370
    %3465 = vmatprep.subr.mxu0 0.0
    %3466 = vmatpush1.msra.mxu0 %v3369
    %3467 = vmatprep.subr.mxu0 0.0
    %3468 = vmatpush1.msra.mxu0 %v3368
    %3469 = vmatprep.subr.mxu0 0.0
    %3470 = vmatpush1.msra.mxu0 %v3367
    %3471 = vmatprep.subr.mxu0 0.0
    %3472 = vmatpush1.msra.mxu0 %v3366
    %3473 = vmatprep.subr.mxu0 0.0
    %3474 = vmatpush1.msra.mxu0 %v3365
    %3475 = vmatprep.subr.mxu0 0.0
    %3476 = vmatpush1.msra.mxu0 %v3364
    %3477 = vmatprep.subr.mxu0 0.0
    %3478 = vmatpush1.msra.mxu0 %v3363
    %3479 = vmatprep.subr.mxu0 0.0
    %3480 = vmatpush1.msra.mxu0 %v3362
    %3481 = vmatprep.subr.mxu0 0.0
    %3482 = vmatpush1.msra.mxu0 %v3361
    %3483 = vmatprep.subr.mxu0 0.0
    %3484 = vmatpush1.msra.mxu0 %v3360
    %3485 = vmatprep.subr.mxu0 0.0
    %3486 = vmatpush1.msra.mxu0 %v3359
    %3487 = vmatprep.subr.mxu0 0.0
    %3488 = vmatpush1.msra.mxu0 %v3358
    %3489 = vmatprep.subr.mxu0 0.0
    %3490 = vmatpush2.msra.mxu0 0.0
    %3491 = vmatprep.subr.mxu0 0.0
    %3492 = vmatpush2.msra.mxu0 0.0
    %3493 = vmatprep.subr.mxu0 0.0
    %3494 = vmatpush2.msra.mxu0 0.0
    %3495 = vmatprep.subr.mxu0 0.0
    %3496 = vmatpush2.msra.mxu0 0.0
    %3497 = vmatprep.subr.mxu0 0.0
    %3498 = vmatpush2.msra.mxu0 0.0
    %3499 = vmatprep.subr.mxu0 0.0
    %3500 = vmatpush2.msra.mxu0 0.0
    %3501 = vmatprep.subr.mxu0 0.0
    %3502 = vmatpush2.msra.mxu0 0.0
    %3503 = vmatprep.subr.mxu0 0.0
    %3504 = vmatpush2.msra.mxu0 0.0
    %3505 = vmatprep.subr.mxu0 0.0
    %3506 = vmatpush2.msra.mxu0 0.0
    %3507 = vmatprep.subr.mxu0 0.0
    %3508 = vmatpush2.msra.mxu0 0.0
    %3509 = vmatprep.subr.mxu0 0.0
    %3510 = vmatpush2.msra.mxu0 0.0
    %3511 = vmatprep.subr.mxu0 0.0
    %3512 = vmatpush2.msra.mxu0 0.0
    %3513 = vmatprep.subr.mxu0 0.0
    %3514 = vmatpush2.msra.mxu0 0.0
    %3515 = vmatprep.subr.mxu0 0.0
    %3516 = vmatpush2.msra.mxu0 0.0
    %3517 = vmatprep.subr.mxu0 0.0
    %3518 = vmatpush2.msra.mxu0 0.0
    %3519 = vmatprep.subr.mxu0 0.0
    %3520 = vmatpush2.msra.mxu0 0.0
    %3521 = vmatprep.mubr.f32.mxu0 0.0
    %3522 = vmatmul.mubr.f32.gmra.mxu0 %v3383
    %v3523 = vpop.f32.mrf.mxu0
    %v3524 = vadd.f32 %v3454, %v3523
    %v3525 = vpop.f32.mrf.mxu0
    %3526 = vdwg.mxu0
    %vm3527 = vcmask 9216
    %3528 = vst.msk [vmem:[#allocation6] sm:$0x3] %vm3527, %v3524
    // Predicated region
    $region30: #{tpu_custom_call.1} parent=1 // pred_check
      _
    $region31: #{tpu_custom_call.1} parent=1 // pred_check_branch
      %3530 = sbr.rel (0) target = $region33
    $region32: #{tpu_custom_call.1} parent=1 // pred_region
      %s3532 = ssub.s32 96, 96
      %3533 = vsyncadd [#allocation4], %s3532
      %s3535 = sshll.u32 [#allocation5], 4
      %s3536 = int_to_ptr.vmem [resolvable:$true] %s3535
      %3538 = dma.vmem_to_hbm [thread:$0]  %s3536, 96, %s6, [#allocation4]
    $region33: #{tpu_custom_call.1} parent=1 // pred_fallthru
      _
    // Predicated region
    $region34: #{tpu_custom_call.1} parent=1 // pred_check
      _
    $region35: #{tpu_custom_call.1} parent=1 // pred_check_branch
      %3540 = sbr.rel (0) target = $region37
    $region36: #{tpu_custom_call.1} parent=1 // pred_region
      %s3542 = ssub.s32 32, 32
      %3543 = vsyncadd [#allocation7], %s3542
      %s3545 = sshll.u32 [#allocation6], 4
      %s3546 = int_to_ptr.vmem [resolvable:$true] %s3545
      %3548 = dma.vmem_to_hbm [thread:$0]  %s3546, 32, %s7, [#allocation7]
    $region37: #{tpu_custom_call.1} parent=1 // pred_fallthru
      _
    // Predicated region
    $region38: #{tpu_custom_call.1} parent=1 // pred_check
      _
    $region39: #{tpu_custom_call.1} parent=1 // pred_check_branch
      %3550 = sbr.rel (0) target = $region41
    $region40: #{tpu_custom_call.1} parent=1 // pred_region
      %3551 = dma.done [#allocation4], 96
    $region41: #{tpu_custom_call.1} parent=1 // pred_fallthru
      _
    // Predicated region
    $region42: #{tpu_custom_call.1} parent=1 // pred_check
      _
    $region43: #{tpu_custom_call.1} parent=1 // pred_check_branch
      %3553 = sbr.rel (0) target = $region45
    $region44: #{tpu_custom_call.1} parent=1 // pred_region
      %3554 = dma.done [#allocation7], 32
    $region45: #{tpu_custom_call.1} parent=1 // pred_fallthru
      _
    %3555 = vsyncpa [#allocation3], 1
    %3556 = vsyncpa [#allocation4], 1
    %3557 = vsyncpa [#allocation7], 1

</llo_original>
